<compile_context>
chip_gen: v7x
topology: tpu7x:2x2x1
jax: 0.10.0
libtpu: 0.0.40
codegen_flags: <defaults>
</compile_context>

<pallas_src>
import functools
import math

import jax
import jax.numpy as jnp
from jax.experimental import pallas as pl
from jax.experimental.pallas import tpu as pltpu


_MASK_BIAS = -1.0e9
_VMEM_LIMIT_BYTES = 48 * 1024 * 1024   # re-derive per model generation (<= ~56 MiB on v7x)


def _compiler_params():
    return pltpu.CompilerParams(
        dimension_semantics=("parallel", "parallel"),
        vmem_limit_bytes=_VMEM_LIMIT_BYTES,
    )


# ---------------------------------------------------------------------------
# In-kernel math helpers
# ---------------------------------------------------------------------------

def _layer_norm(x, gamma, beta, eps):
    mu = jnp.mean(x, axis=-1, keepdims=True)
    var = jnp.mean(jnp.square(x - mu), axis=-1, keepdims=True)
    return (x - mu) * jax.lax.rsqrt(var + eps) * gamma + beta


def _mha_into(heads_ref, q_in, kv_in, bias,
              wq_ref, bq_ref, wk_ref, bk_ref, wv_ref, bv_ref, *, num_heads):
    """Multi-head attention; per-head outputs are written into `heads_ref`
    (a (tq, D) f32 VMEM scratch) so the caller applies W_o as ONE full-depth matmul."""
    f32 = jnp.float32
    q = jnp.dot(q_in, wq_ref[...], preferred_element_type=f32) + bq_ref[...]   # (tq, D)
    k = jnp.dot(kv_in, wk_ref[...], preferred_element_type=f32) + bk_ref[...]  # (S,  D)
    v = jnp.dot(kv_in, wv_ref[...], preferred_element_type=f32) + bv_ref[...]  # (S,  D)
    d = q.shape[-1]
    dk = d // num_heads
    scale = 1.0 / math.sqrt(dk)
    for h in range(num_heads):
        lo = h * dk
        s = jax.lax.dot_general(q[:, lo:lo + dk], k[:, lo:lo + dk],
                                (((1,), (1,)), ((), ())),
                                preferred_element_type=f32)
        s = s * scale + bias                               # additive mask bias, hoisted
        m = jnp.max(s, axis=-1, keepdims=True)
        p = jnp.exp(s - m)
        # 1/denominator folded into the (tq, dk) head output (not the (tq, S) probs).
        # approx=True would move this onto the EUP; exact keeps the f32 demo check tight.
        inv_l = pl.reciprocal(jnp.sum(p, axis=-1, keepdims=True), approx=False)
        heads_ref[:, lo:lo + dk] = (
            jnp.dot(p, v[:, lo:lo + dk], preferred_element_type=f32) * inv_l)


# ---------------------------------------------------------------------------
# Fused decoder-layer kernel (self-attn + src-attn + FFN, residual in VMEM)
# ---------------------------------------------------------------------------

def _decoder_layer_kernel(x_ref, mem_ref, tmask_ref, smask_ref,
                          sa_g_ref, sa_b_ref, sa_wq_ref, sa_bq_ref, sa_wk_ref,
                          sa_bk_ref, sa_wv_ref, sa_bv_ref, sa_wo_ref, sa_bo_ref,
                          ca_g_ref, ca_b_ref, ca_wq_ref, ca_bq_ref, ca_wk_ref,
                          ca_bk_ref, ca_wv_ref, ca_bv_ref, ca_wo_ref, ca_bo_ref,
                          ff_g_ref, ff_b_ref, ff_w1_ref, ff_b1_ref, ff_w2_ref,
                          ff_b2_ref, o_ref, heads_ref, *, num_heads, eps, tq):
    f32 = jnp.float32
    ti = pl.program_id(1)
    row0 = pl.multiple_of(ti * tq, tq)

    x_full = x_ref[...].astype(f32)                   # (T, D) full seq (self-attn K/V source)
    x_tile = x_ref[pl.ds(row0, tq), :].astype(f32)    # (tq, D) query / residual rows

    # Additive attention biases, computed once per grid step (never (B,T,S) in HBM).
    tgt_bias = jnp.where(tmask_ref[...] != 0, 0.0, _MASK_BIAS).astype(f32)   # (tq|1, T)
    src_bias = jnp.where(smask_ref[...] != 0, 0.0, _MASK_BIAS).astype(f32)   # (1, S)

    # ---- sublayer 1: x + SelfAttn(LN(x)) -----------------------------------
    xn_full = _layer_norm(x_full, sa_g_ref[...], sa_b_ref[...], eps)
    xn_tile = _layer_norm(x_tile, sa_g_ref[...], sa_b_ref[...], eps)   # LN is row-wise
    _mha_into(heads_ref, xn_tile, xn_full, tgt_bias,
              sa_wq_ref, sa_bq_ref, sa_wk_ref, sa_bk_ref, sa_wv_ref, sa_bv_ref,
              num_heads=num_heads)
    x_tile = x_tile + jnp.dot(heads_ref[...], sa_wo_ref[...],
                              preferred_element_type=f32) + sa_bo_ref[...]

    # ---- sublayer 2: x + SrcAttn(LN(x), memory) ----------------------------
    xn_tile = _layer_norm(x_tile, ca_g_ref[...], ca_b_ref[...], eps)
    mem = mem_ref[...].astype(f32)
    _mha_into(heads_ref, xn_tile, mem, src_bias,
              ca_wq_ref, ca_bq_ref, ca_wk_ref, ca_bk_ref, ca_wv_ref, ca_bv_ref,
              num_heads=num_heads)
    x_tile = x_tile + jnp.dot(heads_ref[...], ca_wo_ref[...],
                              preferred_element_type=f32) + ca_bo_ref[...]

    # ---- sublayer 3: x + FFN(LN(x)) -----------------------------------------
    xn_tile = _layer_norm(x_tile, ff_g_ref[...], ff_b_ref[...], eps)
    h = jnp.dot(xn_tile, ff_w1_ref[...], preferred_element_type=f32) + ff_b1_ref[...]
    h = jnp.maximum(h, 0.0)
    x_tile = x_tile + jnp.dot(h, ff_w2_ref[...], preferred_element_type=f32) + ff_b2_ref[...]

    o_ref[...] = x_tile.astype(o_ref.dtype)


def _final_norm_kernel(x_ref, g_ref, b_ref, o_ref, *, eps):
    o_ref[...] = _layer_norm(x_ref[...].astype(jnp.float32),
                             g_ref[...], b_ref[...], eps).astype(o_ref.dtype)


# ---------------------------------------------------------------------------
# pallas_call wrappers
# ---------------------------------------------------------------------------

def _mask_spec(mask, tq):
    """Stream masks in their compact original shape; broadcast happens in-kernel."""
    mb, mt, ms = mask.shape
    bt = tq if mt > 1 else 1

    def imap(bidx, i, mb=mb, mt=mt):
        return (bidx if mb > 1 else 0, i if mt > 1 else 0, 0)

    return pl.BlockSpec((None, bt, ms), imap)


def decoder_layer(memory, x, src_mask, tgt_mask, lp, *, num_heads, eps, tq):
    bsz, t, d = x.shape
    s = memory.shape[1]
    f = lp["ffn"]["w1"].shape[1]
    nt = t // tq

    def const(shape):
        # Constant index map -> DMA'd once, VMEM-resident across all grid steps.
        return pl.BlockSpec(shape, lambda bidx, i, _n=len(shape): (0,) * _n)

    def attn_ops(p):
        ops = [p["ln_g"], p["ln_b"], p["wq"], p["bq"], p["wk"], p["bk"],
               p["wv"], p["bv"], p["wo"], p["bo"]]
        specs = ([const((1, d)), const((1, d))]
                 + [const((d, d)), const((1, d))] * 4)
        return ops, specs

    sa_ops, sa_specs = attn_ops(lp["self_attn"])
    ca_ops, ca_specs = attn_ops(lp["src_attn"])
    ffp = lp["ffn"]
    ff_ops = [ffp["ln_g"], ffp["ln_b"], ffp["w1"], ffp["b1"], ffp["w2"], ffp["b2"]]
    ff_specs = [const((1, d)), const((1, d)), const((d, f)), const((1, f)),
                const((f, d)), const((1, d))]

    in_specs = ([pl.BlockSpec((None, t, d), lambda bidx, i: (bidx, 0, 0)),   # x (full seq / batch)
                 pl.BlockSpec((None, s, d), lambda bidx, i: (bidx, 0, 0)),   # memory
                 _mask_spec(tgt_mask, tq),
                 _mask_spec(src_mask, tq)]
                + sa_specs + ca_specs + ff_specs)
    args = [x, memory, tgt_mask, src_mask] + sa_ops + ca_ops + ff_ops

    kernel = functools.partial(_decoder_layer_kernel,
                               num_heads=num_heads, eps=eps, tq=tq)
    return pl.pallas_call(
        kernel,
        out_shape=jax.ShapeDtypeStruct((bsz, t, d), x.dtype),
        grid=(bsz, nt),
        in_specs=in_specs,
        out_specs=pl.BlockSpec((None, tq, d), lambda bidx, i: (bidx, i, 0)),
        scratch_shapes=[pltpu.VMEM((tq, d), jnp.float32)],   # per-head output slots
        compiler_params=_compiler_params(),
    )(*args)


def final_layernorm(x, g, b, *, eps, tq):
    bsz, t, d = x.shape
    nt = t // tq
    return pl.pallas_call(
        functools.partial(_final_norm_kernel, eps=eps),
        out_shape=jax.ShapeDtypeStruct((bsz, t, d), x.dtype),
        grid=(bsz, nt),
        in_specs=[pl.BlockSpec((None, tq, d), lambda bidx, i: (bidx, i, 0)),
                  pl.BlockSpec((1, d), lambda bidx, i: (0, 0)),
                  pl.BlockSpec((1, d), lambda bidx, i: (0, 0))],
        out_specs=pl.BlockSpec((None, tq, d), lambda bidx, i: (bidx, i, 0)),
        compiler_params=_compiler_params(),
    )(x, g, b)


def decoder_forward(memory, x, src_mask, tgt_mask, params, *, num_heads,
                    eps=1e-5, tq=128):
    """Decoder.forward(memory, x, src_mask, tgt_mask) built from fused Pallas kernels."""
    bsz, t, d = x.shape
    assert d % num_heads == 0
    tq = min(tq, t)
    assert t % tq == 0 and tq % 8 == 0, "seq tile must divide T and be a multiple of 8"
    for lyr in params["layers"]:
        x = decoder_layer(memory, x, src_mask, tgt_mask, lyr,
                          num_heads=num_heads, eps=eps, tq=tq)
    return final_layernorm(x, params["norm_g"], params["norm_b"], eps=eps, tq=tq)


# ---------------------------------------------------------------------------
# Parameters & pure-JAX reference
# ---------------------------------------------------------------------------

def init_params(key, *, n_layers, d_model, d_ff):
    def nxt():
        nonlocal key
        key, sub = jax.random.split(key)
        return sub

    def linear(fan_in, shape):
        return jax.random.normal(nxt(), shape, jnp.float32) / math.sqrt(fan_in)

    def ln_pair(d):
        return (1.0 + 0.1 * jax.random.normal(nxt(), (1, d), jnp.float32),
                0.02 * jax.random.normal(nxt(), (1, d), jnp.float32))

    def attn_params():
        g, b = ln_pair(d_model)
        return dict(ln_g=g, ln_b=b,
                    wq=linear(d_model, (d_model, d_model)), bq=linear(d_model, (1, d_model)),
                    wk=linear(d_model, (d_model, d_model)), bk=linear(d_model, (1, d_model)),
                    wv=linear(d_model, (d_model, d_model)), bv=linear(d_model, (1, d_model)),
                    wo=linear(d_model, (d_model, d_model)), bo=linear(d_model, (1, d_model)))

    def ffn_params():
        g, b = ln_pair(d_model)
        return dict(ln_g=g, ln_b=b,
                    w1=linear(d_model, (d_model, d_ff)), b1=linear(d_model, (1, d_ff)),
                    w2=linear(d_ff, (d_ff, d_model)), b2=linear(d_ff, (1, d_model)))

    layers = [dict(self_attn=attn_params(), src_attn=attn_params(), ffn=ffn_params())
              for _ in range(n_layers)]
    norm_g, norm_b = ln_pair(d_model)
    return dict(layers=layers, norm_g=norm_g, norm_b=norm_b)


def _mm(a, b):
    return jnp.matmul(a, b, precision=jax.lax.Precision.HIGHEST)


def _mha_ref(q_in, kv_in, bias, p, num_heads):
    hi = jax.lax.Precision.HIGHEST
    q = _mm(q_in, p["wq"]) + p["bq"]
    k = _mm(kv_in, p["wk"]) + p["bk"]
    v = _mm(kv_in, p["wv"]) + p["bv"]
    bsz, t, d = q.shape
    s = k.shape[1]
    dk = d // num_heads
    qh = q.reshape(bsz, t, num_heads, dk).transpose(0, 2, 1, 3)
    kh = k.reshape(bsz, s, num_heads, dk).transpose(0, 2, 1, 3)
    vh = v.reshape(bsz, s, num_heads, dk).transpose(0, 2, 1, 3)
    sc = jnp.einsum("bhtd,bhsd->bhts", qh, kh, precision=hi) * (1.0 / math.sqrt(dk))
    sc = sc + bias[:, None]
    a = jax.nn.softmax(sc, axis=-1)
    o = jnp.einsum("bhts,bhsd->bhtd", a, vh, precision=hi)
    o = o.transpose(0, 2, 1, 3).reshape(bsz, t, d)
    return _mm(o, p["wo"]) + p["bo"]


def decoder_forward_ref(memory, x, src_mask, tgt_mask, params, *, num_heads, eps=1e-5):
    tgt_bias = jnp.where(tgt_mask != 0, 0.0, _MASK_BIAS).astype(jnp.float32)
    src_bias = jnp.where(src_mask != 0, 0.0, _MASK_BIAS).astype(jnp.float32)
    for lyr in params["layers"]:
        sa, ca, ff = lyr["self_attn"], lyr["src_attn"], lyr["ffn"]
        xn = _layer_norm(x, sa["ln_g"], sa["ln_b"], eps)
        x = x + _mha_ref(xn, xn, tgt_bias, sa, num_heads)
        xn = _layer_norm(x, ca["ln_g"], ca["ln_b"], eps)
        x = x + _mha_ref(xn, memory, src_bias, ca, num_heads)
        xn = _layer_norm(x, ff["ln_g"], ff["ln_b"], eps)
        h = jnp.maximum(_mm(xn, ff["w1"]) + ff["b1"], 0.0)
        x = x + _mm(h, ff["w2"]) + ff["b2"]
    return _layer_norm(x, params["norm_g"], params["norm_b"], eps)


# ---------------------------------------------------------------------------
# Demo
# ---------------------------------------------------------------------------

if __name__ == "__main__":
    key = jax.random.PRNGKey(0)
    B, T, S = 2, 16, 8                # batch, tgt len, src (memory) len
    D, H, F, N_LAYERS = 256, 2, 512, 2  # d_model, heads (dk=128, lane-aligned), d_ff, layers
    TQ = 8                            # seq tile -> grid (B, T//TQ) = (2, 2)

    k_params, k_x, k_mem = jax.random.split(key, 3)
    params = init_params(k_params, n_layers=N_LAYERS, d_model=D, d_ff=F)
    x = jax.random.normal(k_x, (B, T, D), dtype=jnp.float32)
    memory = jax.random.normal(k_mem, (B, S, D), dtype=jnp.float32)

    # Causal target mask (1, T, T); source padding mask (B, 1, S) with the last
    # source position of batch element 1 masked out.  Neither is broadcast to
    # (B, T, S) -- they stream in compact form and become additive biases in-kernel.
    tgt_mask = jnp.tril(jnp.ones((T, T), jnp.float32))[None]
    src_mask = jnp.ones((B, 1, S), jnp.float32).at[1, 0, S - 1].set(0.0)

    out = decoder_forward(memory, x, src_mask, tgt_mask, params, num_heads=H, tq=TQ)
    out = jax.block_until_ready(out)

    ref = decoder_forward_ref(memory, x, src_mask, tgt_mask, params, num_heads=H)
    err = float(jnp.max(jnp.abs(out - ref)))
    assert out.shape == (B, T, D)
    assert jnp.allclose(out, ref, rtol=2e-3, atol=2e-3), err

    print("KERNEL_OK")
</pallas_src>

<mosaic_0001>
module attributes {stable_mosaic.version = 11 : i64} {
  func.func @_decoder_layer_kernel(%arg0: i32, %arg1: i32, %arg2: memref<1x16x256xf32, #tpu.memory_space<vmem>>, %arg3: memref<1x8x256xf32, #tpu.memory_space<vmem>>, %arg4: memref<1x8x16xf32, #tpu.memory_space<vmem>>, %arg5: memref<1x1x8xf32, #tpu.memory_space<vmem>>, %arg6: memref<1x256xf32, #tpu.memory_space<vmem>>, %arg7: memref<1x256xf32, #tpu.memory_space<vmem>>, %arg8: memref<256x256xf32, #tpu.memory_space<vmem>>, %arg9: memref<1x256xf32, #tpu.memory_space<vmem>>, %arg10: memref<256x256xf32, #tpu.memory_space<vmem>>, %arg11: memref<1x256xf32, #tpu.memory_space<vmem>>, %arg12: memref<256x256xf32, #tpu.memory_space<vmem>>, %arg13: memref<1x256xf32, #tpu.memory_space<vmem>>, %arg14: memref<256x256xf32, #tpu.memory_space<vmem>>, %arg15: memref<1x256xf32, #tpu.memory_space<vmem>>, %arg16: memref<1x256xf32, #tpu.memory_space<vmem>>, %arg17: memref<1x256xf32, #tpu.memory_space<vmem>>, %arg18: memref<256x256xf32, #tpu.memory_space<vmem>>, %arg19: memref<1x256xf32, #tpu.memory_space<vmem>>, %arg20: memref<256x256xf32, #tpu.memory_space<vmem>>, %arg21: memref<1x256xf32, #tpu.memory_space<vmem>>, %arg22: memref<256x256xf32, #tpu.memory_space<vmem>>, %arg23: memref<1x256xf32, #tpu.memory_space<vmem>>, %arg24: memref<256x256xf32, #tpu.memory_space<vmem>>, %arg25: memref<1x256xf32, #tpu.memory_space<vmem>>, %arg26: memref<1x256xf32, #tpu.memory_space<vmem>>, %arg27: memref<1x256xf32, #tpu.memory_space<vmem>>, %arg28: memref<256x512xf32, #tpu.memory_space<vmem>>, %arg29: memref<1x512xf32, #tpu.memory_space<vmem>>, %arg30: memref<512x256xf32, #tpu.memory_space<vmem>>, %arg31: memref<1x256xf32, #tpu.memory_space<vmem>>, %arg32: memref<1x8x256xf32, #tpu.memory_space<vmem>>, %arg33: memref<8x256xf32, #tpu.memory_space<vmem>>) attributes {dimension_semantics = [#tpu.dimension_semantics<parallel>, #tpu.dimension_semantics<parallel>], iteration_bounds = array<i64: 2, 2>, scalar_prefetch = 0 : i64, scratch_operands = 1 : i64, tpu.core_type = #tpu.core_type<tc>, window_params = [{transform_indices = @transform_0, window_bounds = array<i64: 1, 16, 256>}, {transform_indices = @transform_1, window_bounds = array<i64: 1, 8, 256>}, {transform_indices = @transform_2, window_bounds = array<i64: 1, 8, 16>}, {transform_indices = @transform_3, window_bounds = array<i64: 1, 1, 8>}, {pipeline_mode = #tpu.pipeline_mode<synchronous>, transform_indices = @transform_4, window_bounds = array<i64: 1, 256>}, {pipeline_mode = #tpu.pipeline_mode<synchronous>, transform_indices = @transform_5, window_bounds = array<i64: 1, 256>}, {pipeline_mode = #tpu.pipeline_mode<synchronous>, transform_indices = @transform_6, window_bounds = array<i64: 256, 256>}, {pipeline_mode = #tpu.pipeline_mode<synchronous>, transform_indices = @transform_7, window_bounds = array<i64: 1, 256>}, {pipeline_mode = #tpu.pipeline_mode<synchronous>, transform_indices = @transform_8, window_bounds = array<i64: 256, 256>}, {pipeline_mode = #tpu.pipeline_mode<synchronous>, transform_indices = @transform_9, window_bounds = array<i64: 1, 256>}, {pipeline_mode = #tpu.pipeline_mode<synchronous>, transform_indices = @transform_10, window_bounds = array<i64: 256, 256>}, {pipeline_mode = #tpu.pipeline_mode<synchronous>, transform_indices = @transform_11, window_bounds = array<i64: 1, 256>}, {pipeline_mode = #tpu.pipeline_mode<synchronous>, transform_indices = @transform_12, window_bounds = array<i64: 256, 256>}, {pipeline_mode = #tpu.pipeline_mode<synchronous>, transform_indices = @transform_13, window_bounds = array<i64: 1, 256>}, {pipeline_mode = #tpu.pipeline_mode<synchronous>, transform_indices = @transform_14, window_bounds = array<i64: 1, 256>}, {pipeline_mode = #tpu.pipeline_mode<synchronous>, transform_indices = @transform_15, window_bounds = array<i64: 1, 256>}, {pipeline_mode = #tpu.pipeline_mode<synchronous>, transform_indices = @transform_16, window_bounds = array<i64: 256, 256>}, {pipeline_mode = #tpu.pipeline_mode<synchronous>, transform_indices = @transform_17, window_bounds = array<i64: 1, 256>}, {pipeline_mode = #tpu.pipeline_mode<synchronous>, transform_indices = @transform_18, window_bounds = array<i64: 256, 256>}, {pipeline_mode = #tpu.pipeline_mode<synchronous>, transform_indices = @transform_19, window_bounds = array<i64: 1, 256>}, {pipeline_mode = #tpu.pipeline_mode<synchronous>, transform_indices = @transform_20, window_bounds = array<i64: 256, 256>}, {pipeline_mode = #tpu.pipeline_mode<synchronous>, transform_indices = @transform_21, window_bounds = array<i64: 1, 256>}, {pipeline_mode = #tpu.pipeline_mode<synchronous>, transform_indices = @transform_22, window_bounds = array<i64: 256, 256>}, {pipeline_mode = #tpu.pipeline_mode<synchronous>, transform_indices = @transform_23, window_bounds = array<i64: 1, 256>}, {pipeline_mode = #tpu.pipeline_mode<synchronous>, transform_indices = @transform_24, window_bounds = array<i64: 1, 256>}, {pipeline_mode = #tpu.pipeline_mode<synchronous>, transform_indices = @transform_25, window_bounds = array<i64: 1, 256>}, {pipeline_mode = #tpu.pipeline_mode<synchronous>, transform_indices = @transform_26, window_bounds = array<i64: 256, 512>}, {pipeline_mode = #tpu.pipeline_mode<synchronous>, transform_indices = @transform_27, window_bounds = array<i64: 1, 512>}, {pipeline_mode = #tpu.pipeline_mode<synchronous>, transform_indices = @transform_28, window_bounds = array<i64: 512, 256>}, {pipeline_mode = #tpu.pipeline_mode<synchronous>, transform_indices = @transform_29, window_bounds = array<i64: 1, 256>}, {transform_indices = @transform_30, window_bounds = array<i64: 1, 8, 256>}]} {
    %c8_i32 = arith.constant 8 : i32
    %0 = arith.muli %arg1, %c8_i32 : i32
    %1 = tpu.assume_multiple %0, 8 : i32
    %c0 = arith.constant 0 : index
    %c0_0 = arith.constant 0 : index
    %c0_1 = arith.constant 0 : index
    %2 = vector.load %arg2[%c0, %c0_0, %c0_1] : memref<1x16x256xf32, #tpu.memory_space<vmem>>, vector<1x16x256xf32>
    %3 = vector.shape_cast %2 : vector<1x16x256xf32> to vector<16x256xf32>
    %c0_2 = arith.constant 0 : index
    %4 = arith.index_cast %1 : i32 to index
    %c0_3 = arith.constant 0 : index
    %5 = vector.load %arg2[%c0_2, %4, %c0_3] : memref<1x16x256xf32, #tpu.memory_space<vmem>>, vector<1x8x256xf32>
    %6 = vector.shape_cast %5 : vector<1x8x256xf32> to vector<8x256xf32>
    %c0_4 = arith.constant 0 : index
    %c0_5 = arith.constant 0 : index
    %c0_6 = arith.constant 0 : index
    %7 = vector.load %arg4[%c0_4, %c0_5, %c0_6] : memref<1x8x16xf32, #tpu.memory_space<vmem>>, vector<1x8x16xf32>
    %8 = vector.shape_cast %7 : vector<1x8x16xf32> to vector<8x16xf32>
    %cst = arith.constant 0.000000e+00 : f32
    %9 = vector.broadcast %cst : f32 to vector<8x16xf32>
    %10 = arith.cmpf one, %8, %9 : vector<8x16xf32>
    %cst_7 = arith.constant 0.000000e+00 : f32
    %cst_8 = arith.constant -1.000000e+09 : f32
    %11 = vector.broadcast %cst_7 : f32 to vector<8x16xf32>
    %12 = vector.broadcast %cst_8 : f32 to vector<8x16xf32>
    %13 = arith.select %10, %11, %12 : vector<8x16xi1>, vector<8x16xf32>
    %c0_9 = arith.constant 0 : index
    %c0_10 = arith.constant 0 : index
    %c0_11 = arith.constant 0 : index
    %14 = vector.load %arg5[%c0_9, %c0_10, %c0_11] : memref<1x1x8xf32, #tpu.memory_space<vmem>>, vector<1x1x8xf32>
    %15 = vector.shape_cast %14 : vector<1x1x8xf32> to vector<1x8xf32>
    %cst_12 = arith.constant 0.000000e+00 : f32
    %16 = vector.broadcast %cst_12 : f32 to vector<1x8xf32>
    %17 = arith.cmpf one, %15, %16 : vector<1x8xf32>
    %cst_13 = arith.constant 0.000000e+00 : f32
    %cst_14 = arith.constant -1.000000e+09 : f32
    %18 = vector.broadcast %cst_13 : f32 to vector<1x8xf32>
    %19 = vector.broadcast %cst_14 : f32 to vector<1x8xf32>
    %20 = arith.select %17, %18, %19 : vector<1x8xi1>, vector<1x8xf32>
    %c0_15 = arith.constant 0 : index
    %c0_16 = arith.constant 0 : index
    %21 = vector.load %arg6[%c0_15, %c0_16] : memref<1x256xf32, #tpu.memory_space<vmem>>, vector<1x256xf32>
    %c0_17 = arith.constant 0 : index
    %c0_18 = arith.constant 0 : index
    %22 = vector.load %arg7[%c0_17, %c0_18] : memref<1x256xf32, #tpu.memory_space<vmem>>, vector<1x256xf32>
    %cst_19 = arith.constant dense<0.000000e+00> : vector<16xf32>
    %23 = vector.multi_reduction <add>, %3, %cst_19 [1] : vector<16x256xf32> to vector<16xf32>
    %24 = vector.shape_cast %23 : vector<16xf32> to vector<16x1xf32>
    %cst_20 = arith.constant 2.560000e+02 : f32
    %25 = vector.broadcast %cst_20 : f32 to vector<16x1xf32>
    %26 = arith.divf %24, %25 : vector<16x1xf32>
    %27 = vector.broadcast %26 : vector<16x1xf32> to vector<16x256xf32>
    %28 = arith.subf %3, %27 : vector<16x256xf32>
    %29 = arith.mulf %28, %28 : vector<16x256xf32>
    %cst_21 = arith.constant dense<0.000000e+00> : vector<16xf32>
    %30 = vector.multi_reduction <add>, %29, %cst_21 [1] : vector<16x256xf32> to vector<16xf32>
    %31 = vector.shape_cast %30 : vector<16xf32> to vector<16x1xf32>
    %cst_22 = arith.constant 2.560000e+02 : f32
    %32 = vector.broadcast %cst_22 : f32 to vector<16x1xf32>
    %33 = arith.divf %31, %32 : vector<16x1xf32>
    %34 = vector.broadcast %26 : vector<16x1xf32> to vector<16x256xf32>
    %35 = arith.subf %3, %34 : vector<16x256xf32>
    %cst_23 = arith.constant 9.99999974E-6 : f32
    %36 = vector.broadcast %cst_23 : f32 to vector<16x1xf32>
    %37 = arith.addf %33, %36 : vector<16x1xf32>
    %38 = math.rsqrt %37 : vector<16x1xf32>
    %39 = vector.broadcast %38 : vector<16x1xf32> to vector<16x256xf32>
    %40 = arith.mulf %35, %39 : vector<16x256xf32>
    %41 = vector.broadcast %21 : vector<1x256xf32> to vector<16x256xf32>
    %42 = arith.mulf %40, %41 : vector<16x256xf32>
    %43 = vector.broadcast %22 : vector<1x256xf32> to vector<16x256xf32>
    %44 = arith.addf %42, %43 : vector<16x256xf32>
    %c0_24 = arith.constant 0 : index
    %c0_25 = arith.constant 0 : index
    %45 = vector.load %arg6[%c0_24, %c0_25] : memref<1x256xf32, #tpu.memory_space<vmem>>, vector<1x256xf32>
    %c0_26 = arith.constant 0 : index
    %c0_27 = arith.constant 0 : index
    %46 = vector.load %arg7[%c0_26, %c0_27] : memref<1x256xf32, #tpu.memory_space<vmem>>, vector<1x256xf32>
    %cst_28 = arith.constant dense<0.000000e+00> : vector<8xf32>
    %47 = vector.multi_reduction <add>, %6, %cst_28 [1] : vector<8x256xf32> to vector<8xf32>
    %48 = vector.shape_cast %47 : vector<8xf32> to vector<8x1xf32>
    %cst_29 = arith.constant 2.560000e+02 : f32
    %49 = vector.broadcast %cst_29 : f32 to vector<8x1xf32>
    %50 = arith.divf %48, %49 : vector<8x1xf32>
    %51 = vector.broadcast %50 : vector<8x1xf32> to vector<8x256xf32>
    %52 = arith.subf %6, %51 : vector<8x256xf32>
    %53 = arith.mulf %52, %52 : vector<8x256xf32>
    %cst_30 = arith.constant dense<0.000000e+00> : vector<8xf32>
    %54 = vector.multi_reduction <add>, %53, %cst_30 [1] : vector<8x256xf32> to vector<8xf32>
    %55 = vector.shape_cast %54 : vector<8xf32> to vector<8x1xf32>
    %cst_31 = arith.constant 2.560000e+02 : f32
    %56 = vector.broadcast %cst_31 : f32 to vector<8x1xf32>
    %57 = arith.divf %55, %56 : vector<8x1xf32>
    %58 = vector.broadcast %50 : vector<8x1xf32> to vector<8x256xf32>
    %59 = arith.subf %6, %58 : vector<8x256xf32>
    %cst_32 = arith.constant 9.99999974E-6 : f32
    %60 = vector.broadcast %cst_32 : f32 to vector<8x1xf32>
    %61 = arith.addf %57, %60 : vector<8x1xf32>
    %62 = math.rsqrt %61 : vector<8x1xf32>
    %63 = vector.broadcast %62 : vector<8x1xf32> to vector<8x256xf32>
    %64 = arith.mulf %59, %63 : vector<8x256xf32>
    %65 = vector.broadcast %45 : vector<1x256xf32> to vector<8x256xf32>
    %66 = arith.mulf %64, %65 : vector<8x256xf32>
    %67 = vector.broadcast %46 : vector<1x256xf32> to vector<8x256xf32>
    %68 = arith.addf %66, %67 : vector<8x256xf32>
    %c0_33 = arith.constant 0 : index
    %c0_34 = arith.constant 0 : index
    %69 = vector.load %arg8[%c0_33, %c0_34] : memref<256x256xf32, #tpu.memory_space<vmem>>, vector<256x256xf32>
    %cst_35 = arith.constant dense<0.000000e+00> : vector<8x256xf32>
    %70 = tpu.matmul %68, %69, %cst_35 {dimension_numbers = #tpu.dot_dimension_numbers<[1], [0], [0], [1], [0, 0, 1, 1], [], []>} : vector<8x256xf32>, vector<256x256xf32>, vector<8x256xf32> -> vector<8x256xf32>
    %c0_36 = arith.constant 0 : index
    %c0_37 = arith.constant 0 : index
    %71 = vector.load %arg9[%c0_36, %c0_37] : memref<1x256xf32, #tpu.memory_space<vmem>>, vector<1x256xf32>
    %72 = vector.broadcast %71 : vector<1x256xf32> to vector<8x256xf32>
    %73 = arith.addf %70, %72 : vector<8x256xf32>
    %c0_38 = arith.constant 0 : index
    %c0_39 = arith.constant 0 : index
    %74 = vector.load %arg10[%c0_38, %c0_39] : memref<256x256xf32, #tpu.memory_space<vmem>>, vector<256x256xf32>
    %cst_40 = arith.constant dense<0.000000e+00> : vector<16x256xf32>
    %75 = tpu.matmul %44, %74, %cst_40 {dimension_numbers = #tpu.dot_dimension_numbers<[1], [0], [0], [1], [0, 0, 1, 1], [], []>} : vector<16x256xf32>, vector<256x256xf32>, vector<16x256xf32> -> vector<16x256xf32>
    %c0_41 = arith.constant 0 : index
    %c0_42 = arith.constant 0 : index
    %76 = vector.load %arg11[%c0_41, %c0_42] : memref<1x256xf32, #tpu.memory_space<vmem>>, vector<1x256xf32>
    %77 = vector.broadcast %76 : vector<1x256xf32> to vector<16x256xf32>
    %78 = arith.addf %75, %77 : vector<16x256xf32>
    %c0_43 = arith.constant 0 : index
    %c0_44 = arith.constant 0 : index
    %79 = vector.load %arg12[%c0_43, %c0_44] : memref<256x256xf32, #tpu.memory_space<vmem>>, vector<256x256xf32>
    %cst_45 = arith.constant dense<0.000000e+00> : vector<16x256xf32>
    %80 = tpu.matmul %44, %79, %cst_45 {dimension_numbers = #tpu.dot_dimension_numbers<[1], [0], [0], [1], [0, 0, 1, 1], [], []>} : vector<16x256xf32>, vector<256x256xf32>, vector<16x256xf32> -> vector<16x256xf32>
    %c0_46 = arith.constant 0 : index
    %c0_47 = arith.constant 0 : index
    %81 = vector.load %arg13[%c0_46, %c0_47] : memref<1x256xf32, #tpu.memory_space<vmem>>, vector<1x256xf32>
    %82 = vector.broadcast %81 : vector<1x256xf32> to vector<16x256xf32>
    %83 = arith.addf %80, %82 : vector<16x256xf32>
    %84 = vector.extract_strided_slice %73 {offsets = [0, 0], sizes = [8, 128], strides = [1, 1]} : vector<8x256xf32> to vector<8x128xf32>
    %85 = vector.extract_strided_slice %78 {offsets = [0, 0], sizes = [16, 128], strides = [1, 1]} : vector<16x256xf32> to vector<16x128xf32>
    %cst_48 = arith.constant dense<0.000000e+00> : vector<8x16xf32>
    %86 = tpu.matmul %84, %85, %cst_48 {dimension_numbers = #tpu.dot_dimension_numbers<[1], [1], [0], [0], [0, 0, 1, 0], [], []>} : vector<8x128xf32>, vector<16x128xf32>, vector<8x16xf32> -> vector<8x16xf32>
    %cst_49 = arith.constant 0.0883883461 : f32
    %87 = vector.broadcast %cst_49 : f32 to vector<8x16xf32>
    %88 = arith.mulf %86, %87 : vector<8x16xf32>
    %89 = arith.addf %88, %13 : vector<8x16xf32>
    %cst_50 = arith.constant dense<0xFF800000> : vector<8xf32>
    %90 = vector.multi_reduction <maximumf>, %89, %cst_50 [1] : vector<8x16xf32> to vector<8xf32>
    %91 = vector.shape_cast %90 : vector<8xf32> to vector<8x1xf32>
    %92 = vector.broadcast %91 : vector<8x1xf32> to vector<8x16xf32>
    %93 = arith.subf %89, %92 : vector<8x16xf32>
    %94 = math.exp %93 : vector<8x16xf32>
    %cst_51 = arith.constant dense<0.000000e+00> : vector<8xf32>
    %95 = vector.multi_reduction <add>, %94, %cst_51 [1] : vector<8x16xf32> to vector<8xf32>
    %96 = vector.shape_cast %95 : vector<8xf32> to vector<8x1xf32>
    %97 = tpu.reciprocal %96 : vector<8x1xf32> -> vector<8x1xf32>
    %98 = vector.extract_strided_slice %83 {offsets = [0, 0], sizes = [16, 128], strides = [1, 1]} : vector<16x256xf32> to vector<16x128xf32>
    %cst_52 = arith.constant dense<0.000000e+00> : vector<8x128xf32>
    %99 = tpu.matmul %94, %98, %cst_52 {dimension_numbers = #tpu.dot_dimension_numbers<[1], [0], [0], [1], [0, 0, 1, 1], [], []>} : vector<8x16xf32>, vector<16x128xf32>, vector<8x128xf32> -> vector<8x128xf32>
    %100 = vector.broadcast %97 : vector<8x1xf32> to vector<8x128xf32>
    %101 = arith.mulf %99, %100 : vector<8x128xf32>
    %c0_53 = arith.constant 0 : index
    %c0_54 = arith.constant 0 : index
    %102 = vector.load %arg33[%c0_53, %c0_54] : memref<8x256xf32, #tpu.memory_space<vmem>>, vector<8x128xf32>
    tpu.vector_store %arg33[%c0_53, %c0_54], %101 {strides = array<i32>} : memref<8x256xf32, #tpu.memory_space<vmem>>, vector<8x128xf32>,
    %103 = vector.extract_strided_slice %73 {offsets = [0, 128], sizes = [8, 128], strides = [1, 1]} : vector<8x256xf32> to vector<8x128xf32>
    %104 = vector.extract_strided_slice %78 {offsets = [0, 128], sizes = [16, 128], strides = [1, 1]} : vector<16x256xf32> to vector<16x128xf32>
    %cst_55 = arith.constant dense<0.000000e+00> : vector<8x16xf32>
    %105 = tpu.matmul %103, %104, %cst_55 {dimension_numbers = #tpu.dot_dimension_numbers<[1], [1], [0], [0], [0, 0, 1, 0], [], []>} : vector<8x128xf32>, vector<16x128xf32>, vector<8x16xf32> -> vector<8x16xf32>
    %cst_56 = arith.constant 0.0883883461 : f32
    %106 = vector.broadcast %cst_56 : f32 to vector<8x16xf32>
    %107 = arith.mulf %105, %106 : vector<8x16xf32>
    %108 = arith.addf %107, %13 : vector<8x16xf32>
    %cst_57 = arith.constant dense<0xFF800000> : vector<8xf32>
    %109 = vector.multi_reduction <maximumf>, %108, %cst_57 [1] : vector<8x16xf32> to vector<8xf32>
    %110 = vector.shape_cast %109 : vector<8xf32> to vector<8x1xf32>
    %111 = vector.broadcast %110 : vector<8x1xf32> to vector<8x16xf32>
    %112 = arith.subf %108, %111 : vector<8x16xf32>
    %113 = math.exp %112 : vector<8x16xf32>
    %cst_58 = arith.constant dense<0.000000e+00> : vector<8xf32>
    %114 = vector.multi_reduction <add>, %113, %cst_58 [1] : vector<8x16xf32> to vector<8xf32>
    %115 = vector.shape_cast %114 : vector<8xf32> to vector<8x1xf32>
    %116 = tpu.reciprocal %115 : vector<8x1xf32> -> vector<8x1xf32>
    %117 = vector.extract_strided_slice %83 {offsets = [0, 128], sizes = [16, 128], strides = [1, 1]} : vector<16x256xf32> to vector<16x128xf32>
    %cst_59 = arith.constant dense<0.000000e+00> : vector<8x128xf32>
    %118 = tpu.matmul %113, %117, %cst_59 {dimension_numbers = #tpu.dot_dimension_numbers<[1], [0], [0], [1], [0, 0, 1, 1], [], []>} : vector<8x16xf32>, vector<16x128xf32>, vector<8x128xf32> -> vector<8x128xf32>
    %119 = vector.broadcast %116 : vector<8x1xf32> to vector<8x128xf32>
    %120 = arith.mulf %118, %119 : vector<8x128xf32>
    %c0_60 = arith.constant 0 : index
    %c128 = arith.constant 128 : index
    %121 = vector.load %arg33[%c0_60, %c128] : memref<8x256xf32, #tpu.memory_space<vmem>>, vector<8x128xf32>
    tpu.vector_store %arg33[%c0_60, %c128], %120 {strides = array<i32>} : memref<8x256xf32, #tpu.memory_space<vmem>>, vector<8x128xf32>,
    %c0_61 = arith.constant 0 : index
    %c0_62 = arith.constant 0 : index
    %122 = vector.load %arg33[%c0_61, %c0_62] : memref<8x256xf32, #tpu.memory_space<vmem>>, vector<8x256xf32>
    %c0_63 = arith.constant 0 : index
    %c0_64 = arith.constant 0 : index
    %123 = vector.load %arg14[%c0_63, %c0_64] : memref<256x256xf32, #tpu.memory_space<vmem>>, vector<256x256xf32>
    %cst_65 = arith.constant dense<0.000000e+00> : vector<8x256xf32>
    %124 = tpu.matmul %122, %123, %cst_65 {dimension_numbers = #tpu.dot_dimension_numbers<[1], [0], [0], [1], [0, 0, 1, 1], [], []>} : vector<8x256xf32>, vector<256x256xf32>, vector<8x256xf32> -> vector<8x256xf32>
    %125 = arith.addf %6, %124 : vector<8x256xf32>
    %c0_66 = arith.constant 0 : index
    %c0_67 = arith.constant 0 : index
    %126 = vector.load %arg15[%c0_66, %c0_67] : memref<1x256xf32, #tpu.memory_space<vmem>>, vector<1x256xf32>
    %127 = vector.broadcast %126 : vector<1x256xf32> to vector<8x256xf32>
    %128 = arith.addf %125, %127 : vector<8x256xf32>
    %c0_68 = arith.constant 0 : index
    %c0_69 = arith.constant 0 : index
    %129 = vector.load %arg16[%c0_68, %c0_69] : memref<1x256xf32, #tpu.memory_space<vmem>>, vector<1x256xf32>
    %c0_70 = arith.constant 0 : index
    %c0_71 = arith.constant 0 : index
    %130 = vector.load %arg17[%c0_70, %c0_71] : memref<1x256xf32, #tpu.memory_space<vmem>>, vector<1x256xf32>
    %cst_72 = arith.constant dense<0.000000e+00> : vector<8xf32>
    %131 = vector.multi_reduction <add>, %128, %cst_72 [1] : vector<8x256xf32> to vector<8xf32>
    %132 = vector.shape_cast %131 : vector<8xf32> to vector<8x1xf32>
    %cst_73 = arith.constant 2.560000e+02 : f32
    %133 = vector.broadcast %cst_73 : f32 to vector<8x1xf32>
    %134 = arith.divf %132, %133 : vector<8x1xf32>
    %135 = vector.broadcast %134 : vector<8x1xf32> to vector<8x256xf32>
    %136 = arith.subf %128, %135 : vector<8x256xf32>
    %137 = arith.mulf %136, %136 : vector<8x256xf32>
    %cst_74 = arith.constant dense<0.000000e+00> : vector<8xf32>
    %138 = vector.multi_reduction <add>, %137, %cst_74 [1] : vector<8x256xf32> to vector<8xf32>
    %139 = vector.shape_cast %138 : vector<8xf32> to vector<8x1xf32>
    %cst_75 = arith.constant 2.560000e+02 : f32
    %140 = vector.broadcast %cst_75 : f32 to vector<8x1xf32>
    %141 = arith.divf %139, %140 : vector<8x1xf32>
    %142 = vector.broadcast %134 : vector<8x1xf32> to vector<8x256xf32>
    %143 = arith.subf %128, %142 : vector<8x256xf32>
    %cst_76 = arith.constant 9.99999974E-6 : f32
    %144 = vector.broadcast %cst_76 : f32 to vector<8x1xf32>
    %145 = arith.addf %141, %144 : vector<8x1xf32>
    %146 = math.rsqrt %145 : vector<8x1xf32>
    %147 = vector.broadcast %146 : vector<8x1xf32> to vector<8x256xf32>
    %148 = arith.mulf %143, %147 : vector<8x256xf32>
    %149 = vector.broadcast %129 : vector<1x256xf32> to vector<8x256xf32>
    %150 = arith.mulf %148, %149 : vector<8x256xf32>
    %151 = vector.broadcast %130 : vector<1x256xf32> to vector<8x256xf32>
    %152 = arith.addf %150, %151 : vector<8x256xf32>
    %c0_77 = arith.constant 0 : index
    %c0_78 = arith.constant 0 : index
    %c0_79 = arith.constant 0 : index
    %153 = vector.load %arg3[%c0_77, %c0_78, %c0_79] : memref<1x8x256xf32, #tpu.memory_space<vmem>>, vector<1x8x256xf32>
    %154 = vector.shape_cast %153 : vector<1x8x256xf32> to vector<8x256xf32>
    %c0_80 = arith.constant 0 : index
    %c0_81 = arith.constant 0 : index
    %155 = vector.load %arg18[%c0_80, %c0_81] : memref<256x256xf32, #tpu.memory_space<vmem>>, vector<256x256xf32>
    %cst_82 = arith.constant dense<0.000000e+00> : vector<8x256xf32>
    %156 = tpu.matmul %152, %155, %cst_82 {dimension_numbers = #tpu.dot_dimension_numbers<[1], [0], [0], [1], [0, 0, 1, 1], [], []>} : vector<8x256xf32>, vector<256x256xf32>, vector<8x256xf32> -> vector<8x256xf32>
    %c0_83 = arith.constant 0 : index
    %c0_84 = arith.constant 0 : index
    %157 = vector.load %arg19[%c0_83, %c0_84] : memref<1x256xf32, #tpu.memory_space<vmem>>, vector<1x256xf32>
    %158 = vector.broadcast %157 : vector<1x256xf32> to vector<8x256xf32>
    %159 = arith.addf %156, %158 : vector<8x256xf32>
    %c0_85 = arith.constant 0 : index
    %c0_86 = arith.constant 0 : index
    %160 = vector.load %arg20[%c0_85, %c0_86] : memref<256x256xf32, #tpu.memory_space<vmem>>, vector<256x256xf32>
    %cst_87 = arith.constant dense<0.000000e+00> : vector<8x256xf32>
    %161 = tpu.matmul %154, %160, %cst_87 {dimension_numbers = #tpu.dot_dimension_numbers<[1], [0], [0], [1], [0, 0, 1, 1], [], []>} : vector<8x256xf32>, vector<256x256xf32>, vector<8x256xf32> -> vector<8x256xf32>
    %c0_88 = arith.constant 0 : index
    %c0_89 = arith.constant 0 : index
    %162 = vector.load %arg21[%c0_88, %c0_89] : memref<1x256xf32, #tpu.memory_space<vmem>>, vector<1x256xf32>
    %163 = vector.broadcast %162 : vector<1x256xf32> to vector<8x256xf32>
    %164 = arith.addf %161, %163 : vector<8x256xf32>
    %c0_90 = arith.constant 0 : index
    %c0_91 = arith.constant 0 : index
    %165 = vector.load %arg22[%c0_90, %c0_91] : memref<256x256xf32, #tpu.memory_space<vmem>>, vector<256x256xf32>
    %cst_92 = arith.constant dense<0.000000e+00> : vector<8x256xf32>
    %166 = tpu.matmul %154, %165, %cst_92 {dimension_numbers = #tpu.dot_dimension_numbers<[1], [0], [0], [1], [0, 0, 1, 1], [], []>} : vector<8x256xf32>, vector<256x256xf32>, vector<8x256xf32> -> vector<8x256xf32>
    %c0_93 = arith.constant 0 : index
    %c0_94 = arith.constant 0 : index
    %167 = vector.load %arg23[%c0_93, %c0_94] : memref<1x256xf32, #tpu.memory_space<vmem>>, vector<1x256xf32>
    %168 = vector.broadcast %167 : vector<1x256xf32> to vector<8x256xf32>
    %169 = arith.addf %166, %168 : vector<8x256xf32>
    %170 = vector.extract_strided_slice %159 {offsets = [0, 0], sizes = [8, 128], strides = [1, 1]} : vector<8x256xf32> to vector<8x128xf32>
    %171 = vector.extract_strided_slice %164 {offsets = [0, 0], sizes = [8, 128], strides = [1, 1]} : vector<8x256xf32> to vector<8x128xf32>
    %cst_95 = arith.constant dense<0.000000e+00> : vector<8x8xf32>
    %172 = tpu.matmul %170, %171, %cst_95 {dimension_numbers = #tpu.dot_dimension_numbers<[1], [1], [0], [0], [0, 0, 1, 0], [], []>} : vector<8x128xf32>, vector<8x128xf32>, vector<8x8xf32> -> vector<8x8xf32>
    %cst_96 = arith.constant 0.0883883461 : f32
    %173 = vector.broadcast %cst_96 : f32 to vector<8x8xf32>
    %174 = arith.mulf %172, %173 : vector<8x8xf32>
    %175 = vector.broadcast %20 : vector<1x8xf32> to vector<8x8xf32>
    %176 = arith.addf %174, %175 : vector<8x8xf32>
    %cst_97 = arith.constant dense<0xFF800000> : vector<8xf32>
    %177 = vector.multi_reduction <maximumf>, %176, %cst_97 [1] : vector<8x8xf32> to vector<8xf32>
    %178 = vector.shape_cast %177 : vector<8xf32> to vector<8x1xf32>
    %179 = vector.broadcast %178 : vector<8x1xf32> to vector<8x8xf32>
    %180 = arith.subf %176, %179 : vector<8x8xf32>
    %181 = math.exp %180 : vector<8x8xf32>
    %cst_98 = arith.constant dense<0.000000e+00> : vector<8xf32>
    %182 = vector.multi_reduction <add>, %181, %cst_98 [1] : vector<8x8xf32> to vector<8xf32>
    %183 = vector.shape_cast %182 : vector<8xf32> to vector<8x1xf32>
    %184 = tpu.reciprocal %183 : vector<8x1xf32> -> vector<8x1xf32>
    %185 = vector.extract_strided_slice %169 {offsets = [0, 0], sizes = [8, 128], strides = [1, 1]} : vector<8x256xf32> to vector<8x128xf32>
    %cst_99 = arith.constant dense<0.000000e+00> : vector<8x128xf32>
    %186 = tpu.matmul %181, %185, %cst_99 {dimension_numbers = #tpu.dot_dimension_numbers<[1], [0], [0], [1], [0, 0, 1, 1], [], []>} : vector<8x8xf32>, vector<8x128xf32>, vector<8x128xf32> -> vector<8x128xf32>
    %187 = vector.broadcast %184 : vector<8x1xf32> to vector<8x128xf32>
    %188 = arith.mulf %186, %187 : vector<8x128xf32>
    %c0_100 = arith.constant 0 : index
    %c0_101 = arith.constant 0 : index
    %189 = vector.load %arg33[%c0_100, %c0_101] : memref<8x256xf32, #tpu.memory_space<vmem>>, vector<8x128xf32>
    tpu.vector_store %arg33[%c0_100, %c0_101], %188 {strides = array<i32>} : memref<8x256xf32, #tpu.memory_space<vmem>>, vector<8x128xf32>,
    %190 = vector.extract_strided_slice %159 {offsets = [0, 128], sizes = [8, 128], strides = [1, 1]} : vector<8x256xf32> to vector<8x128xf32>
    %191 = vector.extract_strided_slice %164 {offsets = [0, 128], sizes = [8, 128], strides = [1, 1]} : vector<8x256xf32> to vector<8x128xf32>
    %cst_102 = arith.constant dense<0.000000e+00> : vector<8x8xf32>
    %192 = tpu.matmul %190, %191, %cst_102 {dimension_numbers = #tpu.dot_dimension_numbers<[1], [1], [0], [0], [0, 0, 1, 0], [], []>} : vector<8x128xf32>, vector<8x128xf32>, vector<8x8xf32> -> vector<8x8xf32>
    %cst_103 = arith.constant 0.0883883461 : f32
    %193 = vector.broadcast %cst_103 : f32 to vector<8x8xf32>
    %194 = arith.mulf %192, %193 : vector<8x8xf32>
    %195 = vector.broadcast %20 : vector<1x8xf32> to vector<8x8xf32>
    %196 = arith.addf %194, %195 : vector<8x8xf32>
    %cst_104 = arith.constant dense<0xFF800000> : vector<8xf32>
    %197 = vector.multi_reduction <maximumf>, %196, %cst_104 [1] : vector<8x8xf32> to vector<8xf32>
    %198 = vector.shape_cast %197 : vector<8xf32> to vector<8x1xf32>
    %199 = vector.broadcast %198 : vector<8x1xf32> to vector<8x8xf32>
    %200 = arith.subf %196, %199 : vector<8x8xf32>
    %201 = math.exp %200 : vector<8x8xf32>
    %cst_105 = arith.constant dense<0.000000e+00> : vector<8xf32>
    %202 = vector.multi_reduction <add>, %201, %cst_105 [1] : vector<8x8xf32> to vector<8xf32>
    %203 = vector.shape_cast %202 : vector<8xf32> to vector<8x1xf32>
    %204 = tpu.reciprocal %203 : vector<8x1xf32> -> vector<8x1xf32>
    %205 = vector.extract_strided_slice %169 {offsets = [0, 128], sizes = [8, 128], strides = [1, 1]} : vector<8x256xf32> to vector<8x128xf32>
    %cst_106 = arith.constant dense<0.000000e+00> : vector<8x128xf32>
    %206 = tpu.matmul %201, %205, %cst_106 {dimension_numbers = #tpu.dot_dimension_numbers<[1], [0], [0], [1], [0, 0, 1, 1], [], []>} : vector<8x8xf32>, vector<8x128xf32>, vector<8x128xf32> -> vector<8x128xf32>
    %207 = vector.broadcast %204 : vector<8x1xf32> to vector<8x128xf32>
    %208 = arith.mulf %206, %207 : vector<8x128xf32>
    %c0_107 = arith.constant 0 : index
    %c128_108 = arith.constant 128 : index
    %209 = vector.load %arg33[%c0_107, %c128_108] : memref<8x256xf32, #tpu.memory_space<vmem>>, vector<8x128xf32>
    tpu.vector_store %arg33[%c0_107, %c128_108], %208 {strides = array<i32>} : memref<8x256xf32, #tpu.memory_space<vmem>>, vector<8x128xf32>,
    %c0_109 = arith.constant 0 : index
    %c0_110 = arith.constant 0 : index
    %210 = vector.load %arg33[%c0_109, %c0_110] : memref<8x256xf32, #tpu.memory_space<vmem>>, vector<8x256xf32>
    %c0_111 = arith.constant 0 : index
    %c0_112 = arith.constant 0 : index
    %211 = vector.load %arg24[%c0_111, %c0_112] : memref<256x256xf32, #tpu.memory_space<vmem>>, vector<256x256xf32>
    %cst_113 = arith.constant dense<0.000000e+00> : vector<8x256xf32>
    %212 = tpu.matmul %210, %211, %cst_113 {dimension_numbers = #tpu.dot_dimension_numbers<[1], [0], [0], [1], [0, 0, 1, 1], [], []>} : vector<8x256xf32>, vector<256x256xf32>, vector<8x256xf32> -> vector<8x256xf32>
    %213 = arith.addf %128, %212 : vector<8x256xf32>
    %c0_114 = arith.constant 0 : index
    %c0_115 = arith.constant 0 : index
    %214 = vector.load %arg25[%c0_114, %c0_115] : memref<1x256xf32, #tpu.memory_space<vmem>>, vector<1x256xf32>
    %215 = vector.broadcast %214 : vector<1x256xf32> to vector<8x256xf32>
    %216 = arith.addf %213, %215 : vector<8x256xf32>
    %c0_116 = arith.constant 0 : index
    %c0_117 = arith.constant 0 : index
    %217 = vector.load %arg26[%c0_116, %c0_117] : memref<1x256xf32, #tpu.memory_space<vmem>>, vector<1x256xf32>
    %c0_118 = arith.constant 0 : index
    %c0_119 = arith.constant 0 : index
    %218 = vector.load %arg27[%c0_118, %c0_119] : memref<1x256xf32, #tpu.memory_space<vmem>>, vector<1x256xf32>
    %cst_120 = arith.constant dense<0.000000e+00> : vector<8xf32>
    %219 = vector.multi_reduction <add>, %216, %cst_120 [1] : vector<8x256xf32> to vector<8xf32>
    %220 = vector.shape_cast %219 : vector<8xf32> to vector<8x1xf32>
    %cst_121 = arith.constant 2.560000e+02 : f32
    %221 = vector.broadcast %cst_121 : f32 to vector<8x1xf32>
    %222 = arith.divf %220, %221 : vector<8x1xf32>
    %223 = vector.broadcast %222 : vector<8x1xf32> to vector<8x256xf32>
    %224 = arith.subf %216, %223 : vector<8x256xf32>
    %225 = arith.mulf %224, %224 : vector<8x256xf32>
    %cst_122 = arith.constant dense<0.000000e+00> : vector<8xf32>
    %226 = vector.multi_reduction <add>, %225, %cst_122 [1] : vector<8x256xf32> to vector<8xf32>
    %227 = vector.shape_cast %226 : vector<8xf32> to vector<8x1xf32>
    %cst_123 = arith.constant 2.560000e+02 : f32
    %228 = vector.broadcast %cst_123 : f32 to vector<8x1xf32>
    %229 = arith.divf %227, %228 : vector<8x1xf32>
    %230 = vector.broadcast %222 : vector<8x1xf32> to vector<8x256xf32>
    %231 = arith.subf %216, %230 : vector<8x256xf32>
    %cst_124 = arith.constant 9.99999974E-6 : f32
    %232 = vector.broadcast %cst_124 : f32 to vector<8x1xf32>
    %233 = arith.addf %229, %232 : vector<8x1xf32>
    %234 = math.rsqrt %233 : vector<8x1xf32>
    %235 = vector.broadcast %234 : vector<8x1xf32> to vector<8x256xf32>
    %236 = arith.mulf %231, %235 : vector<8x256xf32>
    %237 = vector.broadcast %217 : vector<1x256xf32> to vector<8x256xf32>
    %238 = arith.mulf %236, %237 : vector<8x256xf32>
    %239 = vector.broadcast %218 : vector<1x256xf32> to vector<8x256xf32>
    %240 = arith.addf %238, %239 : vector<8x256xf32>
    %c0_125 = arith.constant 0 : index
    %c0_126 = arith.constant 0 : index
    %241 = vector.load %arg28[%c0_125, %c0_126] : memref<256x512xf32, #tpu.memory_space<vmem>>, vector<256x512xf32>
    %cst_127 = arith.constant dense<0.000000e+00> : vector<8x512xf32>
    %242 = tpu.matmul %240, %241, %cst_127 {dimension_numbers = #tpu.dot_dimension_numbers<[1], [0], [0], [1], [0, 0, 1, 1], [], []>} : vector<8x256xf32>, vector<256x512xf32>, vector<8x512xf32> -> vector<8x512xf32>
    %c0_128 = arith.constant 0 : index
    %c0_129 = arith.constant 0 : index
    %243 = vector.load %arg29[%c0_128, %c0_129] : memref<1x512xf32, #tpu.memory_space<vmem>>, vector<1x512xf32>
    %244 = vector.broadcast %243 : vector<1x512xf32> to vector<8x512xf32>
    %245 = arith.addf %242, %244 : vector<8x512xf32>
    %cst_130 = arith.constant 0.000000e+00 : f32
    %246 = vector.broadcast %cst_130 : f32 to vector<8x512xf32>
    %247 = arith.maximumf %245, %246 : vector<8x512xf32>
    %c0_131 = arith.constant 0 : index
    %c0_132 = arith.constant 0 : index
    %248 = vector.load %arg30[%c0_131, %c0_132] : memref<512x256xf32, #tpu.memory_space<vmem>>, vector<512x256xf32>
    %cst_133 = arith.constant dense<0.000000e+00> : vector<8x256xf32>
    %249 = tpu.matmul %247, %248, %cst_133 {dimension_numbers = #tpu.dot_dimension_numbers<[1], [0], [0], [1], [0, 0, 1, 1], [], []>} : vector<8x512xf32>, vector<512x256xf32>, vector<8x256xf32> -> vector<8x256xf32>
    %250 = arith.addf %216, %249 : vector<8x256xf32>
    %c0_134 = arith.constant 0 : index
    %c0_135 = arith.constant 0 : index
    %251 = vector.load %arg31[%c0_134, %c0_135] : memref<1x256xf32, #tpu.memory_space<vmem>>, vector<1x256xf32>
    %252 = vector.broadcast %251 : vector<1x256xf32> to vector<8x256xf32>
    %253 = arith.addf %250, %252 : vector<8x256xf32>
    %c0_136 = arith.constant 0 : index
    %c0_137 = arith.constant 0 : index
    %c0_138 = arith.constant 0 : index
    %254 = vector.load %arg32[%c0_136, %c0_137, %c0_138] : memref<1x8x256xf32, #tpu.memory_space<vmem>>, vector<1x8x256xf32>
    %255 = vector.shape_cast %254 : vector<1x8x256xf32> to vector<8x256xf32>
    %256 = vector.shape_cast %253 : vector<8x256xf32> to vector<1x8x256xf32>
    tpu.vector_store %arg32[%c0_136, %c0_137, %c0_138], %256 {strides = array<i32>} : memref<1x8x256xf32, #tpu.memory_space<vmem>>, vector<1x8x256xf32>,
    return
  }
  func.func @transform_0(%arg0: i32, %arg1: i32) -> (i32, i32, i32) {
    %c0_i32 = arith.constant 0 : i32
    %c0_i32_0 = arith.constant 0 : i32
    %c0_i32_1 = arith.constant 0 : i32
    return %arg0, %c0_i32, %c0_i32_0 : i32, i32, i32
  }
  func.func @transform_1(%arg0: i32, %arg1: i32) -> (i32, i32, i32) {
    %c0_i32 = arith.constant 0 : i32
    %c0_i32_0 = arith.constant 0 : i32
    %c0_i32_1 = arith.constant 0 : i32
    return %arg0, %c0_i32, %c0_i32_0 : i32, i32, i32
  }
  func.func @transform_2(%arg0: i32, %arg1: i32) -> (i32, i32, i32) {
    %c0_i32 = arith.constant 0 : i32
    %c0_i32_0 = arith.constant 0 : i32
    %c0_i32_1 = arith.constant 0 : i32
    return %c0_i32, %arg1, %c0_i32_0 : i32, i32, i32
  }
  func.func @transform_3(%arg0: i32, %arg1: i32) -> (i32, i32, i32) {
    %c0_i32 = arith.constant 0 : i32
    %c0_i32_0 = arith.constant 0 : i32
    %c0_i32_1 = arith.constant 0 : i32
    return %arg0, %c0_i32, %c0_i32_0 : i32, i32, i32
  }
  func.func @transform_4(%arg0: i32, %arg1: i32) -> (i32, i32) {
    %c0_i32 = arith.constant 0 : i32
    %c0_i32_0 = arith.constant 0 : i32
    %c0_i32_1 = arith.constant 0 : i32
    return %c0_i32, %c0_i32_0 : i32, i32
  }
  func.func @transform_5(%arg0: i32, %arg1: i32) -> (i32, i32) {
    %c0_i32 = arith.constant 0 : i32
    %c0_i32_0 = arith.constant 0 : i32
    %c0_i32_1 = arith.constant 0 : i32
    return %c0_i32, %c0_i32_0 : i32, i32
  }
  func.func @transform_6(%arg0: i32, %arg1: i32) -> (i32, i32) {
    %c0_i32 = arith.constant 0 : i32
    %c0_i32_0 = arith.constant 0 : i32
    %c0_i32_1 = arith.constant 0 : i32
    return %c0_i32, %c0_i32_0 : i32, i32
  }
  func.func @transform_7(%arg0: i32, %arg1: i32) -> (i32, i32) {
    %c0_i32 = arith.constant 0 : i32
    %c0_i32_0 = arith.constant 0 : i32
    %c0_i32_1 = arith.constant 0 : i32
    return %c0_i32, %c0_i32_0 : i32, i32
  }
  func.func @transform_8(%arg0: i32, %arg1: i32) -> (i32, i32) {
    %c0_i32 = arith.constant 0 : i32
    %c0_i32_0 = arith.constant 0 : i32
    %c0_i32_1 = arith.constant 0 : i32
    return %c0_i32, %c0_i32_0 : i32, i32
  }
  func.func @transform_9(%arg0: i32, %arg1: i32) -> (i32, i32) {
    %c0_i32 = arith.constant 0 : i32
    %c0_i32_0 = arith.constant 0 : i32
    %c0_i32_1 = arith.constant 0 : i32
    return %c0_i32, %c0_i32_0 : i32, i32
  }
  func.func @transform_10(%arg0: i32, %arg1: i32) -> (i32, i32) {
    %c0_i32 = arith.constant 0 : i32
    %c0_i32_0 = arith.constant 0 : i32
    %c0_i32_1 = arith.constant 0 : i32
    return %c0_i32, %c0_i32_0 : i32, i32
  }
  func.func @transform_11(%arg0: i32, %arg1: i32) -> (i32, i32) {
    %c0_i32 = arith.constant 0 : i32
    %c0_i32_0 = arith.constant 0 : i32
    %c0_i32_1 = arith.constant 0 : i32
    return %c0_i32, %c0_i32_0 : i32, i32
  }
  func.func @transform_12(%arg0: i32, %arg1: i32) -> (i32, i32) {
    %c0_i32 = arith.constant 0 : i32
    %c0_i32_0 = arith.constant 0 : i32
    %c0_i32_1 = arith.constant 0 : i32
    return %c0_i32, %c0_i32_0 : i32, i32
  }
  func.func @transform_13(%arg0: i32, %arg1: i32) -> (i32, i32) {
    %c0_i32 = arith.constant 0 : i32
    %c0_i32_0 = arith.constant 0 : i32
    %c0_i32_1 = arith.constant 0 : i32
    return %c0_i32, %c0_i32_0 : i32, i32
  }
  func.func @transform_14(%arg0: i32, %arg1: i32) -> (i32, i32) {
    %c0_i32 = arith.constant 0 : i32
    %c0_i32_0 = arith.constant 0 : i32
    %c0_i32_1 = arith.constant 0 : i32
    return %c0_i32, %c0_i32_0 : i32, i32
  }
  func.func @transform_15(%arg0: i32, %arg1: i32) -> (i32, i32) {
    %c0_i32 = arith.constant 0 : i32
    %c0_i32_0 = arith.constant 0 : i32
    %c0_i32_1 = arith.constant 0 : i32
    return %c0_i32, %c0_i32_0 : i32, i32
  }
  func.func @transform_16(%arg0: i32, %arg1: i32) -> (i32, i32) {
    %c0_i32 = arith.constant 0 : i32
    %c0_i32_0 = arith.constant 0 : i32
    %c0_i32_1 = arith.constant 0 : i32
    return %c0_i32, %c0_i32_0 : i32, i32
  }
  func.func @transform_17(%arg0: i32, %arg1: i32) -> (i32, i32) {
    %c0_i32 = arith.constant 0 : i32
    %c0_i32_0 = arith.constant 0 : i32
    %c0_i32_1 = arith.constant 0 : i32
    return %c0_i32, %c0_i32_0 : i32, i32
  }
  func.func @transform_18(%arg0: i32, %arg1: i32) -> (i32, i32) {
    %c0_i32 = arith.constant 0 : i32
    %c0_i32_0 = arith.constant 0 : i32
    %c0_i32_1 = arith.constant 0 : i32
    return %c0_i32, %c0_i32_0 : i32, i32
  }
  func.func @transform_19(%arg0: i32, %arg1: i32) -> (i32, i32) {
    %c0_i32 = arith.constant 0 : i32
    %c0_i32_0 = arith.constant 0 : i32
    %c0_i32_1 = arith.constant 0 : i32
    return %c0_i32, %c0_i32_0 : i32, i32
  }
  func.func @transform_20(%arg0: i32, %arg1: i32) -> (i32, i32) {
    %c0_i32 = arith.constant 0 : i32
    %c0_i32_0 = arith.constant 0 : i32
    %c0_i32_1 = arith.constant 0 : i32
    return %c0_i32, %c0_i32_0 : i32, i32
  }
  func.func @transform_21(%arg0: i32, %arg1: i32) -> (i32, i32) {
    %c0_i32 = arith.constant 0 : i32
    %c0_i32_0 = arith.constant 0 : i32
    %c0_i32_1 = arith.constant 0 : i32
    return %c0_i32, %c0_i32_0 : i32, i32
  }
  func.func @transform_22(%arg0: i32, %arg1: i32) -> (i32, i32) {
    %c0_i32 = arith.constant 0 : i32
    %c0_i32_0 = arith.constant 0 : i32
    %c0_i32_1 = arith.constant 0 : i32
    return %c0_i32, %c0_i32_0 : i32, i32
  }
  func.func @transform_23(%arg0: i32, %arg1: i32) -> (i32, i32) {
    %c0_i32 = arith.constant 0 : i32
    %c0_i32_0 = arith.constant 0 : i32
    %c0_i32_1 = arith.constant 0 : i32
    return %c0_i32, %c0_i32_0 : i32, i32
  }
  func.func @transform_24(%arg0: i32, %arg1: i32) -> (i32, i32) {
    %c0_i32 = arith.constant 0 : i32
    %c0_i32_0 = arith.constant 0 : i32
    %c0_i32_1 = arith.constant 0 : i32
    return %c0_i32, %c0_i32_0 : i32, i32
  }
  func.func @transform_25(%arg0: i32, %arg1: i32) -> (i32, i32) {
    %c0_i32 = arith.constant 0 : i32
    %c0_i32_0 = arith.constant 0 : i32
    %c0_i32_1 = arith.constant 0 : i32
    return %c0_i32, %c0_i32_0 : i32, i32
  }
  func.func @transform_26(%arg0: i32, %arg1: i32) -> (i32, i32) {
    %c0_i32 = arith.constant 0 : i32
    %c0_i32_0 = arith.constant 0 : i32
    %c0_i32_1 = arith.constant 0 : i32
    return %c0_i32, %c0_i32_0 : i32, i32
  }
  func.func @transform_27(%arg0: i32, %arg1: i32) -> (i32, i32) {
    %c0_i32 = arith.constant 0 : i32
    %c0_i32_0 = arith.constant 0 : i32
    %c0_i32_1 = arith.constant 0 : i32
    return %c0_i32, %c0_i32_0 : i32, i32
  }
  func.func @transform_28(%arg0: i32, %arg1: i32) -> (i32, i32) {
    %c0_i32 = arith.constant 0 : i32
    %c0_i32_0 = arith.constant 0 : i32
    %c0_i32_1 = arith.constant 0 : i32
    return %c0_i32, %c0_i32_0 : i32, i32
  }
  func.func @transform_29(%arg0: i32, %arg1: i32) -> (i32, i32) {
    %c0_i32 = arith.constant 0 : i32
    %c0_i32_0 = arith.constant 0 : i32
    %c0_i32_1 = arith.constant 0 : i32
    return %c0_i32, %c0_i32_0 : i32, i32
  }
  func.func @transform_30(%arg0: i32, %arg1: i32) -> (i32, i32, i32) {
    %c0_i32 = arith.constant 0 : i32
    %c0_i32_0 = arith.constant 0 : i32
    return %arg0, %arg1, %c0_i32 : i32, i32, i32
  }
}

</mosaic_0001>

<llo_original>
// kernel: tpu_custom_call.1
$region0: #{tpu_custom_call.1}
  #allocation0 [shape = 'u32[]', space=smem, size = 0x4, offset = 0x4, fixed_abs, tag = 'smem constant byte address 0x4 - core index']
  #allocation1 [shape = 'u32[144,128]{1,0:T(1,128)}', space=vmem, size = 0x12000, scoped, tag = 'internal scratch']
  #allocation2 [shape = 'f32[8,256]{1,0:T(8,128)}', space=vmem, size = 0x2000, scoped, tag = 'scratch operand']
  %s0 = inlined_call_operand.smem [shape: u32[31], index: -1, kind: input, shape index: {}]
  %s1 = sld [smem:[%s0]]
  %s2 = scalar_lea.smem %s0, 1
  %s3 = sld [smem:[%s2]]
  %s4 = scalar_lea.smem %s0, 2
  %s5 = sld [smem:[%s4]]
  %s6 = scalar_lea.smem %s0, 3
  %s7 = sld [smem:[%s6]]
  %s8 = scalar_lea.smem %s0, 4
  %s9 = sld [smem:[%s8]]
  %s10 = scalar_lea.smem %s0, 5
  %s11 = sld [smem:[%s10]]
  %s12 = scalar_lea.smem %s0, 6
  %s13 = sld [smem:[%s12]]
  %s14 = scalar_lea.smem %s0, 7
  %s15 = sld [smem:[%s14]]
  %s16 = scalar_lea.smem %s0, 8
  %s17 = sld [smem:[%s16]]
  %s18 = scalar_lea.smem %s0, 9
  %s19 = sld [smem:[%s18]]
  %s20 = scalar_lea.smem %s0, 10
  %s21 = sld [smem:[%s20]]
  %s22 = scalar_lea.smem %s0, 11
  %s23 = sld [smem:[%s22]]
  %s24 = scalar_lea.smem %s0, 12
  %s25 = sld [smem:[%s24]]
  %s26 = scalar_lea.smem %s0, 13
  %s27 = sld [smem:[%s26]]
  %s28 = scalar_lea.smem %s0, 14
  %s29 = sld [smem:[%s28]]
  %s30 = scalar_lea.smem %s0, 15
  %s31 = sld [smem:[%s30]]
  %s32 = scalar_lea.smem %s0, 16
  %s33 = sld [smem:[%s32]]
  %s34 = scalar_lea.smem %s0, 17
  %s35 = sld [smem:[%s34]]
  %s36 = scalar_lea.smem %s0, 18
  %s37 = sld [smem:[%s36]]
  %s38 = scalar_lea.smem %s0, 19
  %s39 = sld [smem:[%s38]]
  %s40 = scalar_lea.smem %s0, 20
  %s41 = sld [smem:[%s40]]
  %s42 = scalar_lea.smem %s0, 21
  %s43 = sld [smem:[%s42]]
  %s44 = scalar_lea.smem %s0, 22
  %s45 = sld [smem:[%s44]]
  %s46 = scalar_lea.smem %s0, 23
  %s47 = sld [smem:[%s46]]
  %s48 = scalar_lea.smem %s0, 24
  %s49 = sld [smem:[%s48]]
  %s50 = scalar_lea.smem %s0, 25
  %s51 = sld [smem:[%s50]]
  %s52 = scalar_lea.smem %s0, 26
  %s53 = sld [smem:[%s52]]
  %s54 = scalar_lea.smem %s0, 27
  %s55 = sld [smem:[%s54]]
  %s56 = scalar_lea.smem %s0, 28
  %s57 = sld [smem:[%s56]]
  %s58 = scalar_lea.smem %s0, 29
  %s59 = sld [smem:[%s58]]
  %s60 = scalar_lea.smem %s0, 30
  %s61 = sld [smem:[%s60]]
  %s62 = sld [smem:[#allocation0]]
  $region205: #{tpu_custom_call.1} parent=0
    _
  %s64 = ssub.s32 1, %s62
  %s65 = scalar_select 0, %s64, %s62
  $region1: #{tpu_custom_call.1} parent=0
    #allocation3 [shape = 'u8[32768]{0}', space=vmem, size = 0x8000, scoped, tag = 'input window, operand 0']
    #allocation4 [shape = 's32[2]{0}', space=sflag, size = 0x8, scoped, tag = 'scoped memory for tpu_custom_call.1']
    #allocation5 [shape = 's32[2]{0}', space=sflag, size = 0x8, scoped, tag = 'scoped memory for tpu_custom_call.1']
    #allocation6 [shape = 'u8[16384]{0}', space=vmem, size = 0x4000, scoped, tag = 'input window, operand 1']
    #allocation7 [shape = 's32[2]{0}', space=sflag, size = 0x8, scoped, tag = 'scoped memory for tpu_custom_call.1']
    #allocation8 [shape = 'u8[8192]{0}', space=vmem, size = 0x2000, scoped, tag = 'input window, operand 2']
    #allocation9 [shape = 'u8[262144]{0}', space=vmem, size = 0x40000, scoped, tag = 'input window, operand 6, single buffered']
    #allocation10 [shape = 's32[1]{0}', space=sflag, size = 0x4, scoped, tag = 'scoped memory for tpu_custom_call.1']
    #allocation11 [shape = 'u8[262144]{0}', space=vmem, size = 0x40000, scoped, tag = 'input window, operand 8, single buffered']
    #allocation12 [shape = 'u8[262144]{0}', space=vmem, size = 0x40000, scoped, tag = 'input window, operand 10, single buffered']
    #allocation13 [shape = 's32[1]{0}', space=sflag, size = 0x4, scoped, tag = 'scoped memory for tpu_custom_call.1']
    #allocation14 [shape = 'u8[262144]{0}', space=vmem, size = 0x40000, scoped, tag = 'input window, operand 12, single buffered']
    #allocation15 [shape = 'u8[262144]{0}', space=vmem, size = 0x40000, scoped, tag = 'input window, operand 16, single buffered']
    #allocation16 [shape = 's32[1]{0}', space=sflag, size = 0x4, scoped, tag = 'scoped memory for tpu_custom_call.1']
    #allocation17 [shape = 'u8[262144]{0}', space=vmem, size = 0x40000, scoped, tag = 'input window, operand 18, single buffered']
    #allocation18 [shape = 'u8[262144]{0}', space=vmem, size = 0x40000, scoped, tag = 'input window, operand 20, single buffered']
    #allocation19 [shape = 's32[1]{0}', space=sflag, size = 0x4, scoped, tag = 'scoped memory for tpu_custom_call.1']
    #allocation20 [shape = 'u8[262144]{0}', space=vmem, size = 0x40000, scoped, tag = 'input window, operand 22, single buffered']
    #allocation21 [shape = 'u8[524288]{0}', space=vmem, size = 0x80000, scoped, tag = 'input window, operand 26, single buffered']
    #allocation22 [shape = 's32[1]{0}', space=sflag, size = 0x4, scoped, tag = 'scoped memory for tpu_custom_call.1']
    #allocation23 [shape = 'u8[524288]{0}', space=vmem, size = 0x80000, scoped, tag = 'input window, operand 28, single buffered']
    #allocation24 [shape = 'u8[16384]{0}', space=vmem, size = 0x4000, scoped, tag = 'output window, operand 0']
    %66 = vsyncpa [#allocation4], 0
    %s67 = scalar_lea.sflag [#allocation4], 1
    %68 = vsyncpa %s67, 0
    %69 = vsyncpa [#allocation7], 0
    %s70 = scalar_lea.sflag [#allocation7], 1
    %71 = vsyncpa %s70, 0
    %72 = vsyncpa [#allocation10], 0
    %73 = vsyncpa [#allocation13], 0
    %74 = vsyncpa [#allocation16], 0
    %75 = vsyncpa [#allocation19], 0
    %76 = vsyncpa [#allocation22], 0
    %77 = vsyncpa [#allocation5], 0
    %s78 = scalar_lea.sflag [#allocation5], 1
    %79 = vsyncpa %s78, 0
    loop: start=0, step=1, limit=6
    $region2: #{tpu_custom_call.1} parent=1 // loop_pre_header
      _
    $region3: #{tpu_custom_call.1} parent=1 // loop_header
      %s81 = sphi 0, %s85
      %p82 = scmp.ge.s32.totalorder %s81, 6
      %s88 = sphi 0, %s100
      %s89 = sphi 0, %s96
      %s90 = sphi 0, %s88
      %s91 = sphi 0, %s89
      %s92 = sphi 0, %s90
      %s93 = sphi 0, %s91
      %s103 = sphi 0, %s105
      %s106 = sphi 0, %s103
      %s107 = sphi 0, %s106
      %s123 = sphi 0, %s107
      %s129 = sphi 0, %s131
      %s132 = sphi 0, %s129
      %s133 = sphi 0, %s132
      %s149 = sphi 0, %s133
      %s155 = sphi 0, %s157
      %s158 = sphi 0, %s155
      %s159 = sphi 0, %s158
      %s175 = sphi 0, %s159
      %s181 = sphi 0, %s183
      %s184 = sphi 0, %s181
      %s185 = sphi 0, %s184
      %s201 = sphi 0, %s185
      %s205 = sphi 0, %s205
      %s207 = sphi 0, %s205
      %s208 = sphi 0, %s207
      %s222 = sphi 0, %s208
      %s226 = sphi 0, %s226
      %s228 = sphi 0, %s226
      %s229 = sphi 0, %s228
      %s243 = sphi 0, %s229
      %s247 = sphi 0, %s247
      %s249 = sphi 0, %s247
      %s250 = sphi 0, %s249
      %s264 = sphi 0, %s250
      %s268 = sphi 0, %s268
      %s270 = sphi 0, %s268
      %s271 = sphi 0, %s270
      %s285 = sphi 0, %s271
      %s289 = sphi 0, %s289
      %s291 = sphi 0, %s289
      %s292 = sphi 0, %s291
      %s306 = sphi 0, %s292
      %s310 = sphi 0, %s310
      %s312 = sphi 0, %s310
      %s313 = sphi 0, %s312
      %s327 = sphi 0, %s313
      %s331 = sphi 0, %s331
      %s333 = sphi 0, %s331
      %s334 = sphi 0, %s333
      %s348 = sphi 0, %s334
      %s352 = sphi 0, %s352
      %s354 = sphi 0, %s352
      %s355 = sphi 0, %s354
      %s369 = sphi 0, %s355
      %s373 = sphi 0, %s373
      %s375 = sphi 0, %s373
      %s376 = sphi 0, %s375
      %s390 = sphi 0, %s376
      %s394 = sphi 0, %s394
      %s396 = sphi 0, %s394
      %s397 = sphi 0, %s396
      %s411 = sphi 0, %s397
      %s415 = sphi 0, %s415
      %s417 = sphi 0, %s415
      %s418 = sphi 0, %s417
      %s432 = sphi 0, %s418
      %s436 = sphi 0, %s436
      %s438 = sphi 0, %s436
      %s439 = sphi 0, %s438
      %s453 = sphi 0, %s439
      %s457 = sphi 0, %s457
      %s459 = sphi 0, %s457
      %s460 = sphi 0, %s459
      %s474 = sphi 0, %s460
      %s478 = sphi 0, %s478
      %s480 = sphi 0, %s478
      %s481 = sphi 0, %s480
      %s495 = sphi 0, %s481
      %s499 = sphi 0, %s499
      %s501 = sphi 0, %s499
      %s502 = sphi 0, %s501
      %s516 = sphi 0, %s502
      %s520 = sphi 0, %s520
      %s522 = sphi 0, %s520
      %s523 = sphi 0, %s522
      %s537 = sphi 0, %s523
      %s541 = sphi 0, %s541
      %s543 = sphi 0, %s541
      %s544 = sphi 0, %s543
      %s558 = sphi 0, %s544
      %s562 = sphi 0, %s562
      %s564 = sphi 0, %s562
      %s565 = sphi 0, %s564
      %s579 = sphi 0, %s565
      %s583 = sphi 0, %s583
      %s585 = sphi 0, %s583
      %s586 = sphi 0, %s585
      %s600 = sphi 0, %s586
      %s604 = sphi 0, %s604
      %s606 = sphi 0, %s604
      %s607 = sphi 0, %s606
      %s621 = sphi 0, %s607
      %s625 = sphi 0, %s625
      %s627 = sphi 0, %s625
      %s628 = sphi 0, %s627
      %s642 = sphi 0, %s628
      %s646 = sphi 0, %s646
      %s648 = sphi 0, %s646
      %s649 = sphi 0, %s648
      %s663 = sphi 0, %s649
      %s667 = sphi 0, %s667
      %s669 = sphi 0, %s667
      %s670 = sphi 0, %s669
      %s684 = sphi 0, %s670
      %s688 = sphi 0, %s688
      %s690 = sphi 0, %s688
      %s691 = sphi 0, %s690
      %s705 = sphi 0, %s691
      %s709 = sphi 0, %s709
      %s711 = sphi 0, %s709
      %s712 = sphi 0, %s711
      %s726 = sphi 0, %s712
      %s730 = sphi 0, %s730
      %s732 = sphi 0, %s730
      %s733 = sphi 0, %s732
      %s747 = sphi 0, %s733
      %s755 = sphi 0, %s757
      %s758 = sphi 0, %s755
      %s759 = sphi 0, %s758
      %s775 = sphi 0, %s759
    $region4: #{tpu_custom_call.1} parent=1 // loop_header_branch
      %84 = sbr.rel (%p82) target = $region8
    $region5: #{tpu_custom_call.1} parent=1 // loop_body
      %s86 = ssub.s32 %s81, 1
      %s87 = ssub.s32 %s81, 2
      %s94 = sadd.s32 1, %s89
      %p95 = scmp.ge.s32.totalorder %s94, 2
      %s96 = scalar_select %p95, 0, %s94
      %s97 = sadd.s32 1, %s88
      %s98 = scalar_select %p95, %s97, %s88
      %p99 = scmp.ge.s32.totalorder %s98, 2
      %s100 = scalar_select %p99, 0, %s98
      %s101 = ssub.s32 %s88, %s100
      %p102 = scmp.eq.s32.totalorder %s101, 0
      %s104 = sadd.s32 %s103, 1
      %s105 = scalar_select %p102, %s103, %s104
      %p108 = pneg %p102
      %p109 = scmp.eq.s32.totalorder %s81, 3
      %p110 = por %p108, %p109
      %p111 = scmp.ne.s32.totalorder %s103, %s106
      %p112 = scmp.eq.s32.totalorder %s81, 0
      %p113 = por %p111, %p112
      %p114 = scmp.ne.s32.totalorder %s103, %s106
      %p115 = scmp.eq.s32.totalorder %s86, 3
      %p116 = por %p114, %p115
      %p117 = scmp.ne.s32.totalorder %s106, %s107
      %p118 = scmp.eq.s32.totalorder %s86, 0
      %p119 = por %p117, %p118
      %p120 = scmp.ne.s32.totalorder %s106, %s107
      %p121 = scmp.eq.s32.totalorder %s87, 3
      %p122 = por %p120, %p121
      %p124 = scmp.ne.s32.totalorder %s107, %s123
      %p125 = scmp.eq.s32.totalorder %s87, 0
      %p126 = por %p124, %p125
      %s127 = ssub.s32 %s88, %s100
      %p128 = scmp.eq.s32.totalorder %s127, 0
      %s130 = sadd.s32 %s129, 1
      %s131 = scalar_select %p128, %s129, %s130
      %p134 = pneg %p128
      %p135 = scmp.eq.s32.totalorder %s81, 3
      %p136 = por %p134, %p135
      %p137 = scmp.ne.s32.totalorder %s129, %s132
      %p138 = scmp.eq.s32.totalorder %s81, 0
      %p139 = por %p137, %p138
      %p140 = scmp.ne.s32.totalorder %s129, %s132
      %p141 = scmp.eq.s32.totalorder %s86, 3
      %p142 = por %p140, %p141
      %p143 = scmp.ne.s32.totalorder %s132, %s133
      %p144 = scmp.eq.s32.totalorder %s86, 0
      %p145 = por %p143, %p144
      %p146 = scmp.ne.s32.totalorder %s132, %s133
      %p147 = scmp.eq.s32.totalorder %s87, 3
      %p148 = por %p146, %p147
      %p150 = scmp.ne.s32.totalorder %s133, %s149
      %p151 = scmp.eq.s32.totalorder %s87, 0
      %p152 = por %p150, %p151
      %s153 = ssub.s32 %s89, %s96
      %p154 = scmp.eq.s32.totalorder %s153, 0
      %s156 = sadd.s32 %s155, 1
      %s157 = scalar_select %p154, %s155, %s156
      %p160 = pneg %p154
      %p161 = scmp.eq.s32.totalorder %s81, 3
      %p162 = por %p160, %p161
      %p163 = scmp.ne.s32.totalorder %s155, %s158
      %p164 = scmp.eq.s32.totalorder %s81, 0
      %p165 = por %p163, %p164
      %p166 = scmp.ne.s32.totalorder %s155, %s158
      %p167 = scmp.eq.s32.totalorder %s86, 3
      %p168 = por %p166, %p167
      %p169 = scmp.ne.s32.totalorder %s158, %s159
      %p170 = scmp.eq.s32.totalorder %s86, 0
      %p171 = por %p169, %p170
      %p172 = scmp.ne.s32.totalorder %s158, %s159
      %p173 = scmp.eq.s32.totalorder %s87, 3
      %p174 = por %p172, %p173
      %p176 = scmp.ne.s32.totalorder %s159, %s175
      %p177 = scmp.eq.s32.totalorder %s87, 0
      %p178 = por %p176, %p177
      %s179 = ssub.s32 %s88, %s100
      %p180 = scmp.eq.s32.totalorder %s179, 0
      %s182 = sadd.s32 %s181, 1
      %s183 = scalar_select %p180, %s181, %s182
      %p186 = pneg %p180
      %p187 = scmp.eq.s32.totalorder %s81, 3
      %p188 = por %p186, %p187
      %p189 = scmp.ne.s32.totalorder %s181, %s184
      %p190 = scmp.eq.s32.totalorder %s81, 0
      %p191 = por %p189, %p190
      %p192 = scmp.ne.s32.totalorder %s181, %s184
      %p193 = scmp.eq.s32.totalorder %s86, 3
      %p194 = por %p192, %p193
      %p195 = scmp.ne.s32.totalorder %s184, %s185
      %p196 = scmp.eq.s32.totalorder %s86, 0
      %p197 = por %p195, %p196
      %p198 = scmp.ne.s32.totalorder %s184, %s185
      %p199 = scmp.eq.s32.totalorder %s87, 3
      %p200 = por %p198, %p199
      %p202 = scmp.ne.s32.totalorder %s185, %s201
      %p203 = scmp.eq.s32.totalorder %s87, 0
      %p204 = por %p202, %p203
      %s206 = sadd.s32 %s205, 1
      %p209 = scmp.eq.s32.totalorder %s81, 3
      %p210 = scmp.ne.s32.totalorder %s205, %s207
      %p211 = scmp.eq.s32.totalorder %s81, 0
      %p212 = por %p210, %p211
      %p213 = scmp.ne.s32.totalorder %s205, %s207
      %p214 = scmp.eq.s32.totalorder %s86, 3
      %p215 = por %p213, %p214
      %p216 = scmp.ne.s32.totalorder %s207, %s208
      %p217 = scmp.eq.s32.totalorder %s86, 0
      %p218 = por %p216, %p217
      %p219 = scmp.ne.s32.totalorder %s207, %s208
      %p220 = scmp.eq.s32.totalorder %s87, 3
      %p221 = por %p219, %p220
      %p223 = scmp.ne.s32.totalorder %s208, %s222
      %p224 = scmp.eq.s32.totalorder %s87, 0
      %p225 = por %p223, %p224
      %s227 = sadd.s32 %s226, 1
      %p230 = scmp.eq.s32.totalorder %s81, 3
      %p231 = scmp.ne.s32.totalorder %s226, %s228
      %p232 = scmp.eq.s32.totalorder %s81, 0
      %p233 = por %p231, %p232
      %p234 = scmp.ne.s32.totalorder %s226, %s228
      %p235 = scmp.eq.s32.totalorder %s86, 3
      %p236 = por %p234, %p235
      %p237 = scmp.ne.s32.totalorder %s228, %s229
      %p238 = scmp.eq.s32.totalorder %s86, 0
      %p239 = por %p237, %p238
      %p240 = scmp.ne.s32.totalorder %s228, %s229
      %p241 = scmp.eq.s32.totalorder %s87, 3
      %p242 = por %p240, %p241
      %p244 = scmp.ne.s32.totalorder %s229, %s243
      %p245 = scmp.eq.s32.totalorder %s87, 0
      %p246 = por %p244, %p245
      %s248 = sadd.s32 %s247, 1
      %p251 = scmp.eq.s32.totalorder %s81, 3
      %p252 = scmp.ne.s32.totalorder %s247, %s249
      %p253 = scmp.eq.s32.totalorder %s81, 0
      %p254 = por %p252, %p253
      %p255 = scmp.ne.s32.totalorder %s247, %s249
      %p256 = scmp.eq.s32.totalorder %s86, 3
      %p257 = por %p255, %p256
      %p258 = scmp.ne.s32.totalorder %s249, %s250
      %p259 = scmp.eq.s32.totalorder %s86, 0
      %p260 = por %p258, %p259
      %p261 = scmp.ne.s32.totalorder %s249, %s250
      %p262 = scmp.eq.s32.totalorder %s87, 3
      %p263 = por %p261, %p262
      %p265 = scmp.ne.s32.totalorder %s250, %s264
      %p266 = scmp.eq.s32.totalorder %s87, 0
      %p267 = por %p265, %p266
      %s269 = sadd.s32 %s268, 1
      %p272 = scmp.eq.s32.totalorder %s81, 3
      %p273 = scmp.ne.s32.totalorder %s268, %s270
      %p274 = scmp.eq.s32.totalorder %s81, 0
      %p275 = por %p273, %p274
      %p276 = scmp.ne.s32.totalorder %s268, %s270
      %p277 = scmp.eq.s32.totalorder %s86, 3
      %p278 = por %p276, %p277
      %p279 = scmp.ne.s32.totalorder %s270, %s271
      %p280 = scmp.eq.s32.totalorder %s86, 0
      %p281 = por %p279, %p280
      %p282 = scmp.ne.s32.totalorder %s270, %s271
      %p283 = scmp.eq.s32.totalorder %s87, 3
      %p284 = por %p282, %p283
      %p286 = scmp.ne.s32.totalorder %s271, %s285
      %p287 = scmp.eq.s32.totalorder %s87, 0
      %p288 = por %p286, %p287
      %s290 = sadd.s32 %s289, 1
      %p293 = scmp.eq.s32.totalorder %s81, 3
      %p294 = scmp.ne.s32.totalorder %s289, %s291
      %p295 = scmp.eq.s32.totalorder %s81, 0
      %p296 = por %p294, %p295
      %p297 = scmp.ne.s32.totalorder %s289, %s291
      %p298 = scmp.eq.s32.totalorder %s86, 3
      %p299 = por %p297, %p298
      %p300 = scmp.ne.s32.totalorder %s291, %s292
      %p301 = scmp.eq.s32.totalorder %s86, 0
      %p302 = por %p300, %p301
      %p303 = scmp.ne.s32.totalorder %s291, %s292
      %p304 = scmp.eq.s32.totalorder %s87, 3
      %p305 = por %p303, %p304
      %p307 = scmp.ne.s32.totalorder %s292, %s306
      %p308 = scmp.eq.s32.totalorder %s87, 0
      %p309 = por %p307, %p308
      %s311 = sadd.s32 %s310, 1
      %p314 = scmp.eq.s32.totalorder %s81, 3
      %p315 = scmp.ne.s32.totalorder %s310, %s312
      %p316 = scmp.eq.s32.totalorder %s81, 0
      %p317 = por %p315, %p316
      %p318 = scmp.ne.s32.totalorder %s310, %s312
      %p319 = scmp.eq.s32.totalorder %s86, 3
      %p320 = por %p318, %p319
      %p321 = scmp.ne.s32.totalorder %s312, %s313
      %p322 = scmp.eq.s32.totalorder %s86, 0
      %p323 = por %p321, %p322
      %p324 = scmp.ne.s32.totalorder %s312, %s313
      %p325 = scmp.eq.s32.totalorder %s87, 3
      %p326 = por %p324, %p325
      %p328 = scmp.ne.s32.totalorder %s313, %s327
      %p329 = scmp.eq.s32.totalorder %s87, 0
      %p330 = por %p328, %p329
      %s332 = sadd.s32 %s331, 1
      %p335 = scmp.eq.s32.totalorder %s81, 3
      %p336 = scmp.ne.s32.totalorder %s331, %s333
      %p337 = scmp.eq.s32.totalorder %s81, 0
      %p338 = por %p336, %p337
      %p339 = scmp.ne.s32.totalorder %s331, %s333
      %p340 = scmp.eq.s32.totalorder %s86, 3
      %p341 = por %p339, %p340
      %p342 = scmp.ne.s32.totalorder %s333, %s334
      %p343 = scmp.eq.s32.totalorder %s86, 0
      %p344 = por %p342, %p343
      %p345 = scmp.ne.s32.totalorder %s333, %s334
      %p346 = scmp.eq.s32.totalorder %s87, 3
      %p347 = por %p345, %p346
      %p349 = scmp.ne.s32.totalorder %s334, %s348
      %p350 = scmp.eq.s32.totalorder %s87, 0
      %p351 = por %p349, %p350
      %s353 = sadd.s32 %s352, 1
      %p356 = scmp.eq.s32.totalorder %s81, 3
      %p357 = scmp.ne.s32.totalorder %s352, %s354
      %p358 = scmp.eq.s32.totalorder %s81, 0
      %p359 = por %p357, %p358
      %p360 = scmp.ne.s32.totalorder %s352, %s354
      %p361 = scmp.eq.s32.totalorder %s86, 3
      %p362 = por %p360, %p361
      %p363 = scmp.ne.s32.totalorder %s354, %s355
      %p364 = scmp.eq.s32.totalorder %s86, 0
      %p365 = por %p363, %p364
      %p366 = scmp.ne.s32.totalorder %s354, %s355
      %p367 = scmp.eq.s32.totalorder %s87, 3
      %p368 = por %p366, %p367
      %p370 = scmp.ne.s32.totalorder %s355, %s369
      %p371 = scmp.eq.s32.totalorder %s87, 0
      %p372 = por %p370, %p371
      %s374 = sadd.s32 %s373, 1
      %p377 = scmp.eq.s32.totalorder %s81, 3
      %p378 = scmp.ne.s32.totalorder %s373, %s375
      %p379 = scmp.eq.s32.totalorder %s81, 0
      %p380 = por %p378, %p379
      %p381 = scmp.ne.s32.totalorder %s373, %s375
      %p382 = scmp.eq.s32.totalorder %s86, 3
      %p383 = por %p381, %p382
      %p384 = scmp.ne.s32.totalorder %s375, %s376
      %p385 = scmp.eq.s32.totalorder %s86, 0
      %p386 = por %p384, %p385
      %p387 = scmp.ne.s32.totalorder %s375, %s376
      %p388 = scmp.eq.s32.totalorder %s87, 3
      %p389 = por %p387, %p388
      %p391 = scmp.ne.s32.totalorder %s376, %s390
      %p392 = scmp.eq.s32.totalorder %s87, 0
      %p393 = por %p391, %p392
      %s395 = sadd.s32 %s394, 1
      %p398 = scmp.eq.s32.totalorder %s81, 3
      %p399 = scmp.ne.s32.totalorder %s394, %s396
      %p400 = scmp.eq.s32.totalorder %s81, 0
      %p401 = por %p399, %p400
      %p402 = scmp.ne.s32.totalorder %s394, %s396
      %p403 = scmp.eq.s32.totalorder %s86, 3
      %p404 = por %p402, %p403
      %p405 = scmp.ne.s32.totalorder %s396, %s397
      %p406 = scmp.eq.s32.totalorder %s86, 0
      %p407 = por %p405, %p406
      %p408 = scmp.ne.s32.totalorder %s396, %s397
      %p409 = scmp.eq.s32.totalorder %s87, 3
      %p410 = por %p408, %p409
      %p412 = scmp.ne.s32.totalorder %s397, %s411
      %p413 = scmp.eq.s32.totalorder %s87, 0
      %p414 = por %p412, %p413
      %s416 = sadd.s32 %s415, 1
      %p419 = scmp.eq.s32.totalorder %s81, 3
      %p420 = scmp.ne.s32.totalorder %s415, %s417
      %p421 = scmp.eq.s32.totalorder %s81, 0
      %p422 = por %p420, %p421
      %p423 = scmp.ne.s32.totalorder %s415, %s417
      %p424 = scmp.eq.s32.totalorder %s86, 3
      %p425 = por %p423, %p424
      %p426 = scmp.ne.s32.totalorder %s417, %s418
      %p427 = scmp.eq.s32.totalorder %s86, 0
      %p428 = por %p426, %p427
      %p429 = scmp.ne.s32.totalorder %s417, %s418
      %p430 = scmp.eq.s32.totalorder %s87, 3
      %p431 = por %p429, %p430
      %p433 = scmp.ne.s32.totalorder %s418, %s432
      %p434 = scmp.eq.s32.totalorder %s87, 0
      %p435 = por %p433, %p434
      %s437 = sadd.s32 %s436, 1
      %p440 = scmp.eq.s32.totalorder %s81, 3
      %p441 = scmp.ne.s32.totalorder %s436, %s438
      %p442 = scmp.eq.s32.totalorder %s81, 0
      %p443 = por %p441, %p442
      %p444 = scmp.ne.s32.totalorder %s436, %s438
      %p445 = scmp.eq.s32.totalorder %s86, 3
      %p446 = por %p444, %p445
      %p447 = scmp.ne.s32.totalorder %s438, %s439
      %p448 = scmp.eq.s32.totalorder %s86, 0
      %p449 = por %p447, %p448
      %p450 = scmp.ne.s32.totalorder %s438, %s439
      %p451 = scmp.eq.s32.totalorder %s87, 3
      %p452 = por %p450, %p451
      %p454 = scmp.ne.s32.totalorder %s439, %s453
      %p455 = scmp.eq.s32.totalorder %s87, 0
      %p456 = por %p454, %p455
      %s458 = sadd.s32 %s457, 1
      %p461 = scmp.eq.s32.totalorder %s81, 3
      %p462 = scmp.ne.s32.totalorder %s457, %s459
      %p463 = scmp.eq.s32.totalorder %s81, 0
      %p464 = por %p462, %p463
      %p465 = scmp.ne.s32.totalorder %s457, %s459
      %p466 = scmp.eq.s32.totalorder %s86, 3
      %p467 = por %p465, %p466
      %p468 = scmp.ne.s32.totalorder %s459, %s460
      %p469 = scmp.eq.s32.totalorder %s86, 0
      %p470 = por %p468, %p469
      %p471 = scmp.ne.s32.totalorder %s459, %s460
      %p472 = scmp.eq.s32.totalorder %s87, 3
      %p473 = por %p471, %p472
      %p475 = scmp.ne.s32.totalorder %s460, %s474
      %p476 = scmp.eq.s32.totalorder %s87, 0
      %p477 = por %p475, %p476
      %s479 = sadd.s32 %s478, 1
      %p482 = scmp.eq.s32.totalorder %s81, 3
      %p483 = scmp.ne.s32.totalorder %s478, %s480
      %p484 = scmp.eq.s32.totalorder %s81, 0
      %p485 = por %p483, %p484
      %p486 = scmp.ne.s32.totalorder %s478, %s480
      %p487 = scmp.eq.s32.totalorder %s86, 3
      %p488 = por %p486, %p487
      %p489 = scmp.ne.s32.totalorder %s480, %s481
      %p490 = scmp.eq.s32.totalorder %s86, 0
      %p491 = por %p489, %p490
      %p492 = scmp.ne.s32.totalorder %s480, %s481
      %p493 = scmp.eq.s32.totalorder %s87, 3
      %p494 = por %p492, %p493
      %p496 = scmp.ne.s32.totalorder %s481, %s495
      %p497 = scmp.eq.s32.totalorder %s87, 0
      %p498 = por %p496, %p497
      %s500 = sadd.s32 %s499, 1
      %p503 = scmp.eq.s32.totalorder %s81, 3
      %p504 = scmp.ne.s32.totalorder %s499, %s501
      %p505 = scmp.eq.s32.totalorder %s81, 0
      %p506 = por %p504, %p505
      %p507 = scmp.ne.s32.totalorder %s499, %s501
      %p508 = scmp.eq.s32.totalorder %s86, 3
      %p509 = por %p507, %p508
      %p510 = scmp.ne.s32.totalorder %s501, %s502
      %p511 = scmp.eq.s32.totalorder %s86, 0
      %p512 = por %p510, %p511
      %p513 = scmp.ne.s32.totalorder %s501, %s502
      %p514 = scmp.eq.s32.totalorder %s87, 3
      %p515 = por %p513, %p514
      %p517 = scmp.ne.s32.totalorder %s502, %s516
      %p518 = scmp.eq.s32.totalorder %s87, 0
      %p519 = por %p517, %p518
      %s521 = sadd.s32 %s520, 1
      %p524 = scmp.eq.s32.totalorder %s81, 3
      %p525 = scmp.ne.s32.totalorder %s520, %s522
      %p526 = scmp.eq.s32.totalorder %s81, 0
      %p527 = por %p525, %p526
      %p528 = scmp.ne.s32.totalorder %s520, %s522
      %p529 = scmp.eq.s32.totalorder %s86, 3
      %p530 = por %p528, %p529
      %p531 = scmp.ne.s32.totalorder %s522, %s523
      %p532 = scmp.eq.s32.totalorder %s86, 0
      %p533 = por %p531, %p532
      %p534 = scmp.ne.s32.totalorder %s522, %s523
      %p535 = scmp.eq.s32.totalorder %s87, 3
      %p536 = por %p534, %p535
      %p538 = scmp.ne.s32.totalorder %s523, %s537
      %p539 = scmp.eq.s32.totalorder %s87, 0
      %p540 = por %p538, %p539
      %s542 = sadd.s32 %s541, 1
      %p545 = scmp.eq.s32.totalorder %s81, 3
      %p546 = scmp.ne.s32.totalorder %s541, %s543
      %p547 = scmp.eq.s32.totalorder %s81, 0
      %p548 = por %p546, %p547
      %p549 = scmp.ne.s32.totalorder %s541, %s543
      %p550 = scmp.eq.s32.totalorder %s86, 3
      %p551 = por %p549, %p550
      %p552 = scmp.ne.s32.totalorder %s543, %s544
      %p553 = scmp.eq.s32.totalorder %s86, 0
      %p554 = por %p552, %p553
      %p555 = scmp.ne.s32.totalorder %s543, %s544
      %p556 = scmp.eq.s32.totalorder %s87, 3
      %p557 = por %p555, %p556
      %p559 = scmp.ne.s32.totalorder %s544, %s558
      %p560 = scmp.eq.s32.totalorder %s87, 0
      %p561 = por %p559, %p560
      %s563 = sadd.s32 %s562, 1
      %p566 = scmp.eq.s32.totalorder %s81, 3
      %p567 = scmp.ne.s32.totalorder %s562, %s564
      %p568 = scmp.eq.s32.totalorder %s81, 0
      %p569 = por %p567, %p568
      %p570 = scmp.ne.s32.totalorder %s562, %s564
      %p571 = scmp.eq.s32.totalorder %s86, 3
      %p572 = por %p570, %p571
      %p573 = scmp.ne.s32.totalorder %s564, %s565
      %p574 = scmp.eq.s32.totalorder %s86, 0
      %p575 = por %p573, %p574
      %p576 = scmp.ne.s32.totalorder %s564, %s565
      %p577 = scmp.eq.s32.totalorder %s87, 3
      %p578 = por %p576, %p577
      %p580 = scmp.ne.s32.totalorder %s565, %s579
      %p581 = scmp.eq.s32.totalorder %s87, 0
      %p582 = por %p580, %p581
      %s584 = sadd.s32 %s583, 1
      %p587 = scmp.eq.s32.totalorder %s81, 3
      %p588 = scmp.ne.s32.totalorder %s583, %s585
      %p589 = scmp.eq.s32.totalorder %s81, 0
      %p590 = por %p588, %p589
      %p591 = scmp.ne.s32.totalorder %s583, %s585
      %p592 = scmp.eq.s32.totalorder %s86, 3
      %p593 = por %p591, %p592
      %p594 = scmp.ne.s32.totalorder %s585, %s586
      %p595 = scmp.eq.s32.totalorder %s86, 0
      %p596 = por %p594, %p595
      %p597 = scmp.ne.s32.totalorder %s585, %s586
      %p598 = scmp.eq.s32.totalorder %s87, 3
      %p599 = por %p597, %p598
      %p601 = scmp.ne.s32.totalorder %s586, %s600
      %p602 = scmp.eq.s32.totalorder %s87, 0
      %p603 = por %p601, %p602
      %s605 = sadd.s32 %s604, 1
      %p608 = scmp.eq.s32.totalorder %s81, 3
      %p609 = scmp.ne.s32.totalorder %s604, %s606
      %p610 = scmp.eq.s32.totalorder %s81, 0
      %p611 = por %p609, %p610
      %p612 = scmp.ne.s32.totalorder %s604, %s606
      %p613 = scmp.eq.s32.totalorder %s86, 3
      %p614 = por %p612, %p613
      %p615 = scmp.ne.s32.totalorder %s606, %s607
      %p616 = scmp.eq.s32.totalorder %s86, 0
      %p617 = por %p615, %p616
      %p618 = scmp.ne.s32.totalorder %s606, %s607
      %p619 = scmp.eq.s32.totalorder %s87, 3
      %p620 = por %p618, %p619
      %p622 = scmp.ne.s32.totalorder %s607, %s621
      %p623 = scmp.eq.s32.totalorder %s87, 0
      %p624 = por %p622, %p623
      %s626 = sadd.s32 %s625, 1
      %p629 = scmp.eq.s32.totalorder %s81, 3
      %p630 = scmp.ne.s32.totalorder %s625, %s627
      %p631 = scmp.eq.s32.totalorder %s81, 0
      %p632 = por %p630, %p631
      %p633 = scmp.ne.s32.totalorder %s625, %s627
      %p634 = scmp.eq.s32.totalorder %s86, 3
      %p635 = por %p633, %p634
      %p636 = scmp.ne.s32.totalorder %s627, %s628
      %p637 = scmp.eq.s32.totalorder %s86, 0
      %p638 = por %p636, %p637
      %p639 = scmp.ne.s32.totalorder %s627, %s628
      %p640 = scmp.eq.s32.totalorder %s87, 3
      %p641 = por %p639, %p640
      %p643 = scmp.ne.s32.totalorder %s628, %s642
      %p644 = scmp.eq.s32.totalorder %s87, 0
      %p645 = por %p643, %p644
      %s647 = sadd.s32 %s646, 1
      %p650 = scmp.eq.s32.totalorder %s81, 3
      %p651 = scmp.ne.s32.totalorder %s646, %s648
      %p652 = scmp.eq.s32.totalorder %s81, 0
      %p653 = por %p651, %p652
      %p654 = scmp.ne.s32.totalorder %s646, %s648
      %p655 = scmp.eq.s32.totalorder %s86, 3
      %p656 = por %p654, %p655
      %p657 = scmp.ne.s32.totalorder %s648, %s649
      %p658 = scmp.eq.s32.totalorder %s86, 0
      %p659 = por %p657, %p658
      %p660 = scmp.ne.s32.totalorder %s648, %s649
      %p661 = scmp.eq.s32.totalorder %s87, 3
      %p662 = por %p660, %p661
      %p664 = scmp.ne.s32.totalorder %s649, %s663
      %p665 = scmp.eq.s32.totalorder %s87, 0
      %p666 = por %p664, %p665
      %s668 = sadd.s32 %s667, 1
      %p671 = scmp.eq.s32.totalorder %s81, 3
      %p672 = scmp.ne.s32.totalorder %s667, %s669
      %p673 = scmp.eq.s32.totalorder %s81, 0
      %p674 = por %p672, %p673
      %p675 = scmp.ne.s32.totalorder %s667, %s669
      %p676 = scmp.eq.s32.totalorder %s86, 3
      %p677 = por %p675, %p676
      %p678 = scmp.ne.s32.totalorder %s669, %s670
      %p679 = scmp.eq.s32.totalorder %s86, 0
      %p680 = por %p678, %p679
      %p681 = scmp.ne.s32.totalorder %s669, %s670
      %p682 = scmp.eq.s32.totalorder %s87, 3
      %p683 = por %p681, %p682
      %p685 = scmp.ne.s32.totalorder %s670, %s684
      %p686 = scmp.eq.s32.totalorder %s87, 0
      %p687 = por %p685, %p686
      %s689 = sadd.s32 %s688, 1
      %p692 = scmp.eq.s32.totalorder %s81, 3
      %p693 = scmp.ne.s32.totalorder %s688, %s690
      %p694 = scmp.eq.s32.totalorder %s81, 0
      %p695 = por %p693, %p694
      %p696 = scmp.ne.s32.totalorder %s688, %s690
      %p697 = scmp.eq.s32.totalorder %s86, 3
      %p698 = por %p696, %p697
      %p699 = scmp.ne.s32.totalorder %s690, %s691
      %p700 = scmp.eq.s32.totalorder %s86, 0
      %p701 = por %p699, %p700
      %p702 = scmp.ne.s32.totalorder %s690, %s691
      %p703 = scmp.eq.s32.totalorder %s87, 3
      %p704 = por %p702, %p703
      %p706 = scmp.ne.s32.totalorder %s691, %s705
      %p707 = scmp.eq.s32.totalorder %s87, 0
      %p708 = por %p706, %p707
      %s710 = sadd.s32 %s709, 1
      %p713 = scmp.eq.s32.totalorder %s81, 3
      %p714 = scmp.ne.s32.totalorder %s709, %s711
      %p715 = scmp.eq.s32.totalorder %s81, 0
      %p716 = por %p714, %p715
      %p717 = scmp.ne.s32.totalorder %s709, %s711
      %p718 = scmp.eq.s32.totalorder %s86, 3
      %p719 = por %p717, %p718
      %p720 = scmp.ne.s32.totalorder %s711, %s712
      %p721 = scmp.eq.s32.totalorder %s86, 0
      %p722 = por %p720, %p721
      %p723 = scmp.ne.s32.totalorder %s711, %s712
      %p724 = scmp.eq.s32.totalorder %s87, 3
      %p725 = por %p723, %p724
      %p727 = scmp.ne.s32.totalorder %s712, %s726
      %p728 = scmp.eq.s32.totalorder %s87, 0
      %p729 = por %p727, %p728
      %s731 = sadd.s32 %s730, 1
      %p734 = scmp.eq.s32.totalorder %s81, 3
      %p735 = scmp.ne.s32.totalorder %s730, %s732
      %p736 = scmp.eq.s32.totalorder %s81, 0
      %p737 = por %p735, %p736
      %p738 = scmp.ne.s32.totalorder %s730, %s732
      %p739 = scmp.eq.s32.totalorder %s86, 3
      %p740 = por %p738, %p739
      %p741 = scmp.ne.s32.totalorder %s732, %s733
      %p742 = scmp.eq.s32.totalorder %s86, 0
      %p743 = por %p741, %p742
      %p744 = scmp.ne.s32.totalorder %s732, %s733
      %p745 = scmp.eq.s32.totalorder %s87, 3
      %p746 = por %p744, %p745
      %p748 = scmp.ne.s32.totalorder %s733, %s747
      %p749 = scmp.eq.s32.totalorder %s87, 0
      %p750 = por %p748, %p749
      %s751 = ssub.s32 %s88, %s100
      %s752 = ssub.s32 %s89, %s96
      %s753 = sor.u32 %s751, %s752
      %p754 = scmp.eq.s32.totalorder %s753, 0
      %s756 = sadd.s32 %s755, 1
      %s757 = scalar_select %p754, %s755, %s756
      %p760 = pneg %p754
      %p761 = scmp.eq.s32.totalorder %s81, 3
      %p762 = por %p760, %p761
      %p763 = scmp.ne.s32.totalorder %s755, %s758
      %p764 = scmp.eq.s32.totalorder %s81, 0
      %p765 = por %p763, %p764
      %p766 = scmp.ne.s32.totalorder %s755, %s758
      %p767 = scmp.eq.s32.totalorder %s86, 3
      %p768 = por %p766, %p767
      %p769 = scmp.ne.s32.totalorder %s758, %s759
      %p770 = scmp.eq.s32.totalorder %s86, 0
      %p771 = por %p769, %p770
      %p772 = scmp.ne.s32.totalorder %s758, %s759
      %p773 = scmp.eq.s32.totalorder %s87, 3
      %p774 = por %p772, %p773
      %p776 = scmp.ne.s32.totalorder %s759, %s775
      %p777 = scmp.eq.s32.totalorder %s87, 0
      %p778 = por %p776, %p777
      %p779 = scmp.le.s32.totalorder 1, %s81
      %p780 = scmp.lt.s32.totalorder %s81, 5
      %p781 = pnand %p779, %p780
      %p782 = pneg %p781
      // Predicated region
      $region9: #{tpu_custom_call.1} parent=5 // pred_check
        _
      $region10: #{tpu_custom_call.1} parent=5 // pred_check_branch
        %784 = sbr.rel (%p781) target = $region12
      $region11: #{tpu_custom_call.1} parent=5 // pred_region
        %s785 = ssub.s32 %s81, 1
        // Predicated region
        $region13: #{tpu_custom_call.1} parent=11 // pred_check
          %p786 = pneg %p218
        $region14: #{tpu_custom_call.1} parent=11 // pred_check_branch
          %788 = sbr.rel (%p786) target = $region16
        $region15: #{tpu_custom_call.1} parent=11 // pred_region
          _
        $region16: #{tpu_custom_call.1} parent=11 // pred_fallthru
          _
        // Predicated region
        $region17: #{tpu_custom_call.1} parent=11 // pred_check
          %p789 = pneg %p239
        $region18: #{tpu_custom_call.1} parent=11 // pred_check_branch
          %791 = sbr.rel (%p789) target = $region20
        $region19: #{tpu_custom_call.1} parent=11 // pred_region
          _
        $region20: #{tpu_custom_call.1} parent=11 // pred_fallthru
          _
        // Predicated region
        $region21: #{tpu_custom_call.1} parent=11 // pred_check
          %p792 = pneg %p260
        $region22: #{tpu_custom_call.1} parent=11 // pred_check_branch
          %794 = sbr.rel (%p792) target = $region24
        $region23: #{tpu_custom_call.1} parent=11 // pred_region
          %s796 = ssub.s32 8192, 8192
          %797 = vsyncadd [#allocation10], %s796
          %s798 = sshll.u32 [#allocation9], 4
          %s799 = int_to_ptr.vmem [resolvable:$true] %s798
          %804 = dma.hbm_to_vmem [thread:$0]  %s13, 8192, %s799, [#allocation10], 256, 256, 16
        $region24: #{tpu_custom_call.1} parent=11 // pred_fallthru
          _
        // Predicated region
        $region25: #{tpu_custom_call.1} parent=11 // pred_check
          %p805 = pneg %p281
        $region26: #{tpu_custom_call.1} parent=11 // pred_check_branch
          %807 = sbr.rel (%p805) target = $region28
        $region27: #{tpu_custom_call.1} parent=11 // pred_region
          _
        $region28: #{tpu_custom_call.1} parent=11 // pred_fallthru
          _
        // Predicated region
        $region29: #{tpu_custom_call.1} parent=11 // pred_check
          %p808 = pneg %p302
        $region30: #{tpu_custom_call.1} parent=11 // pred_check_branch
          %810 = sbr.rel (%p808) target = $region32
        $region31: #{tpu_custom_call.1} parent=11 // pred_region
          %s812 = ssub.s32 8192, 8192
          %813 = vsyncadd [#allocation10], %s812
          %s814 = sshll.u32 [#allocation11], 4
          %s815 = int_to_ptr.vmem [resolvable:$true] %s814
          %820 = dma.hbm_to_vmem [thread:$0]  %s17, 8192, %s815, [#allocation10], 256, 256, 16
        $region32: #{tpu_custom_call.1} parent=11 // pred_fallthru
          _
        // Predicated region
        $region33: #{tpu_custom_call.1} parent=11 // pred_check
          %p821 = pneg %p323
        $region34: #{tpu_custom_call.1} parent=11 // pred_check_branch
          %823 = sbr.rel (%p821) target = $region36
        $region35: #{tpu_custom_call.1} parent=11 // pred_region
          _
        $region36: #{tpu_custom_call.1} parent=11 // pred_fallthru
          _
        // Predicated region
        $region37: #{tpu_custom_call.1} parent=11 // pred_check
          %p824 = pneg %p344
        $region38: #{tpu_custom_call.1} parent=11 // pred_check_branch
          %826 = sbr.rel (%p824) target = $region40
        $region39: #{tpu_custom_call.1} parent=11 // pred_region
          %s828 = ssub.s32 8192, 8192
          %829 = vsyncadd [#allocation13], %s828
          %s830 = sshll.u32 [#allocation12], 4
          %s831 = int_to_ptr.vmem [resolvable:$true] %s830
          %836 = dma.hbm_to_vmem [thread:$0]  %s21, 8192, %s831, [#allocation13], 256, 256, 16
        $region40: #{tpu_custom_call.1} parent=11 // pred_fallthru
          _
        // Predicated region
        $region41: #{tpu_custom_call.1} parent=11 // pred_check
          %p837 = pneg %p365
        $region42: #{tpu_custom_call.1} parent=11 // pred_check_branch
          %839 = sbr.rel (%p837) target = $region44
        $region43: #{tpu_custom_call.1} parent=11 // pred_region
          _
        $region44: #{tpu_custom_call.1} parent=11 // pred_fallthru
          _
        // Predicated region
        $region45: #{tpu_custom_call.1} parent=11 // pred_check
          %p840 = pneg %p386
        $region46: #{tpu_custom_call.1} parent=11 // pred_check_branch
          %842 = sbr.rel (%p840) target = $region48
        $region47: #{tpu_custom_call.1} parent=11 // pred_region
          %s844 = ssub.s32 8192, 8192
          %845 = vsyncadd [#allocation13], %s844
          %s846 = sshll.u32 [#allocation14], 4
          %s847 = int_to_ptr.vmem [resolvable:$true] %s846
          %852 = dma.hbm_to_vmem [thread:$0]  %s25, 8192, %s847, [#allocation13], 256, 256, 16
        $region48: #{tpu_custom_call.1} parent=11 // pred_fallthru
          _
        // Predicated region
        $region49: #{tpu_custom_call.1} parent=11 // pred_check
          %p853 = pneg %p407
        $region50: #{tpu_custom_call.1} parent=11 // pred_check_branch
          %855 = sbr.rel (%p853) target = $region52
        $region51: #{tpu_custom_call.1} parent=11 // pred_region
          _
        $region52: #{tpu_custom_call.1} parent=11 // pred_fallthru
          _
        // Predicated region
        $region53: #{tpu_custom_call.1} parent=11 // pred_check
          %p856 = pneg %p428
        $region54: #{tpu_custom_call.1} parent=11 // pred_check_branch
          %858 = sbr.rel (%p856) target = $region56
        $region55: #{tpu_custom_call.1} parent=11 // pred_region
          _
        $region56: #{tpu_custom_call.1} parent=11 // pred_fallthru
          _
        // Predicated region
        $region57: #{tpu_custom_call.1} parent=11 // pred_check
          %p859 = pneg %p449
        $region58: #{tpu_custom_call.1} parent=11 // pred_check_branch
          %861 = sbr.rel (%p859) target = $region60
        $region59: #{tpu_custom_call.1} parent=11 // pred_region
          _
        $region60: #{tpu_custom_call.1} parent=11 // pred_fallthru
          _
        // Predicated region
        $region61: #{tpu_custom_call.1} parent=11 // pred_check
          %p862 = pneg %p470
        $region62: #{tpu_custom_call.1} parent=11 // pred_check_branch
          %864 = sbr.rel (%p862) target = $region64
        $region63: #{tpu_custom_call.1} parent=11 // pred_region
          %s866 = ssub.s32 8192, 8192
          %867 = vsyncadd [#allocation16], %s866
          %s868 = sshll.u32 [#allocation15], 4
          %s869 = int_to_ptr.vmem [resolvable:$true] %s868
          %874 = dma.hbm_to_vmem [thread:$0]  %s33, 8192, %s869, [#allocation16], 256, 256, 16
        $region64: #{tpu_custom_call.1} parent=11 // pred_fallthru
          _
        // Predicated region
        $region65: #{tpu_custom_call.1} parent=11 // pred_check
          %p875 = pneg %p491
        $region66: #{tpu_custom_call.1} parent=11 // pred_check_branch
          %877 = sbr.rel (%p875) target = $region68
        $region67: #{tpu_custom_call.1} parent=11 // pred_region
          _
        $region68: #{tpu_custom_call.1} parent=11 // pred_fallthru
          _
        // Predicated region
        $region69: #{tpu_custom_call.1} parent=11 // pred_check
          %p878 = pneg %p512
        $region70: #{tpu_custom_call.1} parent=11 // pred_check_branch
          %880 = sbr.rel (%p878) target = $region72
        $region71: #{tpu_custom_call.1} parent=11 // pred_region
          %s882 = ssub.s32 8192, 8192
          %883 = vsyncadd [#allocation16], %s882
          %s884 = sshll.u32 [#allocation17], 4
          %s885 = int_to_ptr.vmem [resolvable:$true] %s884
          %890 = dma.hbm_to_vmem [thread:$0]  %s37, 8192, %s885, [#allocation16], 256, 256, 16
        $region72: #{tpu_custom_call.1} parent=11 // pred_fallthru
          _
        // Predicated region
        $region73: #{tpu_custom_call.1} parent=11 // pred_check
          %p891 = pneg %p533
        $region74: #{tpu_custom_call.1} parent=11 // pred_check_branch
          %893 = sbr.rel (%p891) target = $region76
        $region75: #{tpu_custom_call.1} parent=11 // pred_region
          _
        $region76: #{tpu_custom_call.1} parent=11 // pred_fallthru
          _
        // Predicated region
        $region77: #{tpu_custom_call.1} parent=11 // pred_check
          %p894 = pneg %p554
        $region78: #{tpu_custom_call.1} parent=11 // pred_check_branch
          %896 = sbr.rel (%p894) target = $region80
        $region79: #{tpu_custom_call.1} parent=11 // pred_region
          %s898 = ssub.s32 8192, 8192
          %899 = vsyncadd [#allocation19], %s898
          %s900 = sshll.u32 [#allocation18], 4
          %s901 = int_to_ptr.vmem [resolvable:$true] %s900
          %906 = dma.hbm_to_vmem [thread:$0]  %s41, 8192, %s901, [#allocation19], 256, 256, 16
        $region80: #{tpu_custom_call.1} parent=11 // pred_fallthru
          _
        // Predicated region
        $region81: #{tpu_custom_call.1} parent=11 // pred_check
          %p907 = pneg %p575
        $region82: #{tpu_custom_call.1} parent=11 // pred_check_branch
          %909 = sbr.rel (%p907) target = $region84
        $region83: #{tpu_custom_call.1} parent=11 // pred_region
          _
        $region84: #{tpu_custom_call.1} parent=11 // pred_fallthru
          _
        // Predicated region
        $region85: #{tpu_custom_call.1} parent=11 // pred_check
          %p910 = pneg %p596
        $region86: #{tpu_custom_call.1} parent=11 // pred_check_branch
          %912 = sbr.rel (%p910) target = $region88
        $region87: #{tpu_custom_call.1} parent=11 // pred_region
          %s914 = ssub.s32 8192, 8192
          %915 = vsyncadd [#allocation19], %s914
          %s916 = sshll.u32 [#allocation20], 4
          %s917 = int_to_ptr.vmem [resolvable:$true] %s916
          %922 = dma.hbm_to_vmem [thread:$0]  %s45, 8192, %s917, [#allocation19], 256, 256, 16
        $region88: #{tpu_custom_call.1} parent=11 // pred_fallthru
          _
        // Predicated region
        $region89: #{tpu_custom_call.1} parent=11 // pred_check
          %p923 = pneg %p617
        $region90: #{tpu_custom_call.1} parent=11 // pred_check_branch
          %925 = sbr.rel (%p923) target = $region92
        $region91: #{tpu_custom_call.1} parent=11 // pred_region
          _
        $region92: #{tpu_custom_call.1} parent=11 // pred_fallthru
          _
        // Predicated region
        $region93: #{tpu_custom_call.1} parent=11 // pred_check
          %p926 = pneg %p638
        $region94: #{tpu_custom_call.1} parent=11 // pred_check_branch
          %928 = sbr.rel (%p926) target = $region96
        $region95: #{tpu_custom_call.1} parent=11 // pred_region
          _
        $region96: #{tpu_custom_call.1} parent=11 // pred_fallthru
          _
        // Predicated region
        $region97: #{tpu_custom_call.1} parent=11 // pred_check
          %p929 = pneg %p659
        $region98: #{tpu_custom_call.1} parent=11 // pred_check_branch
          %931 = sbr.rel (%p929) target = $region100
        $region99: #{tpu_custom_call.1} parent=11 // pred_region
          _
        $region100: #{tpu_custom_call.1} parent=11 // pred_fallthru
          _
        // Predicated region
        $region101: #{tpu_custom_call.1} parent=11 // pred_check
          %p932 = pneg %p680
        $region102: #{tpu_custom_call.1} parent=11 // pred_check_branch
          %934 = sbr.rel (%p932) target = $region104
        $region103: #{tpu_custom_call.1} parent=11 // pred_region
          %s936 = ssub.s32 16384, 16384
          %937 = vsyncadd [#allocation22], %s936
          %s938 = sshll.u32 [#allocation21], 4
          %s939 = int_to_ptr.vmem [resolvable:$true] %s938
          %944 = dma.hbm_to_vmem [thread:$0]  %s53, 16384, %s939, [#allocation22], 512, 512, 32
        $region104: #{tpu_custom_call.1} parent=11 // pred_fallthru
          _
        // Predicated region
        $region105: #{tpu_custom_call.1} parent=11 // pred_check
          %p945 = pneg %p701
        $region106: #{tpu_custom_call.1} parent=11 // pred_check_branch
          %947 = sbr.rel (%p945) target = $region108
        $region107: #{tpu_custom_call.1} parent=11 // pred_region
          _
        $region108: #{tpu_custom_call.1} parent=11 // pred_fallthru
          _
        // Predicated region
        $region109: #{tpu_custom_call.1} parent=11 // pred_check
          %p948 = pneg %p722
        $region110: #{tpu_custom_call.1} parent=11 // pred_check_branch
          %950 = sbr.rel (%p948) target = $region112
        $region111: #{tpu_custom_call.1} parent=11 // pred_region
          %s952 = ssub.s32 16384, 16384
          %953 = vsyncadd [#allocation22], %s952
          %s954 = sshll.u32 [#allocation23], 4
          %s955 = int_to_ptr.vmem [resolvable:$true] %s954
          %960 = dma.hbm_to_vmem [thread:$0]  %s57, 16384, %s955, [#allocation22], 256, 256, 16
        $region112: #{tpu_custom_call.1} parent=11 // pred_fallthru
          _
        // Predicated region
        $region113: #{tpu_custom_call.1} parent=11 // pred_check
          %p961 = pneg %p743
        $region114: #{tpu_custom_call.1} parent=11 // pred_check_branch
          %963 = sbr.rel (%p961) target = $region116
        $region115: #{tpu_custom_call.1} parent=11 // pred_region
          _
        $region116: #{tpu_custom_call.1} parent=11 // pred_fallthru
          _
      $region12: #{tpu_custom_call.1} parent=5 // pred_fallthru
        _
      %p964 = scmp.lt.s32.totalorder %s81, 4
      // Predicated region
      $region117: #{tpu_custom_call.1} parent=5 // pred_check
        %p965 = pneg %p964
      $region118: #{tpu_custom_call.1} parent=5 // pred_check_branch
        %967 = sbr.rel (%p965) target = $region120
      $region119: #{tpu_custom_call.1} parent=5 // pred_region
        // Predicated region
        $region121: #{tpu_custom_call.1} parent=119 // pred_check
          %p968 = pneg %p113
        $region122: #{tpu_custom_call.1} parent=119 // pred_check_branch
          %970 = sbr.rel (%p968) target = $region124
        $region123: #{tpu_custom_call.1} parent=119 // pred_region
          %s971 = sand.u32 %s103, 1
          %s972 = scalar_lea.sflag [#allocation4], %s971
          %s973 = sand.u32 %s103, 1
          %s974 = smul.addr %s973, 32
          %s975 = scalar_lea.vmem [#allocation3], %s974
          %s977 = ssub.s32 512, 512
          %978 = vsyncadd %s972, %s977
          %s979 = smul.addr %s88, 4
          %s980 = smul.addr %s979, 128
          %s981 = scalar_lea.hbm %s1, %s980
          %s982 = sshll.u32 %s975, 4
          %s983 = int_to_ptr.vmem [resolvable:$true] %s982
          %988 = dma.hbm_to_vmem [thread:$0]  %s981, 512, %s983, %s972, 256, 256, 16
        $region124: #{tpu_custom_call.1} parent=119 // pred_fallthru
          _
        // Predicated region
        $region125: #{tpu_custom_call.1} parent=119 // pred_check
          %p989 = pneg %p139
        $region126: #{tpu_custom_call.1} parent=119 // pred_check_branch
          %991 = sbr.rel (%p989) target = $region128
        $region127: #{tpu_custom_call.1} parent=119 // pred_region
          %s992 = sand.u32 %s81, 1
          %s993 = scalar_lea.sflag [#allocation7], %s992
          %s994 = sand.u32 %s129, 1
          %s995 = smul.addr %s994, 16
          %s996 = scalar_lea.vmem [#allocation6], %s995
          %s998 = ssub.s32 256, 256
          %999 = vsyncadd %s993, %s998
          %s1000 = smul.addr %s88, 2
          %s1001 = smul.addr %s1000, 128
          %s1002 = scalar_lea.hbm %s3, %s1001
          %s1004 = sshll.u32 %s996, 4
          %s1005 = int_to_ptr.vmem [resolvable:$true] %s1004
          %1007 = dma.hbm_to_vmem [thread:$0]  %s1002, 256, %s1005, %s993
        $region128: #{tpu_custom_call.1} parent=119 // pred_fallthru
          _
        // Predicated region
        $region129: #{tpu_custom_call.1} parent=119 // pred_check
          %p1008 = pneg %p165
        $region130: #{tpu_custom_call.1} parent=119 // pred_check_branch
          %1010 = sbr.rel (%p1008) target = $region132
        $region131: #{tpu_custom_call.1} parent=119 // pred_region
          %s1011 = sand.u32 %s81, 1
          %s1012 = scalar_lea.sflag [#allocation7], %s1011
          %s1013 = sand.u32 %s155, 1
          %s1014 = smul.addr %s1013, 8
          %s1015 = scalar_lea.vmem [#allocation8], %s1014
          %s1017 = ssub.s32 128, 128
          %1018 = vsyncadd %s1012, %s1017
          %s1019 = smul.addr %s89, 128
          %s1020 = scalar_lea.hbm %s5, %s1019
          %s1022 = sshll.u32 %s1015, 4
          %s1023 = int_to_ptr.vmem [resolvable:$true] %s1022
          %1025 = dma.hbm_to_vmem [thread:$0]  %s1020, 128, %s1023, %s1012
        $region132: #{tpu_custom_call.1} parent=119 // pred_fallthru
          _
        // Predicated region
        $region133: #{tpu_custom_call.1} parent=119 // pred_check
          %p1026 = pneg %p191
        $region134: #{tpu_custom_call.1} parent=119 // pred_check_branch
          %1028 = sbr.rel (%p1026) target = $region136
        $region135: #{tpu_custom_call.1} parent=119 // pred_region
          %p1029 = scmp.lt.s32.totalorder %s88, 1
          %s1030 = scalar_select %p1029, %s88, 1
          %s1031 = scalar_lea.vmem %s7, %s1030
        $region136: #{tpu_custom_call.1} parent=119 // pred_fallthru
          _
      $region120: #{tpu_custom_call.1} parent=5 // pred_fallthru
        _
      %p1032 = scmp.le.s32.totalorder 1, %s81
      %p1033 = scmp.lt.s32.totalorder %s81, 5
      %p1034 = pnand %p1032, %p1033
      %p1035 = pneg %p1034
      // Predicated region
      $region137: #{tpu_custom_call.1} parent=5 // pred_check
        _
      $region138: #{tpu_custom_call.1} parent=5 // pred_check_branch
        %1037 = sbr.rel (%p1034) target = $region140
      $region139: #{tpu_custom_call.1} parent=5 // pred_region
        %s1038 = ssub.s32 %s81, 1
        %s1039 = sand.u32 %s106, 1
        %s1040 = scalar_lea.sflag [#allocation4], %s1039
        %s1041 = sand.u32 %s106, 1
        %s1042 = smul.addr %s1041, 32
        %s1043 = scalar_lea.vmem [#allocation3], %s1042
        // Predicated region
        $region141: #{tpu_custom_call.1} parent=139 // pred_check
          %p1044 = pneg %p119
        $region142: #{tpu_custom_call.1} parent=139 // pred_check_branch
          %1046 = sbr.rel (%p1044) target = $region144
        $region143: #{tpu_custom_call.1} parent=139 // pred_region
          %1047 = dma.done %s1040, 512
        $region144: #{tpu_custom_call.1} parent=139 // pred_fallthru
          _
        %s1048 = sand.u32 %s86, 1
        %s1049 = scalar_lea.sflag [#allocation7], %s1048
        %s1050 = sand.u32 %s132, 1
        %s1051 = smul.addr %s1050, 16
        %s1052 = scalar_lea.vmem [#allocation6], %s1051
        // Predicated region
        $region145: #{tpu_custom_call.1} parent=139 // pred_check
          %p1053 = pneg %p145
        $region146: #{tpu_custom_call.1} parent=139 // pred_check_branch
          %1055 = sbr.rel (%p1053) target = $region148
        $region147: #{tpu_custom_call.1} parent=139 // pred_region
          %1056 = dma.done %s1049, 256
        $region148: #{tpu_custom_call.1} parent=139 // pred_fallthru
          _
        %s1057 = sand.u32 %s86, 1
        %s1058 = scalar_lea.sflag [#allocation7], %s1057
        %s1059 = sand.u32 %s158, 1
        %s1060 = smul.addr %s1059, 8
        %s1061 = scalar_lea.vmem [#allocation8], %s1060
        // Predicated region
        $region149: #{tpu_custom_call.1} parent=139 // pred_check
          %p1062 = pneg %p171
        $region150: #{tpu_custom_call.1} parent=139 // pred_check_branch
          %1064 = sbr.rel (%p1062) target = $region152
        $region151: #{tpu_custom_call.1} parent=139 // pred_region
          %1065 = dma.done %s1058, 128
        $region152: #{tpu_custom_call.1} parent=139 // pred_fallthru
          _
        // Predicated region
        $region153: #{tpu_custom_call.1} parent=139 // pred_check
          %p1066 = pneg %p260
        $region154: #{tpu_custom_call.1} parent=139 // pred_check_branch
          %1068 = sbr.rel (%p1066) target = $region156
        $region155: #{tpu_custom_call.1} parent=139 // pred_region
          %1069 = dma.done [#allocation10], 8192
        $region156: #{tpu_custom_call.1} parent=139 // pred_fallthru
          _
        // Predicated region
        $region157: #{tpu_custom_call.1} parent=139 // pred_check
          %p1070 = pneg %p302
        $region158: #{tpu_custom_call.1} parent=139 // pred_check_branch
          %1072 = sbr.rel (%p1070) target = $region160
        $region159: #{tpu_custom_call.1} parent=139 // pred_region
          %1073 = dma.done [#allocation10], 8192
        $region160: #{tpu_custom_call.1} parent=139 // pred_fallthru
          _
        // Predicated region
        $region161: #{tpu_custom_call.1} parent=139 // pred_check
          %p1074 = pneg %p344
        $region162: #{tpu_custom_call.1} parent=139 // pred_check_branch
          %1076 = sbr.rel (%p1074) target = $region164
        $region163: #{tpu_custom_call.1} parent=139 // pred_region
          %1077 = dma.done [#allocation13], 8192
        $region164: #{tpu_custom_call.1} parent=139 // pred_fallthru
          _
        // Predicated region
        $region165: #{tpu_custom_call.1} parent=139 // pred_check
          %p1078 = pneg %p386
        $region166: #{tpu_custom_call.1} parent=139 // pred_check_branch
          %1080 = sbr.rel (%p1078) target = $region168
        $region167: #{tpu_custom_call.1} parent=139 // pred_region
          %1081 = dma.done [#allocation13], 8192
        $region168: #{tpu_custom_call.1} parent=139 // pred_fallthru
          _
        // Predicated region
        $region169: #{tpu_custom_call.1} parent=139 // pred_check
          %p1082 = pneg %p470
        $region170: #{tpu_custom_call.1} parent=139 // pred_check_branch
          %1084 = sbr.rel (%p1082) target = $region172
        $region171: #{tpu_custom_call.1} parent=139 // pred_region
          %1085 = dma.done [#allocation16], 8192
        $region172: #{tpu_custom_call.1} parent=139 // pred_fallthru
          _
        // Predicated region
        $region173: #{tpu_custom_call.1} parent=139 // pred_check
          %p1086 = pneg %p512
        $region174: #{tpu_custom_call.1} parent=139 // pred_check_branch
          %1088 = sbr.rel (%p1086) target = $region176
        $region175: #{tpu_custom_call.1} parent=139 // pred_region
          %1089 = dma.done [#allocation16], 8192
        $region176: #{tpu_custom_call.1} parent=139 // pred_fallthru
          _
        // Predicated region
        $region177: #{tpu_custom_call.1} parent=139 // pred_check
          %p1090 = pneg %p554
        $region178: #{tpu_custom_call.1} parent=139 // pred_check_branch
          %1092 = sbr.rel (%p1090) target = $region180
        $region179: #{tpu_custom_call.1} parent=139 // pred_region
          %1093 = dma.done [#allocation19], 8192
        $region180: #{tpu_custom_call.1} parent=139 // pred_fallthru
          _
        // Predicated region
        $region181: #{tpu_custom_call.1} parent=139 // pred_check
          %p1094 = pneg %p596
        $region182: #{tpu_custom_call.1} parent=139 // pred_check_branch
          %1096 = sbr.rel (%p1094) target = $region184
        $region183: #{tpu_custom_call.1} parent=139 // pred_region
          %1097 = dma.done [#allocation19], 8192
        $region184: #{tpu_custom_call.1} parent=139 // pred_fallthru
          _
        // Predicated region
        $region185: #{tpu_custom_call.1} parent=139 // pred_check
          %p1098 = pneg %p680
        $region186: #{tpu_custom_call.1} parent=139 // pred_check_branch
          %1100 = sbr.rel (%p1098) target = $region188
        $region187: #{tpu_custom_call.1} parent=139 // pred_region
          %1101 = dma.done [#allocation22], 16384
        $region188: #{tpu_custom_call.1} parent=139 // pred_fallthru
          _
        // Predicated region
        $region189: #{tpu_custom_call.1} parent=139 // pred_check
          %p1102 = pneg %p722
        $region190: #{tpu_custom_call.1} parent=139 // pred_check_branch
          %1104 = sbr.rel (%p1102) target = $region192
        $region191: #{tpu_custom_call.1} parent=139 // pred_region
          %1105 = dma.done [#allocation22], 16384
        $region192: #{tpu_custom_call.1} parent=139 // pred_fallthru
          _
        %s1106 = sand.u32 %s106, 1
        %s1107 = scalar_lea.sflag [#allocation4], %s1106
        %s1108 = sand.u32 %s106, 1
        %s1109 = smul.addr %s1108, 32
        %s1110 = scalar_lea.vmem [#allocation3], %s1109
        %p1111 = pneg %p119
        %p1112 = pneg %p116
        %s1113 = sand.u32 %s86, 1
        %s1114 = scalar_lea.sflag [#allocation7], %s1113
        %s1115 = sand.u32 %s132, 1
        %s1116 = smul.addr %s1115, 16
        %s1117 = scalar_lea.vmem [#allocation6], %s1116
        %p1118 = pneg %p145
        %p1119 = pneg %p142
        %s1120 = sand.u32 %s86, 1
        %s1121 = scalar_lea.sflag [#allocation7], %s1120
        %s1122 = sand.u32 %s158, 1
        %s1123 = smul.addr %s1122, 8
        %s1124 = scalar_lea.vmem [#allocation8], %s1123
        %p1125 = pneg %p171
        %p1126 = pneg %p168
        %p1127 = scmp.lt.s32.totalorder %s90, 1
        %s1128 = scalar_select %p1127, %s90, 1
        %s1129 = scalar_lea.vmem %s7, %s1128
        %p1130 = pneg %p197
        %p1131 = pneg %p194
        %p1132 = pneg %p218
        %p1133 = pneg %p215
        %p1134 = pneg %p239
        %p1135 = pneg %p236
        %p1136 = pneg %p260
        %p1137 = pneg %p257
        %p1138 = pneg %p281
        %p1139 = pneg %p278
        %p1140 = pneg %p302
        %p1141 = pneg %p299
        %p1142 = pneg %p323
        %p1143 = pneg %p320
        %p1144 = pneg %p344
        %p1145 = pneg %p341
        %p1146 = pneg %p365
        %p1147 = pneg %p362
        %p1148 = pneg %p386
        %p1149 = pneg %p383
        %p1150 = pneg %p407
        %p1151 = pneg %p404
        %p1152 = pneg %p428
        %p1153 = pneg %p425
        %p1154 = pneg %p449
        %p1155 = pneg %p446
        %p1156 = pneg %p470
        %p1157 = pneg %p467
        %p1158 = pneg %p491
        %p1159 = pneg %p488
        %p1160 = pneg %p512
        %p1161 = pneg %p509
        %p1162 = pneg %p533
        %p1163 = pneg %p530
        %p1164 = pneg %p554
        %p1165 = pneg %p551
        %p1166 = pneg %p575
        %p1167 = pneg %p572
        %p1168 = pneg %p596
        %p1169 = pneg %p593
        %p1170 = pneg %p617
        %p1171 = pneg %p614
        %p1172 = pneg %p638
        %p1173 = pneg %p635
        %p1174 = pneg %p659
        %p1175 = pneg %p656
        %p1176 = pneg %p680
        %p1177 = pneg %p677
        %p1178 = pneg %p701
        %p1179 = pneg %p698
        %p1180 = pneg %p722
        %p1181 = pneg %p719
        %p1182 = pneg %p743
        %p1183 = pneg %p740
        %p1184 = pneg %p771
        %p1185 = pneg %p768
        %s1186 = sand.u32 %s758, 1
        %s1187 = scalar_lea.sflag [#allocation5], %s1186
        %s1188 = sand.u32 %s758, 1
        %s1189 = smul.addr %s1188, 16
        %s1190 = scalar_lea.vmem [#allocation24], %s1189
        %p1191 = scmp.lt.s32.totalorder %s90, 1
        %s1192 = scalar_select %p1191, %s90, 1
        %s1193 = scalar_lea.vmem %s7, %s1192
        %s1194 = smul.u32 %s91, 8
        %v1195 = vld [vmem:[%s1043] sm:$0xff]
        %v1196 = vld [vmem:[%s1043 + $0x8] sm:$0xff]
        %v1197 = vld [vmem:[%s1043 + $0x10] sm:$0xff]
        %v1198 = vld [vmem:[%s1043 + $0x18] sm:$0xff]
        %s1199 = sshra.s32 %s1194, 3
        %s1200 = sand.u32 %s1194, 7
        %s1201 = smul.u32 %s1199, 2
        %s1202 = smul.addr %s1201, 8
        %s1203 = scalar_lea.vmem %s1043, %s1202 [#allocation3]
        %v1204 = vld [vmem:[%s1203] sm:$0xff]
        %v1205 = vld [vmem:[%s1203 + $0x8] sm:$0xff]
        %v1206 = vld [vmem:[%s1061] sm:$0xff]
        %vm1207 = vcmp.ne.f32.partialorder %v1206, 0.0
        %v1208 = vsel %vm1207, 0.0, -1e+09
        %v1209 = vld [vmem:[%s1193] sm:$0x1]
        %vm1210 = vcmp.ne.f32.partialorder %v1209, 0.0
        %v1211 = vsel %vm1210, 0.0, -1e+09
        %v1212 = vld [vmem:[%s9] sm:$0x3]
        %v1213 = vld [vmem:[%s11] sm:$0x3]
        %v1214 = vadd.f32 %v1195, %v1196
        %1215 = vadd.xlane.f32.xlu0 %v1214
        %v1216 = vpop.xlane.xlu0 %1215
        %v1217 = vadd.f32 %v1197, %v1198
        %1218 = vadd.xlane.f32.xlu0 %v1217
        %v1219 = vpop.xlane.xlu0 %1218
        %v1220 = vrcp.pop 256.0
        %v1221 = vmul.f32 %v1216, %v1220
        %v1222 = vmul.f32 %v1219, %v1220
        %v1223 = vsub.f32 %v1195, %v1221
        %v1224 = vsub.f32 %v1196, %v1221
        %v1225 = vsub.f32 %v1197, %v1222
        %v1226 = vsub.f32 %v1198, %v1222
        %v1227 = vmul.f32 %v1223, %v1223
        %v1228 = vmul.f32 %v1224, %v1224
        %v1229 = vmul.f32 %v1225, %v1225
        %v1230 = vmul.f32 %v1226, %v1226
        %v1231 = vadd.f32 %v1227, %v1228
        %1232 = vadd.xlane.f32.xlu0 %v1231
        %v1233 = vpop.xlane.xlu0 %1232
        %v1234 = vadd.f32 %v1229, %v1230
        %1235 = vadd.xlane.f32.xlu0 %v1234
        %v1236 = vpop.xlane.xlu0 %1235
        %v1237 = vmul.f32 %v1233, %v1220
        %v1238 = vmul.f32 %v1236, %v1220
        %v1239 = vadd.f32 %v1237, 1e-05
        %v1240 = vadd.f32 %v1238, 1e-05
        %v1241 = vrsqrt.pop %v1239
        %v1242 = vrsqrt.pop %v1240
        %v1243 = vmul.f32 %v1223, %v1241
        %v1244 = vmul.f32 %v1224, %v1241
        %v1245 = vmul.f32 %v1225, %v1242
        %v1246 = vmul.f32 %v1226, %v1242
        %v1248 = vlaneseq
        %v1249 = vshrl.u32 %v1248, 7
        %v1250 = vsub.s32 0, %v1249
        %v1251 = vrot.slane %v1212, %v1250
        %v1252 = vlaneseq
        %v1253 = vshrl.u32 %v1252, 7
        %v1254 = vsub.s32 1, %v1253
        %v1255 = vrot.slane %v1212, %v1254
        %v1258 = vmul.f32 %v1243, %v1251
        %v1259 = vmul.f32 %v1244, %v1255
        %v1260 = vmul.f32 %v1245, %v1251
        %v1261 = vmul.f32 %v1246, %v1255
        %v1263 = vlaneseq
        %v1264 = vshrl.u32 %v1263, 7
        %v1265 = vsub.s32 0, %v1264
        %v1266 = vrot.slane %v1213, %v1265
        %v1267 = vlaneseq
        %v1268 = vshrl.u32 %v1267, 7
        %v1269 = vsub.s32 1, %v1268
        %v1270 = vrot.slane %v1213, %v1269
        %v1273 = vadd.f32 %v1258, %v1266
        %v1274 = vadd.f32 %v1259, %v1270
        %v1275 = vadd.f32 %v1260, %v1266
        %v1276 = vadd.f32 %v1261, %v1270
        %v1277 = vadd.f32 %v1204, %v1205
        %1278 = vadd.xlane.f32.xlu0 %v1277
        %v1279 = vpop.xlane.xlu0 %1278
        %v1280 = vmul.f32 %v1279, %v1220
        %v1281 = vsub.f32 %v1204, %v1280
        %v1282 = vsub.f32 %v1205, %v1280
        %v1283 = vmul.f32 %v1281, %v1281
        %v1284 = vmul.f32 %v1282, %v1282
        %v1285 = vadd.f32 %v1283, %v1284
        %1286 = vadd.xlane.f32.xlu0 %v1285
        %v1287 = vpop.xlane.xlu0 %1286
        %v1288 = vmul.f32 %v1287, %v1220
        %v1289 = vadd.f32 %v1288, 1e-05
        %v1290 = vrsqrt.pop %v1289
        %v1291 = vmul.f32 %v1281, %v1290
        %v1292 = vmul.f32 %v1282, %v1290
        %v1293 = vmul.f32 %v1291, %v1251
        %v1294 = vmul.f32 %v1292, %v1255
        %v1295 = vadd.f32 %v1293, %v1266
        %v1296 = vadd.f32 %v1294, %v1270
        %v1297 = vld [vmem:[#allocation9] sm:$0xff]
        %v1298 = vld [vmem:[#allocation9 + $0x8] sm:$0xff]
        %v1299 = vld [vmem:[#allocation9 + $0x10] sm:$0xff]
        %v1300 = vld [vmem:[#allocation9 + $0x18] sm:$0xff]
        %v1301 = vld [vmem:[#allocation9 + $0x20] sm:$0xff]
        %v1302 = vld [vmem:[#allocation9 + $0x28] sm:$0xff]
        %v1303 = vld [vmem:[#allocation9 + $0x30] sm:$0xff]
        %v1304 = vld [vmem:[#allocation9 + $0x38] sm:$0xff]
        %v1305 = vld [vmem:[#allocation9 + $0x40] sm:$0xff]
        %v1306 = vld [vmem:[#allocation9 + $0x48] sm:$0xff]
        %v1307 = vld [vmem:[#allocation9 + $0x50] sm:$0xff]
        %v1308 = vld [vmem:[#allocation9 + $0x58] sm:$0xff]
        %v1309 = vld [vmem:[#allocation9 + $0x60] sm:$0xff]
        %v1310 = vld [vmem:[#allocation9 + $0x68] sm:$0xff]
        %v1311 = vld [vmem:[#allocation9 + $0x70] sm:$0xff]
        %v1312 = vld [vmem:[#allocation9 + $0x78] sm:$0xff]
        %v1313 = vld [vmem:[#allocation9 + $0x80] sm:$0xff]
        %v1314 = vld [vmem:[#allocation9 + $0x88] sm:$0xff]
        %v1315 = vld [vmem:[#allocation9 + $0x90] sm:$0xff]
        %v1316 = vld [vmem:[#allocation9 + $0x98] sm:$0xff]
        %v1317 = vld [vmem:[#allocation9 + $0xa0] sm:$0xff]
        %v1318 = vld [vmem:[#allocation9 + $0xa8] sm:$0xff]
        %v1319 = vld [vmem:[#allocation9 + $0xb0] sm:$0xff]
        %v1320 = vld [vmem:[#allocation9 + $0xb8] sm:$0xff]
        %v1321 = vld [vmem:[#allocation9 + $0xc0] sm:$0xff]
        %v1322 = vld [vmem:[#allocation9 + $0xc8] sm:$0xff]
        %v1323 = vld [vmem:[#allocation9 + $0xd0] sm:$0xff]
        %v1324 = vld [vmem:[#allocation9 + $0xd8] sm:$0xff]
        %v1325 = vld [vmem:[#allocation9 + $0xe0] sm:$0xff]
        %v1326 = vld [vmem:[#allocation9 + $0xe8] sm:$0xff]
        %v1327 = vld [vmem:[#allocation9 + $0xf0] sm:$0xff]
        %v1328 = vld [vmem:[#allocation9 + $0xf8] sm:$0xff]
        %v1329 = vld [vmem:[#allocation9 + $0x100] sm:$0xff]
        %v1330 = vld [vmem:[#allocation9 + $0x108] sm:$0xff]
        %v1331 = vld [vmem:[#allocation9 + $0x110] sm:$0xff]
        %v1332 = vld [vmem:[#allocation9 + $0x118] sm:$0xff]
        %v1333 = vld [vmem:[#allocation9 + $0x120] sm:$0xff]
        %v1334 = vld [vmem:[#allocation9 + $0x128] sm:$0xff]
        %v1335 = vld [vmem:[#allocation9 + $0x130] sm:$0xff]
        %v1336 = vld [vmem:[#allocation9 + $0x138] sm:$0xff]
        %v1337 = vld [vmem:[#allocation9 + $0x140] sm:$0xff]
        %v1338 = vld [vmem:[#allocation9 + $0x148] sm:$0xff]
        %v1339 = vld [vmem:[#allocation9 + $0x150] sm:$0xff]
        %v1340 = vld [vmem:[#allocation9 + $0x158] sm:$0xff]
        %v1341 = vld [vmem:[#allocation9 + $0x160] sm:$0xff]
        %v1342 = vld [vmem:[#allocation9 + $0x168] sm:$0xff]
        %v1343 = vld [vmem:[#allocation9 + $0x170] sm:$0xff]
        %v1344 = vld [vmem:[#allocation9 + $0x178] sm:$0xff]
        %v1345 = vld [vmem:[#allocation9 + $0x180] sm:$0xff]
        %v1346 = vld [vmem:[#allocation9 + $0x188] sm:$0xff]
        %v1347 = vld [vmem:[#allocation9 + $0x190] sm:$0xff]
        %v1348 = vld [vmem:[#allocation9 + $0x198] sm:$0xff]
        %v1349 = vld [vmem:[#allocation9 + $0x1a0] sm:$0xff]
        %v1350 = vld [vmem:[#allocation9 + $0x1a8] sm:$0xff]
        %v1351 = vld [vmem:[#allocation9 + $0x1b0] sm:$0xff]
        %v1352 = vld [vmem:[#allocation9 + $0x1b8] sm:$0xff]
        %v1353 = vld [vmem:[#allocation9 + $0x1c0] sm:$0xff]
        %v1354 = vld [vmem:[#allocation9 + $0x1c8] sm:$0xff]
        %v1355 = vld [vmem:[#allocation9 + $0x1d0] sm:$0xff]
        %v1356 = vld [vmem:[#allocation9 + $0x1d8] sm:$0xff]
        %v1357 = vld [vmem:[#allocation9 + $0x1e0] sm:$0xff]
        %v1358 = vld [vmem:[#allocation9 + $0x1e8] sm:$0xff]
        %v1359 = vld [vmem:[#allocation9 + $0x1f0] sm:$0xff]
        %v1360 = vld [vmem:[#allocation9 + $0x1f8] sm:$0xff]
        %v1361 = vld [vmem:[%s15] sm:$0x3]
        %v1363 = vlaneseq
        %v1364 = vshrl.u32 %v1363, 7
        %v1365 = vsub.s32 0, %v1364
        %v1366 = vrot.slane %v1361, %v1365
        %v1367 = vlaneseq
        %v1368 = vshrl.u32 %v1367, 7
        %v1369 = vsub.s32 1, %v1368
        %v1370 = vrot.slane %v1361, %v1369
        %1373 = vmatprep.subr.mxu0 %v1298
        %1374 = vmatpush1.msra.mxu0 %v1297
        %1375 = vmatprep.subr.mxu0 %v1300
        %1376 = vmatpush1.msra.mxu0 %v1299
        %1377 = vmatprep.subr.mxu0 %v1302
        %1378 = vmatpush1.msra.mxu0 %v1301
        %1379 = vmatprep.subr.mxu0 %v1304
        %1380 = vmatpush1.msra.mxu0 %v1303
        %1381 = vmatprep.subr.mxu0 %v1306
        %1382 = vmatpush1.msra.mxu0 %v1305
        %1383 = vmatprep.subr.mxu0 %v1308
        %1384 = vmatpush1.msra.mxu0 %v1307
        %1385 = vmatprep.subr.mxu0 %v1310
        %1386 = vmatpush1.msra.mxu0 %v1309
        %1387 = vmatprep.subr.mxu0 %v1312
        %1388 = vmatpush1.msra.mxu0 %v1311
        %1389 = vmatprep.subr.mxu0 %v1314
        %1390 = vmatpush1.msra.mxu0 %v1313
        %1391 = vmatprep.subr.mxu0 %v1316
        %1392 = vmatpush1.msra.mxu0 %v1315
        %1393 = vmatprep.subr.mxu0 %v1318
        %1394 = vmatpush1.msra.mxu0 %v1317
        %1395 = vmatprep.subr.mxu0 %v1320
        %1396 = vmatpush1.msra.mxu0 %v1319
        %1397 = vmatprep.subr.mxu0 %v1322
        %1398 = vmatpush1.msra.mxu0 %v1321
        %1399 = vmatprep.subr.mxu0 %v1324
        %1400 = vmatpush1.msra.mxu0 %v1323
        %1401 = vmatprep.subr.mxu0 %v1326
        %1402 = vmatpush1.msra.mxu0 %v1325
        %1403 = vmatprep.subr.mxu0 %v1328
        %1404 = vmatpush1.msra.mxu0 %v1327
        %1405 = vmatprep.subr.mxu0 %v1330
        %1406 = vmatpush1.msra.mxu0 %v1329
        %1407 = vmatprep.subr.mxu0 %v1332
        %1408 = vmatpush1.msra.mxu0 %v1331
        %1409 = vmatprep.subr.mxu0 %v1334
        %1410 = vmatpush1.msra.mxu0 %v1333
        %1411 = vmatprep.subr.mxu0 %v1336
        %1412 = vmatpush1.msra.mxu0 %v1335
        %1413 = vmatprep.subr.mxu0 %v1338
        %1414 = vmatpush1.msra.mxu0 %v1337
        %1415 = vmatprep.subr.mxu0 %v1340
        %1416 = vmatpush1.msra.mxu0 %v1339
        %1417 = vmatprep.subr.mxu0 %v1342
        %1418 = vmatpush1.msra.mxu0 %v1341
        %1419 = vmatprep.subr.mxu0 %v1344
        %1420 = vmatpush1.msra.mxu0 %v1343
        %1421 = vmatprep.subr.mxu0 %v1346
        %1422 = vmatpush1.msra.mxu0 %v1345
        %1423 = vmatprep.subr.mxu0 %v1348
        %1424 = vmatpush1.msra.mxu0 %v1347
        %1425 = vmatprep.subr.mxu0 %v1350
        %1426 = vmatpush1.msra.mxu0 %v1349
        %1427 = vmatprep.subr.mxu0 %v1352
        %1428 = vmatpush1.msra.mxu0 %v1351
        %1429 = vmatprep.subr.mxu0 %v1354
        %1430 = vmatpush1.msra.mxu0 %v1353
        %1431 = vmatprep.subr.mxu0 %v1356
        %1432 = vmatpush1.msra.mxu0 %v1355
        %1433 = vmatprep.subr.mxu0 %v1358
        %1434 = vmatpush1.msra.mxu0 %v1357
        %1435 = vmatprep.subr.mxu0 %v1360
        %1436 = vmatpush1.msra.mxu0 %v1359
        %1437 = vmatprep.mubr.f32.mxu0 %v1296
        %1438 = vmatmul.mubr.f32.gmra.mrb[0].mxu0 %v1295
        %v1439 = vpop.f32.mrb[0].mxu0
        %v1440 = vadd.f32 %v1366, %v1439
        %v1441 = vpop.f32.mrb[0].mxu0
        %v1442 = vadd.f32 %v1370, %v1441
        %1443 = vdwg.mxu0
        %v1444 = vld [vmem:[#allocation11] sm:$0xff]
        %v1445 = vld [vmem:[#allocation11 + $0x8] sm:$0xff]
        %v1446 = vld [vmem:[#allocation11 + $0x10] sm:$0xff]
        %v1447 = vld [vmem:[#allocation11 + $0x18] sm:$0xff]
        %v1448 = vld [vmem:[#allocation11 + $0x20] sm:$0xff]
        %v1449 = vld [vmem:[#allocation11 + $0x28] sm:$0xff]
        %v1450 = vld [vmem:[#allocation11 + $0x30] sm:$0xff]
        %v1451 = vld [vmem:[#allocation11 + $0x38] sm:$0xff]
        %v1452 = vld [vmem:[#allocation11 + $0x40] sm:$0xff]
        %v1453 = vld [vmem:[#allocation11 + $0x48] sm:$0xff]
        %v1454 = vld [vmem:[#allocation11 + $0x50] sm:$0xff]
        %v1455 = vld [vmem:[#allocation11 + $0x58] sm:$0xff]
        %v1456 = vld [vmem:[#allocation11 + $0x60] sm:$0xff]
        %v1457 = vld [vmem:[#allocation11 + $0x68] sm:$0xff]
        %v1458 = vld [vmem:[#allocation11 + $0x70] sm:$0xff]
        %v1459 = vld [vmem:[#allocation11 + $0x78] sm:$0xff]
        %v1460 = vld [vmem:[#allocation11 + $0x80] sm:$0xff]
        %v1461 = vld [vmem:[#allocation11 + $0x88] sm:$0xff]
        %v1462 = vld [vmem:[#allocation11 + $0x90] sm:$0xff]
        %v1463 = vld [vmem:[#allocation11 + $0x98] sm:$0xff]
        %v1464 = vld [vmem:[#allocation11 + $0xa0] sm:$0xff]
        %v1465 = vld [vmem:[#allocation11 + $0xa8] sm:$0xff]
        %v1466 = vld [vmem:[#allocation11 + $0xb0] sm:$0xff]
        %v1467 = vld [vmem:[#allocation11 + $0xb8] sm:$0xff]
        %v1468 = vld [vmem:[#allocation11 + $0xc0] sm:$0xff]
        %v1469 = vld [vmem:[#allocation11 + $0xc8] sm:$0xff]
        %v1470 = vld [vmem:[#allocation11 + $0xd0] sm:$0xff]
        %v1471 = vld [vmem:[#allocation11 + $0xd8] sm:$0xff]
        %v1472 = vld [vmem:[#allocation11 + $0xe0] sm:$0xff]
        %v1473 = vld [vmem:[#allocation11 + $0xe8] sm:$0xff]
        %v1474 = vld [vmem:[#allocation11 + $0xf0] sm:$0xff]
        %v1475 = vld [vmem:[#allocation11 + $0xf8] sm:$0xff]
        %v1476 = vld [vmem:[#allocation11 + $0x100] sm:$0xff]
        %v1477 = vld [vmem:[#allocation11 + $0x108] sm:$0xff]
        %v1478 = vld [vmem:[#allocation11 + $0x110] sm:$0xff]
        %v1479 = vld [vmem:[#allocation11 + $0x118] sm:$0xff]
        %v1480 = vld [vmem:[#allocation11 + $0x120] sm:$0xff]
        %v1481 = vld [vmem:[#allocation11 + $0x128] sm:$0xff]
        %v1482 = vld [vmem:[#allocation11 + $0x130] sm:$0xff]
        %v1483 = vld [vmem:[#allocation11 + $0x138] sm:$0xff]
        %v1484 = vld [vmem:[#allocation11 + $0x140] sm:$0xff]
        %v1485 = vld [vmem:[#allocation11 + $0x148] sm:$0xff]
        %v1486 = vld [vmem:[#allocation11 + $0x150] sm:$0xff]
        %v1487 = vld [vmem:[#allocation11 + $0x158] sm:$0xff]
        %v1488 = vld [vmem:[#allocation11 + $0x160] sm:$0xff]
        %v1489 = vld [vmem:[#allocation11 + $0x168] sm:$0xff]
        %v1490 = vld [vmem:[#allocation11 + $0x170] sm:$0xff]
        %v1491 = vld [vmem:[#allocation11 + $0x178] sm:$0xff]
        %v1492 = vld [vmem:[#allocation11 + $0x180] sm:$0xff]
        %v1493 = vld [vmem:[#allocation11 + $0x188] sm:$0xff]
        %v1494 = vld [vmem:[#allocation11 + $0x190] sm:$0xff]
        %v1495 = vld [vmem:[#allocation11 + $0x198] sm:$0xff]
        %v1496 = vld [vmem:[#allocation11 + $0x1a0] sm:$0xff]
        %v1497 = vld [vmem:[#allocation11 + $0x1a8] sm:$0xff]
        %v1498 = vld [vmem:[#allocation11 + $0x1b0] sm:$0xff]
        %v1499 = vld [vmem:[#allocation11 + $0x1b8] sm:$0xff]
        %v1500 = vld [vmem:[#allocation11 + $0x1c0] sm:$0xff]
        %v1501 = vld [vmem:[#allocation11 + $0x1c8] sm:$0xff]
        %v1502 = vld [vmem:[#allocation11 + $0x1d0] sm:$0xff]
        %v1503 = vld [vmem:[#allocation11 + $0x1d8] sm:$0xff]
        %v1504 = vld [vmem:[#allocation11 + $0x1e0] sm:$0xff]
        %v1505 = vld [vmem:[#allocation11 + $0x1e8] sm:$0xff]
        %v1506 = vld [vmem:[#allocation11 + $0x1f0] sm:$0xff]
        %v1507 = vld [vmem:[#allocation11 + $0x1f8] sm:$0xff]
        %v1508 = vld [vmem:[%s19] sm:$0x3]
        %v1510 = vlaneseq
        %v1511 = vshrl.u32 %v1510, 7
        %v1512 = vsub.s32 0, %v1511
        %v1513 = vrot.slane %v1508, %v1512
        %v1514 = vlaneseq
        %v1515 = vshrl.u32 %v1514, 7
        %v1516 = vsub.s32 1, %v1515
        %v1517 = vrot.slane %v1508, %v1516
        %1520 = vmatprep.subr.mxu0 %v1445
        %1521 = vmatpush1.msra.mxu0 %v1444
        %1522 = vmatprep.subr.mxu0 %v1447
        %1523 = vmatpush1.msra.mxu0 %v1446
        %1524 = vmatprep.subr.mxu0 %v1449
        %1525 = vmatpush1.msra.mxu0 %v1448
        %1526 = vmatprep.subr.mxu0 %v1451
        %1527 = vmatpush1.msra.mxu0 %v1450
        %1528 = vmatprep.subr.mxu0 %v1453
        %1529 = vmatpush1.msra.mxu0 %v1452
        %1530 = vmatprep.subr.mxu0 %v1455
        %1531 = vmatpush1.msra.mxu0 %v1454
        %1532 = vmatprep.subr.mxu0 %v1457
        %1533 = vmatpush1.msra.mxu0 %v1456
        %1534 = vmatprep.subr.mxu0 %v1459
        %1535 = vmatpush1.msra.mxu0 %v1458
        %1536 = vmatprep.subr.mxu0 %v1461
        %1537 = vmatpush1.msra.mxu0 %v1460
        %1538 = vmatprep.subr.mxu0 %v1463
        %1539 = vmatpush1.msra.mxu0 %v1462
        %1540 = vmatprep.subr.mxu0 %v1465
        %1541 = vmatpush1.msra.mxu0 %v1464
        %1542 = vmatprep.subr.mxu0 %v1467
        %1543 = vmatpush1.msra.mxu0 %v1466
        %1544 = vmatprep.subr.mxu0 %v1469
        %1545 = vmatpush1.msra.mxu0 %v1468
        %1546 = vmatprep.subr.mxu0 %v1471
        %1547 = vmatpush1.msra.mxu0 %v1470
        %1548 = vmatprep.subr.mxu0 %v1473
        %1549 = vmatpush1.msra.mxu0 %v1472
        %1550 = vmatprep.subr.mxu0 %v1475
        %1551 = vmatpush1.msra.mxu0 %v1474
        %1552 = vmatprep.subr.mxu0 %v1477
        %1553 = vmatpush1.msra.mxu0 %v1476
        %1554 = vmatprep.subr.mxu0 %v1479
        %1555 = vmatpush1.msra.mxu0 %v1478
        %1556 = vmatprep.subr.mxu0 %v1481
        %1557 = vmatpush1.msra.mxu0 %v1480
        %1558 = vmatprep.subr.mxu0 %v1483
        %1559 = vmatpush1.msra.mxu0 %v1482
        %1560 = vmatprep.subr.mxu0 %v1485
        %1561 = vmatpush1.msra.mxu0 %v1484
        %1562 = vmatprep.subr.mxu0 %v1487
        %1563 = vmatpush1.msra.mxu0 %v1486
        %1564 = vmatprep.subr.mxu0 %v1489
        %1565 = vmatpush1.msra.mxu0 %v1488
        %1566 = vmatprep.subr.mxu0 %v1491
        %1567 = vmatpush1.msra.mxu0 %v1490
        %1568 = vmatprep.subr.mxu0 %v1493
        %1569 = vmatpush1.msra.mxu0 %v1492
        %1570 = vmatprep.subr.mxu0 %v1495
        %1571 = vmatpush1.msra.mxu0 %v1494
        %1572 = vmatprep.subr.mxu0 %v1497
        %1573 = vmatpush1.msra.mxu0 %v1496
        %1574 = vmatprep.subr.mxu0 %v1499
        %1575 = vmatpush1.msra.mxu0 %v1498
        %1576 = vmatprep.subr.mxu0 %v1501
        %1577 = vmatpush1.msra.mxu0 %v1500
        %1578 = vmatprep.subr.mxu0 %v1503
        %1579 = vmatpush1.msra.mxu0 %v1502
        %1580 = vmatprep.subr.mxu0 %v1505
        %1581 = vmatpush1.msra.mxu0 %v1504
        %1582 = vmatprep.subr.mxu0 %v1507
        %1583 = vmatpush1.msra.mxu0 %v1506
        %1584 = vmatprep.mubr.f32.mxu0 %v1274
        %1585 = vmatmul.mubr.f32.gmra.mrb[0].mxu0 %v1273
        %v1586 = vpop.f32.mrb[0].mxu0
        %v1587 = vadd.f32 %v1513, %v1586
        %v1588 = vpop.f32.mrb[0].mxu0
        %v1589 = vadd.f32 %v1517, %v1588
        %1590 = vmatprep.mubr.f32.mxu0 %v1276
        %1591 = vmatmul.mubr.f32.gmra.mrb[0].mxu0 %v1275
        %v1592 = vpop.f32.mrb[0].mxu0
        %v1593 = vadd.f32 %v1513, %v1592
        %v1594 = vpop.f32.mrb[0].mxu0
        %v1595 = vadd.f32 %v1517, %v1594
        %1596 = vdwg.mxu0
        %v1597 = vld [vmem:[#allocation12] sm:$0xff]
        %v1598 = vld [vmem:[#allocation12 + $0x8] sm:$0xff]
        %v1599 = vld [vmem:[#allocation12 + $0x10] sm:$0xff]
        %v1600 = vld [vmem:[#allocation12 + $0x18] sm:$0xff]
        %v1601 = vld [vmem:[#allocation12 + $0x20] sm:$0xff]
        %v1602 = vld [vmem:[#allocation12 + $0x28] sm:$0xff]
        %v1603 = vld [vmem:[#allocation12 + $0x30] sm:$0xff]
        %v1604 = vld [vmem:[#allocation12 + $0x38] sm:$0xff]
        %v1605 = vld [vmem:[#allocation12 + $0x40] sm:$0xff]
        %v1606 = vld [vmem:[#allocation12 + $0x48] sm:$0xff]
        %v1607 = vld [vmem:[#allocation12 + $0x50] sm:$0xff]
        %v1608 = vld [vmem:[#allocation12 + $0x58] sm:$0xff]
        %v1609 = vld [vmem:[#allocation12 + $0x60] sm:$0xff]
        %v1610 = vld [vmem:[#allocation12 + $0x68] sm:$0xff]
        %v1611 = vld [vmem:[#allocation12 + $0x70] sm:$0xff]
        %v1612 = vld [vmem:[#allocation12 + $0x78] sm:$0xff]
        %v1613 = vld [vmem:[#allocation12 + $0x80] sm:$0xff]
        %v1614 = vld [vmem:[#allocation12 + $0x88] sm:$0xff]
        %v1615 = vld [vmem:[#allocation12 + $0x90] sm:$0xff]
        %v1616 = vld [vmem:[#allocation12 + $0x98] sm:$0xff]
        %v1617 = vld [vmem:[#allocation12 + $0xa0] sm:$0xff]
        %v1618 = vld [vmem:[#allocation12 + $0xa8] sm:$0xff]
        %v1619 = vld [vmem:[#allocation12 + $0xb0] sm:$0xff]
        %v1620 = vld [vmem:[#allocation12 + $0xb8] sm:$0xff]
        %v1621 = vld [vmem:[#allocation12 + $0xc0] sm:$0xff]
        %v1622 = vld [vmem:[#allocation12 + $0xc8] sm:$0xff]
        %v1623 = vld [vmem:[#allocation12 + $0xd0] sm:$0xff]
        %v1624 = vld [vmem:[#allocation12 + $0xd8] sm:$0xff]
        %v1625 = vld [vmem:[#allocation12 + $0xe0] sm:$0xff]
        %v1626 = vld [vmem:[#allocation12 + $0xe8] sm:$0xff]
        %v1627 = vld [vmem:[#allocation12 + $0xf0] sm:$0xff]
        %v1628 = vld [vmem:[#allocation12 + $0xf8] sm:$0xff]
        %v1629 = vld [vmem:[#allocation12 + $0x100] sm:$0xff]
        %v1630 = vld [vmem:[#allocation12 + $0x108] sm:$0xff]
        %v1631 = vld [vmem:[#allocation12 + $0x110] sm:$0xff]
        %v1632 = vld [vmem:[#allocation12 + $0x118] sm:$0xff]
        %v1633 = vld [vmem:[#allocation12 + $0x120] sm:$0xff]
        %v1634 = vld [vmem:[#allocation12 + $0x128] sm:$0xff]
        %v1635 = vld [vmem:[#allocation12 + $0x130] sm:$0xff]
        %v1636 = vld [vmem:[#allocation12 + $0x138] sm:$0xff]
        %v1637 = vld [vmem:[#allocation12 + $0x140] sm:$0xff]
        %v1638 = vld [vmem:[#allocation12 + $0x148] sm:$0xff]
        %v1639 = vld [vmem:[#allocation12 + $0x150] sm:$0xff]
        %v1640 = vld [vmem:[#allocation12 + $0x158] sm:$0xff]
        %v1641 = vld [vmem:[#allocation12 + $0x160] sm:$0xff]
        %v1642 = vld [vmem:[#allocation12 + $0x168] sm:$0xff]
        %v1643 = vld [vmem:[#allocation12 + $0x170] sm:$0xff]
        %v1644 = vld [vmem:[#allocation12 + $0x178] sm:$0xff]
        %v1645 = vld [vmem:[#allocation12 + $0x180] sm:$0xff]
        %v1646 = vld [vmem:[#allocation12 + $0x188] sm:$0xff]
        %v1647 = vld [vmem:[#allocation12 + $0x190] sm:$0xff]
        %v1648 = vld [vmem:[#allocation12 + $0x198] sm:$0xff]
        %v1649 = vld [vmem:[#allocation12 + $0x1a0] sm:$0xff]
        %v1650 = vld [vmem:[#allocation12 + $0x1a8] sm:$0xff]
        %v1651 = vld [vmem:[#allocation12 + $0x1b0] sm:$0xff]
        %v1652 = vld [vmem:[#allocation12 + $0x1b8] sm:$0xff]
        %v1653 = vld [vmem:[#allocation12 + $0x1c0] sm:$0xff]
        %v1654 = vld [vmem:[#allocation12 + $0x1c8] sm:$0xff]
        %v1655 = vld [vmem:[#allocation12 + $0x1d0] sm:$0xff]
        %v1656 = vld [vmem:[#allocation12 + $0x1d8] sm:$0xff]
        %v1657 = vld [vmem:[#allocation12 + $0x1e0] sm:$0xff]
        %v1658 = vld [vmem:[#allocation12 + $0x1e8] sm:$0xff]
        %v1659 = vld [vmem:[#allocation12 + $0x1f0] sm:$0xff]
        %v1660 = vld [vmem:[#allocation12 + $0x1f8] sm:$0xff]
        %v1661 = vld [vmem:[%s23] sm:$0x3]
        %v1663 = vlaneseq
        %v1664 = vshrl.u32 %v1663, 7
        %v1665 = vsub.s32 0, %v1664
        %v1666 = vrot.slane %v1661, %v1665
        %v1667 = vlaneseq
        %v1668 = vshrl.u32 %v1667, 7
        %v1669 = vsub.s32 1, %v1668
        %v1670 = vrot.slane %v1661, %v1669
        %1673 = vmatprep.subr.mxu0 %v1598
        %1674 = vmatpush1.msra.mxu0 %v1597
        %1675 = vmatprep.subr.mxu0 %v1600
        %1676 = vmatpush1.msra.mxu0 %v1599
        %1677 = vmatprep.subr.mxu0 %v1602
        %1678 = vmatpush1.msra.mxu0 %v1601
        %1679 = vmatprep.subr.mxu0 %v1604
        %1680 = vmatpush1.msra.mxu0 %v1603
        %1681 = vmatprep.subr.mxu0 %v1606
        %1682 = vmatpush1.msra.mxu0 %v1605
        %1683 = vmatprep.subr.mxu0 %v1608
        %1684 = vmatpush1.msra.mxu0 %v1607
        %1685 = vmatprep.subr.mxu0 %v1610
        %1686 = vmatpush1.msra.mxu0 %v1609
        %1687 = vmatprep.subr.mxu0 %v1612
        %1688 = vmatpush1.msra.mxu0 %v1611
        %1689 = vmatprep.subr.mxu0 %v1614
        %1690 = vmatpush1.msra.mxu0 %v1613
        %1691 = vmatprep.subr.mxu0 %v1616
        %1692 = vmatpush1.msra.mxu0 %v1615
        %1693 = vmatprep.subr.mxu0 %v1618
        %1694 = vmatpush1.msra.mxu0 %v1617
        %1695 = vmatprep.subr.mxu0 %v1620
        %1696 = vmatpush1.msra.mxu0 %v1619
        %1697 = vmatprep.subr.mxu0 %v1622
        %1698 = vmatpush1.msra.mxu0 %v1621
        %1699 = vmatprep.subr.mxu0 %v1624
        %1700 = vmatpush1.msra.mxu0 %v1623
        %1701 = vmatprep.subr.mxu0 %v1626
        %1702 = vmatpush1.msra.mxu0 %v1625
        %1703 = vmatprep.subr.mxu0 %v1628
        %1704 = vmatpush1.msra.mxu0 %v1627
        %1705 = vmatprep.subr.mxu0 %v1630
        %1706 = vmatpush1.msra.mxu0 %v1629
        %1707 = vmatprep.subr.mxu0 %v1632
        %1708 = vmatpush1.msra.mxu0 %v1631
        %1709 = vmatprep.subr.mxu0 %v1634
        %1710 = vmatpush1.msra.mxu0 %v1633
        %1711 = vmatprep.subr.mxu0 %v1636
        %1712 = vmatpush1.msra.mxu0 %v1635
        %1713 = vmatprep.subr.mxu0 %v1638
        %1714 = vmatpush1.msra.mxu0 %v1637
        %1715 = vmatprep.subr.mxu0 %v1640
        %1716 = vmatpush1.msra.mxu0 %v1639
        %1717 = vmatprep.subr.mxu0 %v1642
        %1718 = vmatpush1.msra.mxu0 %v1641
        %1719 = vmatprep.subr.mxu0 %v1644
        %1720 = vmatpush1.msra.mxu0 %v1643
        %1721 = vmatprep.subr.mxu0 %v1646
        %1722 = vmatpush1.msra.mxu0 %v1645
        %1723 = vmatprep.subr.mxu0 %v1648
        %1724 = vmatpush1.msra.mxu0 %v1647
        %1725 = vmatprep.subr.mxu0 %v1650
        %1726 = vmatpush1.msra.mxu0 %v1649
        %1727 = vmatprep.subr.mxu0 %v1652
        %1728 = vmatpush1.msra.mxu0 %v1651
        %1729 = vmatprep.subr.mxu0 %v1654
        %1730 = vmatpush1.msra.mxu0 %v1653
        %1731 = vmatprep.subr.mxu0 %v1656
        %1732 = vmatpush1.msra.mxu0 %v1655
        %1733 = vmatprep.subr.mxu0 %v1658
        %1734 = vmatpush1.msra.mxu0 %v1657
        %1735 = vmatprep.subr.mxu0 %v1660
        %1736 = vmatpush1.msra.mxu0 %v1659
        %1737 = vmatprep.mubr.f32.mxu0 %v1274
        %1738 = vmatmul.mubr.f32.gmra.mrb[0].mxu0 %v1273
        %v1739 = vpop.f32.mrb[0].mxu0
        %v1740 = vadd.f32 %v1666, %v1739
        %v1741 = vpop.f32.mrb[0].mxu0
        %v1742 = vadd.f32 %v1670, %v1741
        %1743 = vmatprep.mubr.f32.mxu0 %v1276
        %1744 = vmatmul.mubr.f32.gmra.mrb[0].mxu0 %v1275
        %v1745 = vpop.f32.mrb[0].mxu0
        %v1746 = vadd.f32 %v1666, %v1745
        %v1747 = vpop.f32.mrb[0].mxu0
        %v1748 = vadd.f32 %v1670, %v1747
        %1749 = vdwg.mxu0
        %1750 = vmatprep.subr.mxu0 0.0
        %1751 = vmatpush1.xpose.msra.mxu0 %v1587
        %1752 = vmatprep.subr.mxu0 0.0
        %1753 = vmatpush1.xpose.msra.mxu0 %v1593
        %1754 = vmatprep.subr.mxu0 0.0
        %1755 = vmatpush1.xpose.msra.mxu0 0.0
        %1756 = vmatprep.subr.mxu0 0.0
        %1757 = vmatpush1.xpose.msra.mxu0 0.0
        %1758 = vmatprep.subr.mxu0 0.0
        %1759 = vmatpush1.xpose.msra.mxu0 0.0
        %1760 = vmatprep.subr.mxu0 0.0
        %1761 = vmatpush1.xpose.msra.mxu0 0.0
        %1762 = vmatprep.subr.mxu0 0.0
        %1763 = vmatpush1.xpose.msra.mxu0 0.0
        %1764 = vmatprep.subr.mxu0 0.0
        %1765 = vmatpush1.xpose.msra.mxu0 0.0
        %1766 = vmatprep.subr.mxu0 0.0
        %1767 = vmatpush1.xpose.msra.mxu0 0.0
        %1768 = vmatprep.subr.mxu0 0.0
        %1769 = vmatpush1.xpose.msra.mxu0 0.0
        %1770 = vmatprep.subr.mxu0 0.0
        %1771 = vmatpush1.xpose.msra.mxu0 0.0
        %1772 = vmatprep.subr.mxu0 0.0
        %1773 = vmatpush1.xpose.msra.mxu0 0.0
        %1774 = vmatprep.subr.mxu0 0.0
        %1775 = vmatpush1.xpose.msra.mxu0 0.0
        %1776 = vmatprep.subr.mxu0 0.0
        %1777 = vmatpush1.xpose.msra.mxu0 0.0
        %1778 = vmatprep.subr.mxu0 0.0
        %1779 = vmatpush1.xpose.msra.mxu0 0.0
        %1780 = vmatprep.subr.mxu0 0.0
        %1781 = vmatpush1.xpose.msra.mxu0 0.0
        %1782 = vmatprep.subr.mxu0 0.0
        %1783 = vmatpush1.xpose.msra.mxu0 0.0
        %1784 = vmatprep.subr.mxu0 0.0
        %1785 = vmatpush1.xpose.msra.mxu0 0.0
        %1786 = vmatprep.subr.mxu0 0.0
        %1787 = vmatpush1.xpose.msra.mxu0 0.0
        %1788 = vmatprep.subr.mxu0 0.0
        %1789 = vmatpush1.xpose.msra.mxu0 0.0
        %1790 = vmatprep.subr.mxu0 0.0
        %1791 = vmatpush1.xpose.msra.mxu0 0.0
        %1792 = vmatprep.subr.mxu0 0.0
        %1793 = vmatpush1.xpose.msra.mxu0 0.0
        %1794 = vmatprep.subr.mxu0 0.0
        %1795 = vmatpush1.xpose.msra.mxu0 0.0
        %1796 = vmatprep.subr.mxu0 0.0
        %1797 = vmatpush1.xpose.msra.mxu0 0.0
        %1798 = vmatprep.subr.mxu0 0.0
        %1799 = vmatpush1.xpose.msra.mxu0 0.0
        %1800 = vmatprep.subr.mxu0 0.0
        %1801 = vmatpush1.xpose.msra.mxu0 0.0
        %1802 = vmatprep.subr.mxu0 0.0
        %1803 = vmatpush1.xpose.msra.mxu0 0.0
        %1804 = vmatprep.subr.mxu0 0.0
        %1805 = vmatpush1.xpose.msra.mxu0 0.0
        %1806 = vmatprep.subr.mxu0 0.0
        %1807 = vmatpush1.xpose.msra.mxu0 0.0
        %1808 = vmatprep.subr.mxu0 0.0
        %1809 = vmatpush1.xpose.msra.mxu0 0.0
        %1810 = vmatprep.subr.mxu0 0.0
        %1811 = vmatpush1.xpose.msra.mxu0 0.0
        %1812 = vmatprep.subr.mxu0 0.0
        %1813 = vmatpush1.xpose.msra.mxu0 0.0
        %1814 = vmatprep.mubr.f32.mxu0 0.0
        %1815 = vmatmul.mubr.f32.gmra.mrb[0].mxu0 %v1440
        %v1816 = vpop.f32.mrb[0].mxu0
        %v1817 = vadd.f32 0.0, %v1816
        %v1818 = vpop.f32.mrb[0].mxu0
        %1819 = vdwg.mxu0
        %v1820 = vmul.f32 %v1817, 0.088388346
        %v1821 = vadd.f32 %v1820, %v1208
        %vm1822 = vcmask 130048
        %v1823 = vsel %vm1822, %v1821, -inf
        %1824 = vmax.xlane.f32.xlu0 %v1823
        %v1825 = vpop.xlane.xlu0 %1824
        %v1826 = vsub.f32 %v1821, %v1825
        %v1827 = vmul.f32 %v1826, 1.442695
        %v1828 = vpow.pop %v1827
        %v1829 = vsel %vm1822, %v1828, 0.0
        %1830 = vadd.xlane.f32.xlu0 %v1829
        %v1831 = vpop.xlane.xlu0 %1830
        %v1832 = vrcp.pop %v1831
        %v1834 = vsel %vm1822, %v1828, 0
        %1836 = vmatprep.subr.mxu0 0.0
        %1837 = vmatpush1.msra.mxu0 %v1740
        %1838 = vmatprep.subr.mxu0 0.0
        %1839 = vmatpush1.msra.mxu0 %v1746
        %1840 = vmatprep.subr.mxu0 0.0
        %1841 = vmatpush1.msra.mxu0 0.0
        %1842 = vmatprep.subr.mxu0 0.0
        %1843 = vmatpush1.msra.mxu0 0.0
        %1844 = vmatprep.subr.mxu0 0.0
        %1845 = vmatpush1.msra.mxu0 0.0
        %1846 = vmatprep.subr.mxu0 0.0
        %1847 = vmatpush1.msra.mxu0 0.0
        %1848 = vmatprep.subr.mxu0 0.0
        %1849 = vmatpush1.msra.mxu0 0.0
        %1850 = vmatprep.subr.mxu0 0.0
        %1851 = vmatpush1.msra.mxu0 0.0
        %1852 = vmatprep.subr.mxu0 0.0
        %1853 = vmatpush1.msra.mxu0 0.0
        %1854 = vmatprep.subr.mxu0 0.0
        %1855 = vmatpush1.msra.mxu0 0.0
        %1856 = vmatprep.subr.mxu0 0.0
        %1857 = vmatpush1.msra.mxu0 0.0
        %1858 = vmatprep.subr.mxu0 0.0
        %1859 = vmatpush1.msra.mxu0 0.0
        %1860 = vmatprep.subr.mxu0 0.0
        %1861 = vmatpush1.msra.mxu0 0.0
        %1862 = vmatprep.subr.mxu0 0.0
        %1863 = vmatpush1.msra.mxu0 0.0
        %1864 = vmatprep.subr.mxu0 0.0
        %1865 = vmatpush1.msra.mxu0 0.0
        %1866 = vmatprep.subr.mxu0 0.0
        %1867 = vmatpush1.msra.mxu0 0.0
        %1868 = vmatprep.subr.mxu0 0.0
        %1869 = vmatpush1.msra.mxu0 0.0
        %1870 = vmatprep.subr.mxu0 0.0
        %1871 = vmatpush1.msra.mxu0 0.0
        %1872 = vmatprep.subr.mxu0 0.0
        %1873 = vmatpush1.msra.mxu0 0.0
        %1874 = vmatprep.subr.mxu0 0.0
        %1875 = vmatpush1.msra.mxu0 0.0
        %1876 = vmatprep.subr.mxu0 0.0
        %1877 = vmatpush1.msra.mxu0 0.0
        %1878 = vmatprep.subr.mxu0 0.0
        %1879 = vmatpush1.msra.mxu0 0.0
        %1880 = vmatprep.subr.mxu0 0.0
        %1881 = vmatpush1.msra.mxu0 0.0
        %1882 = vmatprep.subr.mxu0 0.0
        %1883 = vmatpush1.msra.mxu0 0.0
        %1884 = vmatprep.subr.mxu0 0.0
        %1885 = vmatpush1.msra.mxu0 0.0
        %1886 = vmatprep.subr.mxu0 0.0
        %1887 = vmatpush1.msra.mxu0 0.0
        %1888 = vmatprep.subr.mxu0 0.0
        %1889 = vmatpush1.msra.mxu0 0.0
        %1890 = vmatprep.subr.mxu0 0.0
        %1891 = vmatpush1.msra.mxu0 0.0
        %1892 = vmatprep.subr.mxu0 0.0
        %1893 = vmatpush1.msra.mxu0 0.0
        %1894 = vmatprep.subr.mxu0 0.0
        %1895 = vmatpush1.msra.mxu0 0.0
        %1896 = vmatprep.subr.mxu0 0.0
        %1897 = vmatpush1.msra.mxu0 0.0
        %1898 = vmatprep.subr.mxu0 0.0
        %1899 = vmatpush1.msra.mxu0 0.0
        %1900 = vmatprep.mubr.f32.mxu0 0.0
        %1901 = vmatmul.mubr.f32.gmra.mrb[0].mxu0 %v1834
        %v1902 = vpop.f32.mrb[0].mxu0
        %v1903 = vadd.f32 0.0, %v1902
        %v1904 = vpop.f32.mrb[0].mxu0
        %1905 = vdwg.mxu0
        %v1906 = vmul.f32 %v1903, %v1832
        %1907 = vst [vmem:[#allocation2] sm:$0xff] %v1906
        %1908 = vmatprep.subr.mxu0 0.0
        %1909 = vmatpush1.xpose.msra.mxu0 %v1589
        %1910 = vmatprep.subr.mxu0 0.0
        %1911 = vmatpush1.xpose.msra.mxu0 %v1595
        %1912 = vmatprep.subr.mxu0 0.0
        %1913 = vmatpush1.xpose.msra.mxu0 0.0
        %1914 = vmatprep.subr.mxu0 0.0
        %1915 = vmatpush1.xpose.msra.mxu0 0.0
        %1916 = vmatprep.subr.mxu0 0.0
        %1917 = vmatpush1.xpose.msra.mxu0 0.0
        %1918 = vmatprep.subr.mxu0 0.0
        %1919 = vmatpush1.xpose.msra.mxu0 0.0
        %1920 = vmatprep.subr.mxu0 0.0
        %1921 = vmatpush1.xpose.msra.mxu0 0.0
        %1922 = vmatprep.subr.mxu0 0.0
        %1923 = vmatpush1.xpose.msra.mxu0 0.0
        %1924 = vmatprep.subr.mxu0 0.0
        %1925 = vmatpush1.xpose.msra.mxu0 0.0
        %1926 = vmatprep.subr.mxu0 0.0
        %1927 = vmatpush1.xpose.msra.mxu0 0.0
        %1928 = vmatprep.subr.mxu0 0.0
        %1929 = vmatpush1.xpose.msra.mxu0 0.0
        %1930 = vmatprep.subr.mxu0 0.0
        %1931 = vmatpush1.xpose.msra.mxu0 0.0
        %1932 = vmatprep.subr.mxu0 0.0
        %1933 = vmatpush1.xpose.msra.mxu0 0.0
        %1934 = vmatprep.subr.mxu0 0.0
        %1935 = vmatpush1.xpose.msra.mxu0 0.0
        %1936 = vmatprep.subr.mxu0 0.0
        %1937 = vmatpush1.xpose.msra.mxu0 0.0
        %1938 = vmatprep.subr.mxu0 0.0
        %1939 = vmatpush1.xpose.msra.mxu0 0.0
        %1940 = vmatprep.subr.mxu0 0.0
        %1941 = vmatpush1.xpose.msra.mxu0 0.0
        %1942 = vmatprep.subr.mxu0 0.0
        %1943 = vmatpush1.xpose.msra.mxu0 0.0
        %1944 = vmatprep.subr.mxu0 0.0
        %1945 = vmatpush1.xpose.msra.mxu0 0.0
        %1946 = vmatprep.subr.mxu0 0.0
        %1947 = vmatpush1.xpose.msra.mxu0 0.0
        %1948 = vmatprep.subr.mxu0 0.0
        %1949 = vmatpush1.xpose.msra.mxu0 0.0
        %1950 = vmatprep.subr.mxu0 0.0
        %1951 = vmatpush1.xpose.msra.mxu0 0.0
        %1952 = vmatprep.subr.mxu0 0.0
        %1953 = vmatpush1.xpose.msra.mxu0 0.0
        %1954 = vmatprep.subr.mxu0 0.0
        %1955 = vmatpush1.xpose.msra.mxu0 0.0
        %1956 = vmatprep.subr.mxu0 0.0
        %1957 = vmatpush1.xpose.msra.mxu0 0.0
        %1958 = vmatprep.subr.mxu0 0.0
        %1959 = vmatpush1.xpose.msra.mxu0 0.0
        %1960 = vmatprep.subr.mxu0 0.0
        %1961 = vmatpush1.xpose.msra.mxu0 0.0
        %1962 = vmatprep.subr.mxu0 0.0
        %1963 = vmatpush1.xpose.msra.mxu0 0.0
        %1964 = vmatprep.subr.mxu0 0.0
        %1965 = vmatpush1.xpose.msra.mxu0 0.0
        %1966 = vmatprep.subr.mxu0 0.0
        %1967 = vmatpush1.xpose.msra.mxu0 0.0
        %1968 = vmatprep.subr.mxu0 0.0
        %1969 = vmatpush1.xpose.msra.mxu0 0.0
        %1970 = vmatprep.subr.mxu0 0.0
        %1971 = vmatpush1.xpose.msra.mxu0 0.0
        %1972 = vmatprep.mubr.f32.mxu0 0.0
        %1973 = vmatmul.mubr.f32.gmra.mrb[0].mxu0 %v1442
        %v1974 = vpop.f32.mrb[0].mxu0
        %v1975 = vadd.f32 0.0, %v1974
        %v1976 = vpop.f32.mrb[0].mxu0
        %1977 = vdwg.mxu0
        %v1978 = vmul.f32 %v1975, 0.088388346
        %v1979 = vadd.f32 %v1978, %v1208
        %v1980 = vsel %vm1822, %v1979, -inf
        %1981 = vmax.xlane.f32.xlu0 %v1980
        %v1982 = vpop.xlane.xlu0 %1981
        %v1983 = vsub.f32 %v1979, %v1982
        %v1984 = vmul.f32 %v1983, 1.442695
        %v1985 = vpow.pop %v1984
        %v1986 = vsel %vm1822, %v1985, 0.0
        %1987 = vadd.xlane.f32.xlu0 %v1986
        %v1988 = vpop.xlane.xlu0 %1987
        %v1989 = vrcp.pop %v1988
        %v1991 = vsel %vm1822, %v1985, 0
        %1993 = vmatprep.subr.mxu0 0.0
        %1994 = vmatpush1.msra.mxu0 %v1742
        %1995 = vmatprep.subr.mxu0 0.0
        %1996 = vmatpush1.msra.mxu0 %v1748
        %1997 = vmatprep.subr.mxu0 0.0
        %1998 = vmatpush1.msra.mxu0 0.0
        %1999 = vmatprep.subr.mxu0 0.0
        %2000 = vmatpush1.msra.mxu0 0.0
        %2001 = vmatprep.subr.mxu0 0.0
        %2002 = vmatpush1.msra.mxu0 0.0
        %2003 = vmatprep.subr.mxu0 0.0
        %2004 = vmatpush1.msra.mxu0 0.0
        %2005 = vmatprep.subr.mxu0 0.0
        %2006 = vmatpush1.msra.mxu0 0.0
        %2007 = vmatprep.subr.mxu0 0.0
        %2008 = vmatpush1.msra.mxu0 0.0
        %2009 = vmatprep.subr.mxu0 0.0
        %2010 = vmatpush1.msra.mxu0 0.0
        %2011 = vmatprep.subr.mxu0 0.0
        %2012 = vmatpush1.msra.mxu0 0.0
        %2013 = vmatprep.subr.mxu0 0.0
        %2014 = vmatpush1.msra.mxu0 0.0
        %2015 = vmatprep.subr.mxu0 0.0
        %2016 = vmatpush1.msra.mxu0 0.0
        %2017 = vmatprep.subr.mxu0 0.0
        %2018 = vmatpush1.msra.mxu0 0.0
        %2019 = vmatprep.subr.mxu0 0.0
        %2020 = vmatpush1.msra.mxu0 0.0
        %2021 = vmatprep.subr.mxu0 0.0
        %2022 = vmatpush1.msra.mxu0 0.0
        %2023 = vmatprep.subr.mxu0 0.0
        %2024 = vmatpush1.msra.mxu0 0.0
        %2025 = vmatprep.subr.mxu0 0.0
        %2026 = vmatpush1.msra.mxu0 0.0
        %2027 = vmatprep.subr.mxu0 0.0
        %2028 = vmatpush1.msra.mxu0 0.0
        %2029 = vmatprep.subr.mxu0 0.0
        %2030 = vmatpush1.msra.mxu0 0.0
        %2031 = vmatprep.subr.mxu0 0.0
        %2032 = vmatpush1.msra.mxu0 0.0
        %2033 = vmatprep.subr.mxu0 0.0
        %2034 = vmatpush1.msra.mxu0 0.0
        %2035 = vmatprep.subr.mxu0 0.0
        %2036 = vmatpush1.msra.mxu0 0.0
        %2037 = vmatprep.subr.mxu0 0.0
        %2038 = vmatpush1.msra.mxu0 0.0
        %2039 = vmatprep.subr.mxu0 0.0
        %2040 = vmatpush1.msra.mxu0 0.0
        %2041 = vmatprep.subr.mxu0 0.0
        %2042 = vmatpush1.msra.mxu0 0.0
        %2043 = vmatprep.subr.mxu0 0.0
        %2044 = vmatpush1.msra.mxu0 0.0
        %2045 = vmatprep.subr.mxu0 0.0
        %2046 = vmatpush1.msra.mxu0 0.0
        %2047 = vmatprep.subr.mxu0 0.0
        %2048 = vmatpush1.msra.mxu0 0.0
        %2049 = vmatprep.subr.mxu0 0.0
        %2050 = vmatpush1.msra.mxu0 0.0
        %2051 = vmatprep.subr.mxu0 0.0
        %2052 = vmatpush1.msra.mxu0 0.0
        %2053 = vmatprep.subr.mxu0 0.0
        %2054 = vmatpush1.msra.mxu0 0.0
        %2055 = vmatprep.subr.mxu0 0.0
        %2056 = vmatpush1.msra.mxu0 0.0
        %2057 = vmatprep.mubr.f32.mxu0 0.0
        %2058 = vmatmul.mubr.f32.gmra.mrb[0].mxu0 %v1991
        %v2059 = vpop.f32.mrb[0].mxu0
        %v2060 = vadd.f32 0.0, %v2059
        %v2061 = vpop.f32.mrb[0].mxu0
        %2062 = vdwg.mxu0
        %v2063 = vmul.f32 %v2060, %v1989
        %2064 = vst [vmem:[#allocation2 + $0x8] sm:$0xff] %v2063
        %v2065 = vld [vmem:[#allocation2] sm:$0xff]
        %v2066 = vld [vmem:[#allocation2 + $0x8] sm:$0xff]
        %v2067 = vld [vmem:[#allocation14] sm:$0xff]
        %v2068 = vld [vmem:[#allocation14 + $0x8] sm:$0xff]
        %v2069 = vld [vmem:[#allocation14 + $0x10] sm:$0xff]
        %v2070 = vld [vmem:[#allocation14 + $0x18] sm:$0xff]
        %v2071 = vld [vmem:[#allocation14 + $0x20] sm:$0xff]
        %v2072 = vld [vmem:[#allocation14 + $0x28] sm:$0xff]
        %v2073 = vld [vmem:[#allocation14 + $0x30] sm:$0xff]
        %v2074 = vld [vmem:[#allocation14 + $0x38] sm:$0xff]
        %v2075 = vld [vmem:[#allocation14 + $0x40] sm:$0xff]
        %v2076 = vld [vmem:[#allocation14 + $0x48] sm:$0xff]
        %v2077 = vld [vmem:[#allocation14 + $0x50] sm:$0xff]
        %v2078 = vld [vmem:[#allocation14 + $0x58] sm:$0xff]
        %v2079 = vld [vmem:[#allocation14 + $0x60] sm:$0xff]
        %v2080 = vld [vmem:[#allocation14 + $0x68] sm:$0xff]
        %v2081 = vld [vmem:[#allocation14 + $0x70] sm:$0xff]
        %v2082 = vld [vmem:[#allocation14 + $0x78] sm:$0xff]
        %v2083 = vld [vmem:[#allocation14 + $0x80] sm:$0xff]
        %v2084 = vld [vmem:[#allocation14 + $0x88] sm:$0xff]
        %v2085 = vld [vmem:[#allocation14 + $0x90] sm:$0xff]
        %v2086 = vld [vmem:[#allocation14 + $0x98] sm:$0xff]
        %v2087 = vld [vmem:[#allocation14 + $0xa0] sm:$0xff]
        %v2088 = vld [vmem:[#allocation14 + $0xa8] sm:$0xff]
        %v2089 = vld [vmem:[#allocation14 + $0xb0] sm:$0xff]
        %v2090 = vld [vmem:[#allocation14 + $0xb8] sm:$0xff]
        %v2091 = vld [vmem:[#allocation14 + $0xc0] sm:$0xff]
        %v2092 = vld [vmem:[#allocation14 + $0xc8] sm:$0xff]
        %v2093 = vld [vmem:[#allocation14 + $0xd0] sm:$0xff]
        %v2094 = vld [vmem:[#allocation14 + $0xd8] sm:$0xff]
        %v2095 = vld [vmem:[#allocation14 + $0xe0] sm:$0xff]
        %v2096 = vld [vmem:[#allocation14 + $0xe8] sm:$0xff]
        %v2097 = vld [vmem:[#allocation14 + $0xf0] sm:$0xff]
        %v2098 = vld [vmem:[#allocation14 + $0xf8] sm:$0xff]
        %v2099 = vld [vmem:[#allocation14 + $0x100] sm:$0xff]
        %v2100 = vld [vmem:[#allocation14 + $0x108] sm:$0xff]
        %v2101 = vld [vmem:[#allocation14 + $0x110] sm:$0xff]
        %v2102 = vld [vmem:[#allocation14 + $0x118] sm:$0xff]
        %v2103 = vld [vmem:[#allocation14 + $0x120] sm:$0xff]
        %v2104 = vld [vmem:[#allocation14 + $0x128] sm:$0xff]
        %v2105 = vld [vmem:[#allocation14 + $0x130] sm:$0xff]
        %v2106 = vld [vmem:[#allocation14 + $0x138] sm:$0xff]
        %v2107 = vld [vmem:[#allocation14 + $0x140] sm:$0xff]
        %v2108 = vld [vmem:[#allocation14 + $0x148] sm:$0xff]
        %v2109 = vld [vmem:[#allocation14 + $0x150] sm:$0xff]
        %v2110 = vld [vmem:[#allocation14 + $0x158] sm:$0xff]
        %v2111 = vld [vmem:[#allocation14 + $0x160] sm:$0xff]
        %v2112 = vld [vmem:[#allocation14 + $0x168] sm:$0xff]
        %v2113 = vld [vmem:[#allocation14 + $0x170] sm:$0xff]
        %v2114 = vld [vmem:[#allocation14 + $0x178] sm:$0xff]
        %v2115 = vld [vmem:[#allocation14 + $0x180] sm:$0xff]
        %v2116 = vld [vmem:[#allocation14 + $0x188] sm:$0xff]
        %v2117 = vld [vmem:[#allocation14 + $0x190] sm:$0xff]
        %v2118 = vld [vmem:[#allocation14 + $0x198] sm:$0xff]
        %v2119 = vld [vmem:[#allocation14 + $0x1a0] sm:$0xff]
        %v2120 = vld [vmem:[#allocation14 + $0x1a8] sm:$0xff]
        %v2121 = vld [vmem:[#allocation14 + $0x1b0] sm:$0xff]
        %v2122 = vld [vmem:[#allocation14 + $0x1b8] sm:$0xff]
        %v2123 = vld [vmem:[#allocation14 + $0x1c0] sm:$0xff]
        %v2124 = vld [vmem:[#allocation14 + $0x1c8] sm:$0xff]
        %v2125 = vld [vmem:[#allocation14 + $0x1d0] sm:$0xff]
        %v2126 = vld [vmem:[#allocation14 + $0x1d8] sm:$0xff]
        %v2127 = vld [vmem:[#allocation14 + $0x1e0] sm:$0xff]
        %v2128 = vld [vmem:[#allocation14 + $0x1e8] sm:$0xff]
        %v2129 = vld [vmem:[#allocation14 + $0x1f0] sm:$0xff]
        %v2130 = vld [vmem:[#allocation14 + $0x1f8] sm:$0xff]
        %2131 = vmatprep.subr.mxu0 %v2068
        %2132 = vmatpush1.msra.mxu0 %v2067
        %2133 = vmatprep.subr.mxu0 %v2070
        %2134 = vmatpush1.msra.mxu0 %v2069
        %2135 = vmatprep.subr.mxu0 %v2072
        %2136 = vmatpush1.msra.mxu0 %v2071
        %2137 = vmatprep.subr.mxu0 %v2074
        %2138 = vmatpush1.msra.mxu0 %v2073
        %2139 = vmatprep.subr.mxu0 %v2076
        %2140 = vmatpush1.msra.mxu0 %v2075
        %2141 = vmatprep.subr.mxu0 %v2078
        %2142 = vmatpush1.msra.mxu0 %v2077
        %2143 = vmatprep.subr.mxu0 %v2080
        %2144 = vmatpush1.msra.mxu0 %v2079
        %2145 = vmatprep.subr.mxu0 %v2082
        %2146 = vmatpush1.msra.mxu0 %v2081
        %2147 = vmatprep.subr.mxu0 %v2084
        %2148 = vmatpush1.msra.mxu0 %v2083
        %2149 = vmatprep.subr.mxu0 %v2086
        %2150 = vmatpush1.msra.mxu0 %v2085
        %2151 = vmatprep.subr.mxu0 %v2088
        %2152 = vmatpush1.msra.mxu0 %v2087
        %2153 = vmatprep.subr.mxu0 %v2090
        %2154 = vmatpush1.msra.mxu0 %v2089
        %2155 = vmatprep.subr.mxu0 %v2092
        %2156 = vmatpush1.msra.mxu0 %v2091
        %2157 = vmatprep.subr.mxu0 %v2094
        %2158 = vmatpush1.msra.mxu0 %v2093
        %2159 = vmatprep.subr.mxu0 %v2096
        %2160 = vmatpush1.msra.mxu0 %v2095
        %2161 = vmatprep.subr.mxu0 %v2098
        %2162 = vmatpush1.msra.mxu0 %v2097
        %2163 = vmatprep.subr.mxu0 %v2100
        %2164 = vmatpush1.msra.mxu0 %v2099
        %2165 = vmatprep.subr.mxu0 %v2102
        %2166 = vmatpush1.msra.mxu0 %v2101
        %2167 = vmatprep.subr.mxu0 %v2104
        %2168 = vmatpush1.msra.mxu0 %v2103
        %2169 = vmatprep.subr.mxu0 %v2106
        %2170 = vmatpush1.msra.mxu0 %v2105
        %2171 = vmatprep.subr.mxu0 %v2108
        %2172 = vmatpush1.msra.mxu0 %v2107
        %2173 = vmatprep.subr.mxu0 %v2110
        %2174 = vmatpush1.msra.mxu0 %v2109
        %2175 = vmatprep.subr.mxu0 %v2112
        %2176 = vmatpush1.msra.mxu0 %v2111
        %2177 = vmatprep.subr.mxu0 %v2114
        %2178 = vmatpush1.msra.mxu0 %v2113
        %2179 = vmatprep.subr.mxu0 %v2116
        %2180 = vmatpush1.msra.mxu0 %v2115
        %2181 = vmatprep.subr.mxu0 %v2118
        %2182 = vmatpush1.msra.mxu0 %v2117
        %2183 = vmatprep.subr.mxu0 %v2120
        %2184 = vmatpush1.msra.mxu0 %v2119
        %2185 = vmatprep.subr.mxu0 %v2122
        %2186 = vmatpush1.msra.mxu0 %v2121
        %2187 = vmatprep.subr.mxu0 %v2124
        %2188 = vmatpush1.msra.mxu0 %v2123
        %2189 = vmatprep.subr.mxu0 %v2126
        %2190 = vmatpush1.msra.mxu0 %v2125
        %2191 = vmatprep.subr.mxu0 %v2128
        %2192 = vmatpush1.msra.mxu0 %v2127
        %2193 = vmatprep.subr.mxu0 %v2130
        %2194 = vmatpush1.msra.mxu0 %v2129
        %2195 = vmatprep.mubr.f32.mxu0 %v2066
        %2196 = vmatmul.mubr.f32.gmra.mrb[0].mxu0 %v2065
        %v2197 = vpop.f32.mrb[0].mxu0
        %v2198 = vadd.f32 0.0, %v2197
        %v2199 = vpop.f32.mrb[0].mxu0
        %v2200 = vadd.f32 0.0, %v2199
        %2201 = vdwg.mxu0
        %v2202 = vadd.f32 %v1204, %v2198
        %v2203 = vadd.f32 %v1205, %v2200
        %v2204 = vld [vmem:[%s27] sm:$0x3]
        %v2206 = vlaneseq
        %v2207 = vshrl.u32 %v2206, 7
        %v2208 = vsub.s32 0, %v2207
        %v2209 = vrot.slane %v2204, %v2208
        %v2210 = vlaneseq
        %v2211 = vshrl.u32 %v2210, 7
        %v2212 = vsub.s32 1, %v2211
        %v2213 = vrot.slane %v2204, %v2212
        %v2216 = vadd.f32 %v2202, %v2209
        %v2217 = vadd.f32 %v2203, %v2213
        %v2218 = vld [vmem:[%s29] sm:$0x3]
        %v2219 = vld [vmem:[%s31] sm:$0x3]
        %v2220 = vadd.f32 %v2216, %v2217
        %2221 = vadd.xlane.f32.xlu0 %v2220
        %v2222 = vpop.xlane.xlu0 %2221
        %v2223 = vmul.f32 %v2222, %v1220
        %v2224 = vsub.f32 %v2216, %v2223
        %v2225 = vsub.f32 %v2217, %v2223
        %v2226 = vmul.f32 %v2224, %v2224
        %v2227 = vmul.f32 %v2225, %v2225
        %v2228 = vadd.f32 %v2226, %v2227
        %2229 = vadd.xlane.f32.xlu0 %v2228
        %v2230 = vpop.xlane.xlu0 %2229
        %v2231 = vmul.f32 %v2230, %v1220
        %v2232 = vadd.f32 %v2231, 1e-05
        %v2233 = vrsqrt.pop %v2232
        %v2234 = vmul.f32 %v2224, %v2233
        %v2235 = vmul.f32 %v2225, %v2233
        %v2237 = vlaneseq
        %v2238 = vshrl.u32 %v2237, 7
        %v2239 = vsub.s32 0, %v2238
        %v2240 = vrot.slane %v2218, %v2239
        %v2241 = vlaneseq
        %v2242 = vshrl.u32 %v2241, 7
        %v2243 = vsub.s32 1, %v2242
        %v2244 = vrot.slane %v2218, %v2243
        %v2247 = vmul.f32 %v2234, %v2240
        %v2248 = vmul.f32 %v2235, %v2244
        %v2250 = vlaneseq
        %v2251 = vshrl.u32 %v2250, 7
        %v2252 = vsub.s32 0, %v2251
        %v2253 = vrot.slane %v2219, %v2252
        %v2254 = vlaneseq
        %v2255 = vshrl.u32 %v2254, 7
        %v2256 = vsub.s32 1, %v2255
        %v2257 = vrot.slane %v2219, %v2256
        %v2260 = vadd.f32 %v2247, %v2253
        %v2261 = vadd.f32 %v2248, %v2257
        %v2262 = vld [vmem:[%s1052] sm:$0xff]
        %v2263 = vld [vmem:[%s1052 + $0x8] sm:$0xff]
        %v2264 = vld [vmem:[#allocation15] sm:$0xff]
        %v2265 = vld [vmem:[#allocation15 + $0x8] sm:$0xff]
        %v2266 = vld [vmem:[#allocation15 + $0x10] sm:$0xff]
        %v2267 = vld [vmem:[#allocation15 + $0x18] sm:$0xff]
        %v2268 = vld [vmem:[#allocation15 + $0x20] sm:$0xff]
        %v2269 = vld [vmem:[#allocation15 + $0x28] sm:$0xff]
        %v2270 = vld [vmem:[#allocation15 + $0x30] sm:$0xff]
        %v2271 = vld [vmem:[#allocation15 + $0x38] sm:$0xff]
        %v2272 = vld [vmem:[#allocation15 + $0x40] sm:$0xff]
        %v2273 = vld [vmem:[#allocation15 + $0x48] sm:$0xff]
        %v2274 = vld [vmem:[#allocation15 + $0x50] sm:$0xff]
        %v2275 = vld [vmem:[#allocation15 + $0x58] sm:$0xff]
        %v2276 = vld [vmem:[#allocation15 + $0x60] sm:$0xff]
        %v2277 = vld [vmem:[#allocation15 + $0x68] sm:$0xff]
        %v2278 = vld [vmem:[#allocation15 + $0x70] sm:$0xff]
        %v2279 = vld [vmem:[#allocation15 + $0x78] sm:$0xff]
        %v2280 = vld [vmem:[#allocation15 + $0x80] sm:$0xff]
        %v2281 = vld [vmem:[#allocation15 + $0x88] sm:$0xff]
        %v2282 = vld [vmem:[#allocation15 + $0x90] sm:$0xff]
        %v2283 = vld [vmem:[#allocation15 + $0x98] sm:$0xff]
        %v2284 = vld [vmem:[#allocation15 + $0xa0] sm:$0xff]
        %v2285 = vld [vmem:[#allocation15 + $0xa8] sm:$0xff]
        %v2286 = vld [vmem:[#allocation15 + $0xb0] sm:$0xff]
        %v2287 = vld [vmem:[#allocation15 + $0xb8] sm:$0xff]
        %v2288 = vld [vmem:[#allocation15 + $0xc0] sm:$0xff]
        %v2289 = vld [vmem:[#allocation15 + $0xc8] sm:$0xff]
        %v2290 = vld [vmem:[#allocation15 + $0xd0] sm:$0xff]
        %v2291 = vld [vmem:[#allocation15 + $0xd8] sm:$0xff]
        %v2292 = vld [vmem:[#allocation15 + $0xe0] sm:$0xff]
        %v2293 = vld [vmem:[#allocation15 + $0xe8] sm:$0xff]
        %v2294 = vld [vmem:[#allocation15 + $0xf0] sm:$0xff]
        %v2295 = vld [vmem:[#allocation15 + $0xf8] sm:$0xff]
        %v2296 = vld [vmem:[#allocation15 + $0x100] sm:$0xff]
        %v2297 = vld [vmem:[#allocation15 + $0x108] sm:$0xff]
        %v2298 = vld [vmem:[#allocation15 + $0x110] sm:$0xff]
        %v2299 = vld [vmem:[#allocation15 + $0x118] sm:$0xff]
        %v2300 = vld [vmem:[#allocation15 + $0x120] sm:$0xff]
        %v2301 = vld [vmem:[#allocation15 + $0x128] sm:$0xff]
        %v2302 = vld [vmem:[#allocation15 + $0x130] sm:$0xff]
        %v2303 = vld [vmem:[#allocation15 + $0x138] sm:$0xff]
        %v2304 = vld [vmem:[#allocation15 + $0x140] sm:$0xff]
        %v2305 = vld [vmem:[#allocation15 + $0x148] sm:$0xff]
        %v2306 = vld [vmem:[#allocation15 + $0x150] sm:$0xff]
        %v2307 = vld [vmem:[#allocation15 + $0x158] sm:$0xff]
        %v2308 = vld [vmem:[#allocation15 + $0x160] sm:$0xff]
        %v2309 = vld [vmem:[#allocation15 + $0x168] sm:$0xff]
        %v2310 = vld [vmem:[#allocation15 + $0x170] sm:$0xff]
        %v2311 = vld [vmem:[#allocation15 + $0x178] sm:$0xff]
        %v2312 = vld [vmem:[#allocation15 + $0x180] sm:$0xff]
        %v2313 = vld [vmem:[#allocation15 + $0x188] sm:$0xff]
        %v2314 = vld [vmem:[#allocation15 + $0x190] sm:$0xff]
        %v2315 = vld [vmem:[#allocation15 + $0x198] sm:$0xff]
        %v2316 = vld [vmem:[#allocation15 + $0x1a0] sm:$0xff]
        %v2317 = vld [vmem:[#allocation15 + $0x1a8] sm:$0xff]
        %v2318 = vld [vmem:[#allocation15 + $0x1b0] sm:$0xff]
        %v2319 = vld [vmem:[#allocation15 + $0x1b8] sm:$0xff]
        %v2320 = vld [vmem:[#allocation15 + $0x1c0] sm:$0xff]
        %v2321 = vld [vmem:[#allocation15 + $0x1c8] sm:$0xff]
        %v2322 = vld [vmem:[#allocation15 + $0x1d0] sm:$0xff]
        %v2323 = vld [vmem:[#allocation15 + $0x1d8] sm:$0xff]
        %v2324 = vld [vmem:[#allocation15 + $0x1e0] sm:$0xff]
        %v2325 = vld [vmem:[#allocation15 + $0x1e8] sm:$0xff]
        %v2326 = vld [vmem:[#allocation15 + $0x1f0] sm:$0xff]
        %v2327 = vld [vmem:[#allocation15 + $0x1f8] sm:$0xff]
        %v2328 = vld [vmem:[%s35] sm:$0x3]
        %v2330 = vlaneseq
        %v2331 = vshrl.u32 %v2330, 7
        %v2332 = vsub.s32 0, %v2331
        %v2333 = vrot.slane %v2328, %v2332
        %v2334 = vlaneseq
        %v2335 = vshrl.u32 %v2334, 7
        %v2336 = vsub.s32 1, %v2335
        %v2337 = vrot.slane %v2328, %v2336
        %2340 = vmatprep.subr.mxu0 %v2265
        %2341 = vmatpush1.msra.mxu0 %v2264
        %2342 = vmatprep.subr.mxu0 %v2267
        %2343 = vmatpush1.msra.mxu0 %v2266
        %2344 = vmatprep.subr.mxu0 %v2269
        %2345 = vmatpush1.msra.mxu0 %v2268
        %2346 = vmatprep.subr.mxu0 %v2271
        %2347 = vmatpush1.msra.mxu0 %v2270
        %2348 = vmatprep.subr.mxu0 %v2273
        %2349 = vmatpush1.msra.mxu0 %v2272
        %2350 = vmatprep.subr.mxu0 %v2275
        %2351 = vmatpush1.msra.mxu0 %v2274
        %2352 = vmatprep.subr.mxu0 %v2277
        %2353 = vmatpush1.msra.mxu0 %v2276
        %2354 = vmatprep.subr.mxu0 %v2279
        %2355 = vmatpush1.msra.mxu0 %v2278
        %2356 = vmatprep.subr.mxu0 %v2281
        %2357 = vmatpush1.msra.mxu0 %v2280
        %2358 = vmatprep.subr.mxu0 %v2283
        %2359 = vmatpush1.msra.mxu0 %v2282
        %2360 = vmatprep.subr.mxu0 %v2285
        %2361 = vmatpush1.msra.mxu0 %v2284
        %2362 = vmatprep.subr.mxu0 %v2287
        %2363 = vmatpush1.msra.mxu0 %v2286
        %2364 = vmatprep.subr.mxu0 %v2289
        %2365 = vmatpush1.msra.mxu0 %v2288
        %2366 = vmatprep.subr.mxu0 %v2291
        %2367 = vmatpush1.msra.mxu0 %v2290
        %2368 = vmatprep.subr.mxu0 %v2293
        %2369 = vmatpush1.msra.mxu0 %v2292
        %2370 = vmatprep.subr.mxu0 %v2295
        %2371 = vmatpush1.msra.mxu0 %v2294
        %2372 = vmatprep.subr.mxu0 %v2297
        %2373 = vmatpush1.msra.mxu0 %v2296
        %2374 = vmatprep.subr.mxu0 %v2299
        %2375 = vmatpush1.msra.mxu0 %v2298
        %2376 = vmatprep.subr.mxu0 %v2301
        %2377 = vmatpush1.msra.mxu0 %v2300
        %2378 = vmatprep.subr.mxu0 %v2303
        %2379 = vmatpush1.msra.mxu0 %v2302
        %2380 = vmatprep.subr.mxu0 %v2305
        %2381 = vmatpush1.msra.mxu0 %v2304
        %2382 = vmatprep.subr.mxu0 %v2307
        %2383 = vmatpush1.msra.mxu0 %v2306
        %2384 = vmatprep.subr.mxu0 %v2309
        %2385 = vmatpush1.msra.mxu0 %v2308
        %2386 = vmatprep.subr.mxu0 %v2311
        %2387 = vmatpush1.msra.mxu0 %v2310
        %2388 = vmatprep.subr.mxu0 %v2313
        %2389 = vmatpush1.msra.mxu0 %v2312
        %2390 = vmatprep.subr.mxu0 %v2315
        %2391 = vmatpush1.msra.mxu0 %v2314
        %2392 = vmatprep.subr.mxu0 %v2317
        %2393 = vmatpush1.msra.mxu0 %v2316
        %2394 = vmatprep.subr.mxu0 %v2319
        %2395 = vmatpush1.msra.mxu0 %v2318
        %2396 = vmatprep.subr.mxu0 %v2321
        %2397 = vmatpush1.msra.mxu0 %v2320
        %2398 = vmatprep.subr.mxu0 %v2323
        %2399 = vmatpush1.msra.mxu0 %v2322
        %2400 = vmatprep.subr.mxu0 %v2325
        %2401 = vmatpush1.msra.mxu0 %v2324
        %2402 = vmatprep.subr.mxu0 %v2327
        %2403 = vmatpush1.msra.mxu0 %v2326
        %2404 = vmatprep.mubr.f32.mxu0 %v2261
        %2405 = vmatmul.mubr.f32.gmra.mrb[0].mxu0 %v2260
        %v2406 = vpop.f32.mrb[0].mxu0
        %v2407 = vadd.f32 %v2333, %v2406
        %v2408 = vpop.f32.mrb[0].mxu0
        %v2409 = vadd.f32 %v2337, %v2408
        %2410 = vdwg.mxu0
        %v2411 = vld [vmem:[#allocation17] sm:$0xff]
        %v2412 = vld [vmem:[#allocation17 + $0x8] sm:$0xff]
        %v2413 = vld [vmem:[#allocation17 + $0x10] sm:$0xff]
        %v2414 = vld [vmem:[#allocation17 + $0x18] sm:$0xff]
        %v2415 = vld [vmem:[#allocation17 + $0x20] sm:$0xff]
        %v2416 = vld [vmem:[#allocation17 + $0x28] sm:$0xff]
        %v2417 = vld [vmem:[#allocation17 + $0x30] sm:$0xff]
        %v2418 = vld [vmem:[#allocation17 + $0x38] sm:$0xff]
        %v2419 = vld [vmem:[#allocation17 + $0x40] sm:$0xff]
        %v2420 = vld [vmem:[#allocation17 + $0x48] sm:$0xff]
        %v2421 = vld [vmem:[#allocation17 + $0x50] sm:$0xff]
        %v2422 = vld [vmem:[#allocation17 + $0x58] sm:$0xff]
        %v2423 = vld [vmem:[#allocation17 + $0x60] sm:$0xff]
        %v2424 = vld [vmem:[#allocation17 + $0x68] sm:$0xff]
        %v2425 = vld [vmem:[#allocation17 + $0x70] sm:$0xff]
        %v2426 = vld [vmem:[#allocation17 + $0x78] sm:$0xff]
        %v2427 = vld [vmem:[#allocation17 + $0x80] sm:$0xff]
        %v2428 = vld [vmem:[#allocation17 + $0x88] sm:$0xff]
        %v2429 = vld [vmem:[#allocation17 + $0x90] sm:$0xff]
        %v2430 = vld [vmem:[#allocation17 + $0x98] sm:$0xff]
        %v2431 = vld [vmem:[#allocation17 + $0xa0] sm:$0xff]
        %v2432 = vld [vmem:[#allocation17 + $0xa8] sm:$0xff]
        %v2433 = vld [vmem:[#allocation17 + $0xb0] sm:$0xff]
        %v2434 = vld [vmem:[#allocation17 + $0xb8] sm:$0xff]
        %v2435 = vld [vmem:[#allocation17 + $0xc0] sm:$0xff]
        %v2436 = vld [vmem:[#allocation17 + $0xc8] sm:$0xff]
        %v2437 = vld [vmem:[#allocation17 + $0xd0] sm:$0xff]
        %v2438 = vld [vmem:[#allocation17 + $0xd8] sm:$0xff]
        %v2439 = vld [vmem:[#allocation17 + $0xe0] sm:$0xff]
        %v2440 = vld [vmem:[#allocation17 + $0xe8] sm:$0xff]
        %v2441 = vld [vmem:[#allocation17 + $0xf0] sm:$0xff]
        %v2442 = vld [vmem:[#allocation17 + $0xf8] sm:$0xff]
        %v2443 = vld [vmem:[#allocation17 + $0x100] sm:$0xff]
        %v2444 = vld [vmem:[#allocation17 + $0x108] sm:$0xff]
        %v2445 = vld [vmem:[#allocation17 + $0x110] sm:$0xff]
        %v2446 = vld [vmem:[#allocation17 + $0x118] sm:$0xff]
        %v2447 = vld [vmem:[#allocation17 + $0x120] sm:$0xff]
        %v2448 = vld [vmem:[#allocation17 + $0x128] sm:$0xff]
        %v2449 = vld [vmem:[#allocation17 + $0x130] sm:$0xff]
        %v2450 = vld [vmem:[#allocation17 + $0x138] sm:$0xff]
        %v2451 = vld [vmem:[#allocation17 + $0x140] sm:$0xff]
        %v2452 = vld [vmem:[#allocation17 + $0x148] sm:$0xff]
        %v2453 = vld [vmem:[#allocation17 + $0x150] sm:$0xff]
        %v2454 = vld [vmem:[#allocation17 + $0x158] sm:$0xff]
        %v2455 = vld [vmem:[#allocation17 + $0x160] sm:$0xff]
        %v2456 = vld [vmem:[#allocation17 + $0x168] sm:$0xff]
        %v2457 = vld [vmem:[#allocation17 + $0x170] sm:$0xff]
        %v2458 = vld [vmem:[#allocation17 + $0x178] sm:$0xff]
        %v2459 = vld [vmem:[#allocation17 + $0x180] sm:$0xff]
        %v2460 = vld [vmem:[#allocation17 + $0x188] sm:$0xff]
        %v2461 = vld [vmem:[#allocation17 + $0x190] sm:$0xff]
        %v2462 = vld [vmem:[#allocation17 + $0x198] sm:$0xff]
        %v2463 = vld [vmem:[#allocation17 + $0x1a0] sm:$0xff]
        %v2464 = vld [vmem:[#allocation17 + $0x1a8] sm:$0xff]
        %v2465 = vld [vmem:[#allocation17 + $0x1b0] sm:$0xff]
        %v2466 = vld [vmem:[#allocation17 + $0x1b8] sm:$0xff]
        %v2467 = vld [vmem:[#allocation17 + $0x1c0] sm:$0xff]
        %v2468 = vld [vmem:[#allocation17 + $0x1c8] sm:$0xff]
        %v2469 = vld [vmem:[#allocation17 + $0x1d0] sm:$0xff]
        %v2470 = vld [vmem:[#allocation17 + $0x1d8] sm:$0xff]
        %v2471 = vld [vmem:[#allocation17 + $0x1e0] sm:$0xff]
        %v2472 = vld [vmem:[#allocation17 + $0x1e8] sm:$0xff]
        %v2473 = vld [vmem:[#allocation17 + $0x1f0] sm:$0xff]
        %v2474 = vld [vmem:[#allocation17 + $0x1f8] sm:$0xff]
        %v2475 = vld [vmem:[%s39] sm:$0x3]
        %v2477 = vlaneseq
        %v2478 = vshrl.u32 %v2477, 7
        %v2479 = vsub.s32 0, %v2478
        %v2480 = vrot.slane %v2475, %v2479
        %v2481 = vlaneseq
        %v2482 = vshrl.u32 %v2481, 7
        %v2483 = vsub.s32 1, %v2482
        %v2484 = vrot.slane %v2475, %v2483
        %2487 = vmatprep.subr.mxu0 %v2412
        %2488 = vmatpush1.msra.mxu0 %v2411
        %2489 = vmatprep.subr.mxu0 %v2414
        %2490 = vmatpush1.msra.mxu0 %v2413
        %2491 = vmatprep.subr.mxu0 %v2416
        %2492 = vmatpush1.msra.mxu0 %v2415
        %2493 = vmatprep.subr.mxu0 %v2418
        %2494 = vmatpush1.msra.mxu0 %v2417
        %2495 = vmatprep.subr.mxu0 %v2420
        %2496 = vmatpush1.msra.mxu0 %v2419
        %2497 = vmatprep.subr.mxu0 %v2422
        %2498 = vmatpush1.msra.mxu0 %v2421
        %2499 = vmatprep.subr.mxu0 %v2424
        %2500 = vmatpush1.msra.mxu0 %v2423
        %2501 = vmatprep.subr.mxu0 %v2426
        %2502 = vmatpush1.msra.mxu0 %v2425
        %2503 = vmatprep.subr.mxu0 %v2428
        %2504 = vmatpush1.msra.mxu0 %v2427
        %2505 = vmatprep.subr.mxu0 %v2430
        %2506 = vmatpush1.msra.mxu0 %v2429
        %2507 = vmatprep.subr.mxu0 %v2432
        %2508 = vmatpush1.msra.mxu0 %v2431
        %2509 = vmatprep.subr.mxu0 %v2434
        %2510 = vmatpush1.msra.mxu0 %v2433
        %2511 = vmatprep.subr.mxu0 %v2436
        %2512 = vmatpush1.msra.mxu0 %v2435
        %2513 = vmatprep.subr.mxu0 %v2438
        %2514 = vmatpush1.msra.mxu0 %v2437
        %2515 = vmatprep.subr.mxu0 %v2440
        %2516 = vmatpush1.msra.mxu0 %v2439
        %2517 = vmatprep.subr.mxu0 %v2442
        %2518 = vmatpush1.msra.mxu0 %v2441
        %2519 = vmatprep.subr.mxu0 %v2444
        %2520 = vmatpush1.msra.mxu0 %v2443
        %2521 = vmatprep.subr.mxu0 %v2446
        %2522 = vmatpush1.msra.mxu0 %v2445
        %2523 = vmatprep.subr.mxu0 %v2448
        %2524 = vmatpush1.msra.mxu0 %v2447
        %2525 = vmatprep.subr.mxu0 %v2450
        %2526 = vmatpush1.msra.mxu0 %v2449
        %2527 = vmatprep.subr.mxu0 %v2452
        %2528 = vmatpush1.msra.mxu0 %v2451
        %2529 = vmatprep.subr.mxu0 %v2454
        %2530 = vmatpush1.msra.mxu0 %v2453
        %2531 = vmatprep.subr.mxu0 %v2456
        %2532 = vmatpush1.msra.mxu0 %v2455
        %2533 = vmatprep.subr.mxu0 %v2458
        %2534 = vmatpush1.msra.mxu0 %v2457
        %2535 = vmatprep.subr.mxu0 %v2460
        %2536 = vmatpush1.msra.mxu0 %v2459
        %2537 = vmatprep.subr.mxu0 %v2462
        %2538 = vmatpush1.msra.mxu0 %v2461
        %2539 = vmatprep.subr.mxu0 %v2464
        %2540 = vmatpush1.msra.mxu0 %v2463
        %2541 = vmatprep.subr.mxu0 %v2466
        %2542 = vmatpush1.msra.mxu0 %v2465
        %2543 = vmatprep.subr.mxu0 %v2468
        %2544 = vmatpush1.msra.mxu0 %v2467
        %2545 = vmatprep.subr.mxu0 %v2470
        %2546 = vmatpush1.msra.mxu0 %v2469
        %2547 = vmatprep.subr.mxu0 %v2472
        %2548 = vmatpush1.msra.mxu0 %v2471
        %2549 = vmatprep.subr.mxu0 %v2474
        %2550 = vmatpush1.msra.mxu0 %v2473
        %2551 = vmatprep.mubr.f32.mxu0 %v2263
        %2552 = vmatmul.mubr.f32.gmra.mrb[0].mxu0 %v2262
        %v2553 = vpop.f32.mrb[0].mxu0
        %v2554 = vadd.f32 %v2480, %v2553
        %v2555 = vpop.f32.mrb[0].mxu0
        %v2556 = vadd.f32 %v2484, %v2555
        %2557 = vdwg.mxu0
        %v2558 = vld [vmem:[#allocation18] sm:$0xff]
        %v2559 = vld [vmem:[#allocation18 + $0x8] sm:$0xff]
        %v2560 = vld [vmem:[#allocation18 + $0x10] sm:$0xff]
        %v2561 = vld [vmem:[#allocation18 + $0x18] sm:$0xff]
        %v2562 = vld [vmem:[#allocation18 + $0x20] sm:$0xff]
        %v2563 = vld [vmem:[#allocation18 + $0x28] sm:$0xff]
        %v2564 = vld [vmem:[#allocation18 + $0x30] sm:$0xff]
        %v2565 = vld [vmem:[#allocation18 + $0x38] sm:$0xff]
        %v2566 = vld [vmem:[#allocation18 + $0x40] sm:$0xff]
        %v2567 = vld [vmem:[#allocation18 + $0x48] sm:$0xff]
        %v2568 = vld [vmem:[#allocation18 + $0x50] sm:$0xff]
        %v2569 = vld [vmem:[#allocation18 + $0x58] sm:$0xff]
        %v2570 = vld [vmem:[#allocation18 + $0x60] sm:$0xff]
        %v2571 = vld [vmem:[#allocation18 + $0x68] sm:$0xff]
        %v2572 = vld [vmem:[#allocation18 + $0x70] sm:$0xff]
        %v2573 = vld [vmem:[#allocation18 + $0x78] sm:$0xff]
        %v2574 = vld [vmem:[#allocation18 + $0x80] sm:$0xff]
        %v2575 = vld [vmem:[#allocation18 + $0x88] sm:$0xff]
        %v2576 = vld [vmem:[#allocation18 + $0x90] sm:$0xff]
        %v2577 = vld [vmem:[#allocation18 + $0x98] sm:$0xff]
        %v2578 = vld [vmem:[#allocation18 + $0xa0] sm:$0xff]
        %v2579 = vld [vmem:[#allocation18 + $0xa8] sm:$0xff]
        %v2580 = vld [vmem:[#allocation18 + $0xb0] sm:$0xff]
        %v2581 = vld [vmem:[#allocation18 + $0xb8] sm:$0xff]
        %v2582 = vld [vmem:[#allocation18 + $0xc0] sm:$0xff]
        %v2583 = vld [vmem:[#allocation18 + $0xc8] sm:$0xff]
        %v2584 = vld [vmem:[#allocation18 + $0xd0] sm:$0xff]
        %v2585 = vld [vmem:[#allocation18 + $0xd8] sm:$0xff]
        %v2586 = vld [vmem:[#allocation18 + $0xe0] sm:$0xff]
        %v2587 = vld [vmem:[#allocation18 + $0xe8] sm:$0xff]
        %v2588 = vld [vmem:[#allocation18 + $0xf0] sm:$0xff]
        %v2589 = vld [vmem:[#allocation18 + $0xf8] sm:$0xff]
        %v2590 = vld [vmem:[#allocation18 + $0x100] sm:$0xff]
        %v2591 = vld [vmem:[#allocation18 + $0x108] sm:$0xff]
        %v2592 = vld [vmem:[#allocation18 + $0x110] sm:$0xff]
        %v2593 = vld [vmem:[#allocation18 + $0x118] sm:$0xff]
        %v2594 = vld [vmem:[#allocation18 + $0x120] sm:$0xff]
        %v2595 = vld [vmem:[#allocation18 + $0x128] sm:$0xff]
        %v2596 = vld [vmem:[#allocation18 + $0x130] sm:$0xff]
        %v2597 = vld [vmem:[#allocation18 + $0x138] sm:$0xff]
        %v2598 = vld [vmem:[#allocation18 + $0x140] sm:$0xff]
        %v2599 = vld [vmem:[#allocation18 + $0x148] sm:$0xff]
        %v2600 = vld [vmem:[#allocation18 + $0x150] sm:$0xff]
        %v2601 = vld [vmem:[#allocation18 + $0x158] sm:$0xff]
        %v2602 = vld [vmem:[#allocation18 + $0x160] sm:$0xff]
        %v2603 = vld [vmem:[#allocation18 + $0x168] sm:$0xff]
        %v2604 = vld [vmem:[#allocation18 + $0x170] sm:$0xff]
        %v2605 = vld [vmem:[#allocation18 + $0x178] sm:$0xff]
        %v2606 = vld [vmem:[#allocation18 + $0x180] sm:$0xff]
        %v2607 = vld [vmem:[#allocation18 + $0x188] sm:$0xff]
        %v2608 = vld [vmem:[#allocation18 + $0x190] sm:$0xff]
        %v2609 = vld [vmem:[#allocation18 + $0x198] sm:$0xff]
        %v2610 = vld [vmem:[#allocation18 + $0x1a0] sm:$0xff]
        %v2611 = vld [vmem:[#allocation18 + $0x1a8] sm:$0xff]
        %v2612 = vld [vmem:[#allocation18 + $0x1b0] sm:$0xff]
        %v2613 = vld [vmem:[#allocation18 + $0x1b8] sm:$0xff]
        %v2614 = vld [vmem:[#allocation18 + $0x1c0] sm:$0xff]
        %v2615 = vld [vmem:[#allocation18 + $0x1c8] sm:$0xff]
        %v2616 = vld [vmem:[#allocation18 + $0x1d0] sm:$0xff]
        %v2617 = vld [vmem:[#allocation18 + $0x1d8] sm:$0xff]
        %v2618 = vld [vmem:[#allocation18 + $0x1e0] sm:$0xff]
        %v2619 = vld [vmem:[#allocation18 + $0x1e8] sm:$0xff]
        %v2620 = vld [vmem:[#allocation18 + $0x1f0] sm:$0xff]
        %v2621 = vld [vmem:[#allocation18 + $0x1f8] sm:$0xff]
        %v2622 = vld [vmem:[%s43] sm:$0x3]
        %v2624 = vlaneseq
        %v2625 = vshrl.u32 %v2624, 7
        %v2626 = vsub.s32 0, %v2625
        %v2627 = vrot.slane %v2622, %v2626
        %v2628 = vlaneseq
        %v2629 = vshrl.u32 %v2628, 7
        %v2630 = vsub.s32 1, %v2629
        %v2631 = vrot.slane %v2622, %v2630
        %2634 = vmatprep.subr.mxu0 %v2559
        %2635 = vmatpush1.msra.mxu0 %v2558
        %2636 = vmatprep.subr.mxu0 %v2561
        %2637 = vmatpush1.msra.mxu0 %v2560
        %2638 = vmatprep.subr.mxu0 %v2563
        %2639 = vmatpush1.msra.mxu0 %v2562
        %2640 = vmatprep.subr.mxu0 %v2565
        %2641 = vmatpush1.msra.mxu0 %v2564
        %2642 = vmatprep.subr.mxu0 %v2567
        %2643 = vmatpush1.msra.mxu0 %v2566
        %2644 = vmatprep.subr.mxu0 %v2569
        %2645 = vmatpush1.msra.mxu0 %v2568
        %2646 = vmatprep.subr.mxu0 %v2571
        %2647 = vmatpush1.msra.mxu0 %v2570
        %2648 = vmatprep.subr.mxu0 %v2573
        %2649 = vmatpush1.msra.mxu0 %v2572
        %2650 = vmatprep.subr.mxu0 %v2575
        %2651 = vmatpush1.msra.mxu0 %v2574
        %2652 = vmatprep.subr.mxu0 %v2577
        %2653 = vmatpush1.msra.mxu0 %v2576
        %2654 = vmatprep.subr.mxu0 %v2579
        %2655 = vmatpush1.msra.mxu0 %v2578
        %2656 = vmatprep.subr.mxu0 %v2581
        %2657 = vmatpush1.msra.mxu0 %v2580
        %2658 = vmatprep.subr.mxu0 %v2583
        %2659 = vmatpush1.msra.mxu0 %v2582
        %2660 = vmatprep.subr.mxu0 %v2585
        %2661 = vmatpush1.msra.mxu0 %v2584
        %2662 = vmatprep.subr.mxu0 %v2587
        %2663 = vmatpush1.msra.mxu0 %v2586
        %2664 = vmatprep.subr.mxu0 %v2589
        %2665 = vmatpush1.msra.mxu0 %v2588
        %2666 = vmatprep.subr.mxu0 %v2591
        %2667 = vmatpush1.msra.mxu0 %v2590
        %2668 = vmatprep.subr.mxu0 %v2593
        %2669 = vmatpush1.msra.mxu0 %v2592
        %2670 = vmatprep.subr.mxu0 %v2595
        %2671 = vmatpush1.msra.mxu0 %v2594
        %2672 = vmatprep.subr.mxu0 %v2597
        %2673 = vmatpush1.msra.mxu0 %v2596
        %2674 = vmatprep.subr.mxu0 %v2599
        %2675 = vmatpush1.msra.mxu0 %v2598
        %2676 = vmatprep.subr.mxu0 %v2601
        %2677 = vmatpush1.msra.mxu0 %v2600
        %2678 = vmatprep.subr.mxu0 %v2603
        %2679 = vmatpush1.msra.mxu0 %v2602
        %2680 = vmatprep.subr.mxu0 %v2605
        %2681 = vmatpush1.msra.mxu0 %v2604
        %2682 = vmatprep.subr.mxu0 %v2607
        %2683 = vmatpush1.msra.mxu0 %v2606
        %2684 = vmatprep.subr.mxu0 %v2609
        %2685 = vmatpush1.msra.mxu0 %v2608
        %2686 = vmatprep.subr.mxu0 %v2611
        %2687 = vmatpush1.msra.mxu0 %v2610
        %2688 = vmatprep.subr.mxu0 %v2613
        %2689 = vmatpush1.msra.mxu0 %v2612
        %2690 = vmatprep.subr.mxu0 %v2615
        %2691 = vmatpush1.msra.mxu0 %v2614
        %2692 = vmatprep.subr.mxu0 %v2617
        %2693 = vmatpush1.msra.mxu0 %v2616
        %2694 = vmatprep.subr.mxu0 %v2619
        %2695 = vmatpush1.msra.mxu0 %v2618
        %2696 = vmatprep.subr.mxu0 %v2621
        %2697 = vmatpush1.msra.mxu0 %v2620
        %2698 = vmatprep.mubr.f32.mxu0 %v2263
        %2699 = vmatmul.mubr.f32.gmra.mrb[0].mxu0 %v2262
        %v2700 = vpop.f32.mrb[0].mxu0
        %v2701 = vadd.f32 %v2627, %v2700
        %v2702 = vpop.f32.mrb[0].mxu0
        %v2703 = vadd.f32 %v2631, %v2702
        %2704 = vdwg.mxu0
        %2705 = vmatprep.subr.mxu0 0.0
        %2706 = vmatpush1.xpose.msra.mxu0 %v2554
        %2707 = vmatprep.subr.mxu0 0.0
        %2708 = vmatpush1.xpose.msra.mxu0 0.0
        %2709 = vmatprep.subr.mxu0 0.0
        %2710 = vmatpush1.xpose.msra.mxu0 0.0
        %2711 = vmatprep.subr.mxu0 0.0
        %2712 = vmatpush1.xpose.msra.mxu0 0.0
        %2713 = vmatprep.subr.mxu0 0.0
        %2714 = vmatpush1.xpose.msra.mxu0 0.0
        %2715 = vmatprep.subr.mxu0 0.0
        %2716 = vmatpush1.xpose.msra.mxu0 0.0
        %2717 = vmatprep.subr.mxu0 0.0
        %2718 = vmatpush1.xpose.msra.mxu0 0.0
        %2719 = vmatprep.subr.mxu0 0.0
        %2720 = vmatpush1.xpose.msra.mxu0 0.0
        %2721 = vmatprep.subr.mxu0 0.0
        %2722 = vmatpush1.xpose.msra.mxu0 0.0
        %2723 = vmatprep.subr.mxu0 0.0
        %2724 = vmatpush1.xpose.msra.mxu0 0.0
        %2725 = vmatprep.subr.mxu0 0.0
        %2726 = vmatpush1.xpose.msra.mxu0 0.0
        %2727 = vmatprep.subr.mxu0 0.0
        %2728 = vmatpush1.xpose.msra.mxu0 0.0
        %2729 = vmatprep.subr.mxu0 0.0
        %2730 = vmatpush1.xpose.msra.mxu0 0.0
        %2731 = vmatprep.subr.mxu0 0.0
        %2732 = vmatpush1.xpose.msra.mxu0 0.0
        %2733 = vmatprep.subr.mxu0 0.0
        %2734 = vmatpush1.xpose.msra.mxu0 0.0
        %2735 = vmatprep.subr.mxu0 0.0
        %2736 = vmatpush1.xpose.msra.mxu0 0.0
        %2737 = vmatprep.subr.mxu0 0.0
        %2738 = vmatpush1.xpose.msra.mxu0 0.0
        %2739 = vmatprep.subr.mxu0 0.0
        %2740 = vmatpush1.xpose.msra.mxu0 0.0
        %2741 = vmatprep.subr.mxu0 0.0
        %2742 = vmatpush1.xpose.msra.mxu0 0.0
        %2743 = vmatprep.subr.mxu0 0.0
        %2744 = vmatpush1.xpose.msra.mxu0 0.0
        %2745 = vmatprep.subr.mxu0 0.0
        %2746 = vmatpush1.xpose.msra.mxu0 0.0
        %2747 = vmatprep.subr.mxu0 0.0
        %2748 = vmatpush1.xpose.msra.mxu0 0.0
        %2749 = vmatprep.subr.mxu0 0.0
        %2750 = vmatpush1.xpose.msra.mxu0 0.0
        %2751 = vmatprep.subr.mxu0 0.0
        %2752 = vmatpush1.xpose.msra.mxu0 0.0
        %2753 = vmatprep.subr.mxu0 0.0
        %2754 = vmatpush1.xpose.msra.mxu0 0.0
        %2755 = vmatprep.subr.mxu0 0.0
        %2756 = vmatpush1.xpose.msra.mxu0 0.0
        %2757 = vmatprep.subr.mxu0 0.0
        %2758 = vmatpush1.xpose.msra.mxu0 0.0
        %2759 = vmatprep.subr.mxu0 0.0
        %2760 = vmatpush1.xpose.msra.mxu0 0.0
        %2761 = vmatprep.subr.mxu0 0.0
        %2762 = vmatpush1.xpose.msra.mxu0 0.0
        %2763 = vmatprep.subr.mxu0 0.0
        %2764 = vmatpush1.xpose.msra.mxu0 0.0
        %2765 = vmatprep.subr.mxu0 0.0
        %2766 = vmatpush1.xpose.msra.mxu0 0.0
        %2767 = vmatprep.subr.mxu0 0.0
        %2768 = vmatpush1.xpose.msra.mxu0 0.0
        %2769 = vmatprep.mubr.f32.mxu0 0.0
        %2770 = vmatmul.mubr.f32.gmra.mrb[0].mxu0 %v2407
        %v2771 = vpop.f32.mrb[0].mxu0
        %v2772 = vadd.f32 0.0, %v2771
        %v2773 = vpop.f32.mrb[0].mxu0
        %2774 = vdwg.mxu0
        %v2775 = vmul.f32 %v2772, 0.088388346
        %v2777 = vlaneseq
        %v2778 = vshrl.u32 %v2777, 7
        %v2779 = vsub.s32 0, %v2778
        %v2780 = vrot.slane %v1211, %v2779
        %v2782 = vadd.f32 %v2775, %v2780
        %vm2783 = vcmask 64512
        %v2784 = vsel %vm2783, %v2782, -inf
        %2785 = vmax.xlane.f32.xlu0 %v2784
        %v2786 = vpop.xlane.xlu0 %2785
        %v2787 = vsub.f32 %v2782, %v2786
        %v2788 = vmul.f32 %v2787, 1.442695
        %v2789 = vpow.pop %v2788
        %v2790 = vsel %vm2783, %v2789, 0.0
        %2791 = vadd.xlane.f32.xlu0 %v2790
        %v2792 = vpop.xlane.xlu0 %2791
        %v2793 = vrcp.pop %v2792
        %v2795 = vsel %vm2783, %v2789, 0
        %2797 = vmatprep.subr.mxu0 0.0
        %2798 = vmatpush1.msra.mxu0 %v2701
        %2799 = vmatprep.subr.mxu0 0.0
        %2800 = vmatpush1.msra.mxu0 0.0
        %2801 = vmatprep.subr.mxu0 0.0
        %2802 = vmatpush1.msra.mxu0 0.0
        %2803 = vmatprep.subr.mxu0 0.0
        %2804 = vmatpush1.msra.mxu0 0.0
        %2805 = vmatprep.subr.mxu0 0.0
        %2806 = vmatpush1.msra.mxu0 0.0
        %2807 = vmatprep.subr.mxu0 0.0
        %2808 = vmatpush1.msra.mxu0 0.0
        %2809 = vmatprep.subr.mxu0 0.0
        %2810 = vmatpush1.msra.mxu0 0.0
        %2811 = vmatprep.subr.mxu0 0.0
        %2812 = vmatpush1.msra.mxu0 0.0
        %2813 = vmatprep.subr.mxu0 0.0
        %2814 = vmatpush1.msra.mxu0 0.0
        %2815 = vmatprep.subr.mxu0 0.0
        %2816 = vmatpush1.msra.mxu0 0.0
        %2817 = vmatprep.subr.mxu0 0.0
        %2818 = vmatpush1.msra.mxu0 0.0
        %2819 = vmatprep.subr.mxu0 0.0
        %2820 = vmatpush1.msra.mxu0 0.0
        %2821 = vmatprep.subr.mxu0 0.0
        %2822 = vmatpush1.msra.mxu0 0.0
        %2823 = vmatprep.subr.mxu0 0.0
        %2824 = vmatpush1.msra.mxu0 0.0
        %2825 = vmatprep.subr.mxu0 0.0
        %2826 = vmatpush1.msra.mxu0 0.0
        %2827 = vmatprep.subr.mxu0 0.0
        %2828 = vmatpush1.msra.mxu0 0.0
        %2829 = vmatprep.subr.mxu0 0.0
        %2830 = vmatpush1.msra.mxu0 0.0
        %2831 = vmatprep.subr.mxu0 0.0
        %2832 = vmatpush1.msra.mxu0 0.0
        %2833 = vmatprep.subr.mxu0 0.0
        %2834 = vmatpush1.msra.mxu0 0.0
        %2835 = vmatprep.subr.mxu0 0.0
        %2836 = vmatpush1.msra.mxu0 0.0
        %2837 = vmatprep.subr.mxu0 0.0
        %2838 = vmatpush1.msra.mxu0 0.0
        %2839 = vmatprep.subr.mxu0 0.0
        %2840 = vmatpush1.msra.mxu0 0.0
        %2841 = vmatprep.subr.mxu0 0.0
        %2842 = vmatpush1.msra.mxu0 0.0
        %2843 = vmatprep.subr.mxu0 0.0
        %2844 = vmatpush1.msra.mxu0 0.0
        %2845 = vmatprep.subr.mxu0 0.0
        %2846 = vmatpush1.msra.mxu0 0.0
        %2847 = vmatprep.subr.mxu0 0.0
        %2848 = vmatpush1.msra.mxu0 0.0
        %2849 = vmatprep.subr.mxu0 0.0
        %2850 = vmatpush1.msra.mxu0 0.0
        %2851 = vmatprep.subr.mxu0 0.0
        %2852 = vmatpush1.msra.mxu0 0.0
        %2853 = vmatprep.subr.mxu0 0.0
        %2854 = vmatpush1.msra.mxu0 0.0
        %2855 = vmatprep.subr.mxu0 0.0
        %2856 = vmatpush1.msra.mxu0 0.0
        %2857 = vmatprep.subr.mxu0 0.0
        %2858 = vmatpush1.msra.mxu0 0.0
        %2859 = vmatprep.subr.mxu0 0.0
        %2860 = vmatpush1.msra.mxu0 0.0
        %2861 = vmatprep.mubr.f32.mxu0 0.0
        %2862 = vmatmul.mubr.f32.gmra.mrb[0].mxu0 %v2795
        %v2863 = vpop.f32.mrb[0].mxu0
        %v2864 = vadd.f32 0.0, %v2863
        %v2865 = vpop.f32.mrb[0].mxu0
        %2866 = vdwg.mxu0
        %v2867 = vmul.f32 %v2864, %v2793
        %2868 = vst [vmem:[#allocation2] sm:$0xff] %v2867
        %2869 = vmatprep.subr.mxu0 0.0
        %2870 = vmatpush1.xpose.msra.mxu0 %v2556
        %2871 = vmatprep.subr.mxu0 0.0
        %2872 = vmatpush1.xpose.msra.mxu0 0.0
        %2873 = vmatprep.subr.mxu0 0.0
        %2874 = vmatpush1.xpose.msra.mxu0 0.0
        %2875 = vmatprep.subr.mxu0 0.0
        %2876 = vmatpush1.xpose.msra.mxu0 0.0
        %2877 = vmatprep.subr.mxu0 0.0
        %2878 = vmatpush1.xpose.msra.mxu0 0.0
        %2879 = vmatprep.subr.mxu0 0.0
        %2880 = vmatpush1.xpose.msra.mxu0 0.0
        %2881 = vmatprep.subr.mxu0 0.0
        %2882 = vmatpush1.xpose.msra.mxu0 0.0
        %2883 = vmatprep.subr.mxu0 0.0
        %2884 = vmatpush1.xpose.msra.mxu0 0.0
        %2885 = vmatprep.subr.mxu0 0.0
        %2886 = vmatpush1.xpose.msra.mxu0 0.0
        %2887 = vmatprep.subr.mxu0 0.0
        %2888 = vmatpush1.xpose.msra.mxu0 0.0
        %2889 = vmatprep.subr.mxu0 0.0
        %2890 = vmatpush1.xpose.msra.mxu0 0.0
        %2891 = vmatprep.subr.mxu0 0.0
        %2892 = vmatpush1.xpose.msra.mxu0 0.0
        %2893 = vmatprep.subr.mxu0 0.0
        %2894 = vmatpush1.xpose.msra.mxu0 0.0
        %2895 = vmatprep.subr.mxu0 0.0
        %2896 = vmatpush1.xpose.msra.mxu0 0.0
        %2897 = vmatprep.subr.mxu0 0.0
        %2898 = vmatpush1.xpose.msra.mxu0 0.0
        %2899 = vmatprep.subr.mxu0 0.0
        %2900 = vmatpush1.xpose.msra.mxu0 0.0
        %2901 = vmatprep.subr.mxu0 0.0
        %2902 = vmatpush1.xpose.msra.mxu0 0.0
        %2903 = vmatprep.subr.mxu0 0.0
        %2904 = vmatpush1.xpose.msra.mxu0 0.0
        %2905 = vmatprep.subr.mxu0 0.0
        %2906 = vmatpush1.xpose.msra.mxu0 0.0
        %2907 = vmatprep.subr.mxu0 0.0
        %2908 = vmatpush1.xpose.msra.mxu0 0.0
        %2909 = vmatprep.subr.mxu0 0.0
        %2910 = vmatpush1.xpose.msra.mxu0 0.0
        %2911 = vmatprep.subr.mxu0 0.0
        %2912 = vmatpush1.xpose.msra.mxu0 0.0
        %2913 = vmatprep.subr.mxu0 0.0
        %2914 = vmatpush1.xpose.msra.mxu0 0.0
        %2915 = vmatprep.subr.mxu0 0.0
        %2916 = vmatpush1.xpose.msra.mxu0 0.0
        %2917 = vmatprep.subr.mxu0 0.0
        %2918 = vmatpush1.xpose.msra.mxu0 0.0
        %2919 = vmatprep.subr.mxu0 0.0
        %2920 = vmatpush1.xpose.msra.mxu0 0.0
        %2921 = vmatprep.subr.mxu0 0.0
        %2922 = vmatpush1.xpose.msra.mxu0 0.0
        %2923 = vmatprep.subr.mxu0 0.0
        %2924 = vmatpush1.xpose.msra.mxu0 0.0
        %2925 = vmatprep.subr.mxu0 0.0
        %2926 = vmatpush1.xpose.msra.mxu0 0.0
        %2927 = vmatprep.subr.mxu0 0.0
        %2928 = vmatpush1.xpose.msra.mxu0 0.0
        %2929 = vmatprep.subr.mxu0 0.0
        %2930 = vmatpush1.xpose.msra.mxu0 0.0
        %2931 = vmatprep.subr.mxu0 0.0
        %2932 = vmatpush1.xpose.msra.mxu0 0.0
        %2933 = vmatprep.mubr.f32.mxu0 0.0
        %2934 = vmatmul.mubr.f32.gmra.mrb[0].mxu0 %v2409
        %v2935 = vpop.f32.mrb[0].mxu0
        %v2936 = vadd.f32 0.0, %v2935
        %v2937 = vpop.f32.mrb[0].mxu0
        %2938 = vdwg.mxu0
        %v2939 = vmul.f32 %v2936, 0.088388346
        %v2940 = vadd.f32 %v2939, %v2780
        %v2941 = vsel %vm2783, %v2940, -inf
        %2942 = vmax.xlane.f32.xlu0 %v2941
        %v2943 = vpop.xlane.xlu0 %2942
        %v2944 = vsub.f32 %v2940, %v2943
        %v2945 = vmul.f32 %v2944, 1.442695
        %v2946 = vpow.pop %v2945
        %v2947 = vsel %vm2783, %v2946, 0.0
        %2948 = vadd.xlane.f32.xlu0 %v2947
        %v2949 = vpop.xlane.xlu0 %2948
        %v2950 = vrcp.pop %v2949
        %v2952 = vsel %vm2783, %v2946, 0
        %2954 = vmatprep.subr.mxu0 0.0
        %2955 = vmatpush1.msra.mxu0 %v2703
        %2956 = vmatprep.subr.mxu0 0.0
        %2957 = vmatpush1.msra.mxu0 0.0
        %2958 = vmatprep.subr.mxu0 0.0
        %2959 = vmatpush1.msra.mxu0 0.0
        %2960 = vmatprep.subr.mxu0 0.0
        %2961 = vmatpush1.msra.mxu0 0.0
        %2962 = vmatprep.subr.mxu0 0.0
        %2963 = vmatpush1.msra.mxu0 0.0
        %2964 = vmatprep.subr.mxu0 0.0
        %2965 = vmatpush1.msra.mxu0 0.0
        %2966 = vmatprep.subr.mxu0 0.0
        %2967 = vmatpush1.msra.mxu0 0.0
        %2968 = vmatprep.subr.mxu0 0.0
        %2969 = vmatpush1.msra.mxu0 0.0
        %2970 = vmatprep.subr.mxu0 0.0
        %2971 = vmatpush1.msra.mxu0 0.0
        %2972 = vmatprep.subr.mxu0 0.0
        %2973 = vmatpush1.msra.mxu0 0.0
        %2974 = vmatprep.subr.mxu0 0.0
        %2975 = vmatpush1.msra.mxu0 0.0
        %2976 = vmatprep.subr.mxu0 0.0
        %2977 = vmatpush1.msra.mxu0 0.0
        %2978 = vmatprep.subr.mxu0 0.0
        %2979 = vmatpush1.msra.mxu0 0.0
        %2980 = vmatprep.subr.mxu0 0.0
        %2981 = vmatpush1.msra.mxu0 0.0
        %2982 = vmatprep.subr.mxu0 0.0
        %2983 = vmatpush1.msra.mxu0 0.0
        %2984 = vmatprep.subr.mxu0 0.0
        %2985 = vmatpush1.msra.mxu0 0.0
        %2986 = vmatprep.subr.mxu0 0.0
        %2987 = vmatpush1.msra.mxu0 0.0
        %2988 = vmatprep.subr.mxu0 0.0
        %2989 = vmatpush1.msra.mxu0 0.0
        %2990 = vmatprep.subr.mxu0 0.0
        %2991 = vmatpush1.msra.mxu0 0.0
        %2992 = vmatprep.subr.mxu0 0.0
        %2993 = vmatpush1.msra.mxu0 0.0
        %2994 = vmatprep.subr.mxu0 0.0
        %2995 = vmatpush1.msra.mxu0 0.0
        %2996 = vmatprep.subr.mxu0 0.0
        %2997 = vmatpush1.msra.mxu0 0.0
        %2998 = vmatprep.subr.mxu0 0.0
        %2999 = vmatpush1.msra.mxu0 0.0
        %3000 = vmatprep.subr.mxu0 0.0
        %3001 = vmatpush1.msra.mxu0 0.0
        %3002 = vmatprep.subr.mxu0 0.0
        %3003 = vmatpush1.msra.mxu0 0.0
        %3004 = vmatprep.subr.mxu0 0.0
        %3005 = vmatpush1.msra.mxu0 0.0
        %3006 = vmatprep.subr.mxu0 0.0
        %3007 = vmatpush1.msra.mxu0 0.0
        %3008 = vmatprep.subr.mxu0 0.0
        %3009 = vmatpush1.msra.mxu0 0.0
        %3010 = vmatprep.subr.mxu0 0.0
        %3011 = vmatpush1.msra.mxu0 0.0
        %3012 = vmatprep.subr.mxu0 0.0
        %3013 = vmatpush1.msra.mxu0 0.0
        %3014 = vmatprep.subr.mxu0 0.0
        %3015 = vmatpush1.msra.mxu0 0.0
        %3016 = vmatprep.subr.mxu0 0.0
        %3017 = vmatpush1.msra.mxu0 0.0
        %3018 = vmatprep.mubr.f32.mxu0 0.0
        %3019 = vmatmul.mubr.f32.gmra.mrb[0].mxu0 %v2952
        %v3020 = vpop.f32.mrb[0].mxu0
        %v3021 = vadd.f32 0.0, %v3020
        %v3022 = vpop.f32.mrb[0].mxu0
        %3023 = vdwg.mxu0
        %v3024 = vmul.f32 %v3021, %v2950
        %3025 = vst [vmem:[#allocation2 + $0x8] sm:$0xff] %v3024
        %v3026 = vld [vmem:[#allocation2] sm:$0xff]
        %v3027 = vld [vmem:[#allocation2 + $0x8] sm:$0xff]
        %v3028 = vld [vmem:[#allocation20] sm:$0xff]
        %v3029 = vld [vmem:[#allocation20 + $0x8] sm:$0xff]
        %v3030 = vld [vmem:[#allocation20 + $0x10] sm:$0xff]
        %v3031 = vld [vmem:[#allocation20 + $0x18] sm:$0xff]
        %v3032 = vld [vmem:[#allocation20 + $0x20] sm:$0xff]
        %v3033 = vld [vmem:[#allocation20 + $0x28] sm:$0xff]
        %v3034 = vld [vmem:[#allocation20 + $0x30] sm:$0xff]
        %v3035 = vld [vmem:[#allocation20 + $0x38] sm:$0xff]
        %v3036 = vld [vmem:[#allocation20 + $0x40] sm:$0xff]
        %v3037 = vld [vmem:[#allocation20 + $0x48] sm:$0xff]
        %v3038 = vld [vmem:[#allocation20 + $0x50] sm:$0xff]
        %v3039 = vld [vmem:[#allocation20 + $0x58] sm:$0xff]
        %v3040 = vld [vmem:[#allocation20 + $0x60] sm:$0xff]
        %v3041 = vld [vmem:[#allocation20 + $0x68] sm:$0xff]
        %v3042 = vld [vmem:[#allocation20 + $0x70] sm:$0xff]
        %v3043 = vld [vmem:[#allocation20 + $0x78] sm:$0xff]
        %v3044 = vld [vmem:[#allocation20 + $0x80] sm:$0xff]
        %v3045 = vld [vmem:[#allocation20 + $0x88] sm:$0xff]
        %v3046 = vld [vmem:[#allocation20 + $0x90] sm:$0xff]
        %v3047 = vld [vmem:[#allocation20 + $0x98] sm:$0xff]
        %v3048 = vld [vmem:[#allocation20 + $0xa0] sm:$0xff]
        %v3049 = vld [vmem:[#allocation20 + $0xa8] sm:$0xff]
        %v3050 = vld [vmem:[#allocation20 + $0xb0] sm:$0xff]
        %v3051 = vld [vmem:[#allocation20 + $0xb8] sm:$0xff]
        %v3052 = vld [vmem:[#allocation20 + $0xc0] sm:$0xff]
        %v3053 = vld [vmem:[#allocation20 + $0xc8] sm:$0xff]
        %v3054 = vld [vmem:[#allocation20 + $0xd0] sm:$0xff]
        %v3055 = vld [vmem:[#allocation20 + $0xd8] sm:$0xff]
        %v3056 = vld [vmem:[#allocation20 + $0xe0] sm:$0xff]
        %v3057 = vld [vmem:[#allocation20 + $0xe8] sm:$0xff]
        %v3058 = vld [vmem:[#allocation20 + $0xf0] sm:$0xff]
        %v3059 = vld [vmem:[#allocation20 + $0xf8] sm:$0xff]
        %v3060 = vld [vmem:[#allocation20 + $0x100] sm:$0xff]
        %v3061 = vld [vmem:[#allocation20 + $0x108] sm:$0xff]
        %v3062 = vld [vmem:[#allocation20 + $0x110] sm:$0xff]
        %v3063 = vld [vmem:[#allocation20 + $0x118] sm:$0xff]
        %v3064 = vld [vmem:[#allocation20 + $0x120] sm:$0xff]
        %v3065 = vld [vmem:[#allocation20 + $0x128] sm:$0xff]
        %v3066 = vld [vmem:[#allocation20 + $0x130] sm:$0xff]
        %v3067 = vld [vmem:[#allocation20 + $0x138] sm:$0xff]
        %v3068 = vld [vmem:[#allocation20 + $0x140] sm:$0xff]
        %v3069 = vld [vmem:[#allocation20 + $0x148] sm:$0xff]
        %v3070 = vld [vmem:[#allocation20 + $0x150] sm:$0xff]
        %v3071 = vld [vmem:[#allocation20 + $0x158] sm:$0xff]
        %v3072 = vld [vmem:[#allocation20 + $0x160] sm:$0xff]
        %v3073 = vld [vmem:[#allocation20 + $0x168] sm:$0xff]
        %v3074 = vld [vmem:[#allocation20 + $0x170] sm:$0xff]
        %v3075 = vld [vmem:[#allocation20 + $0x178] sm:$0xff]
        %v3076 = vld [vmem:[#allocation20 + $0x180] sm:$0xff]
        %v3077 = vld [vmem:[#allocation20 + $0x188] sm:$0xff]
        %v3078 = vld [vmem:[#allocation20 + $0x190] sm:$0xff]
        %v3079 = vld [vmem:[#allocation20 + $0x198] sm:$0xff]
        %v3080 = vld [vmem:[#allocation20 + $0x1a0] sm:$0xff]
        %v3081 = vld [vmem:[#allocation20 + $0x1a8] sm:$0xff]
        %v3082 = vld [vmem:[#allocation20 + $0x1b0] sm:$0xff]
        %v3083 = vld [vmem:[#allocation20 + $0x1b8] sm:$0xff]
        %v3084 = vld [vmem:[#allocation20 + $0x1c0] sm:$0xff]
        %v3085 = vld [vmem:[#allocation20 + $0x1c8] sm:$0xff]
        %v3086 = vld [vmem:[#allocation20 + $0x1d0] sm:$0xff]
        %v3087 = vld [vmem:[#allocation20 + $0x1d8] sm:$0xff]
        %v3088 = vld [vmem:[#allocation20 + $0x1e0] sm:$0xff]
        %v3089 = vld [vmem:[#allocation20 + $0x1e8] sm:$0xff]
        %v3090 = vld [vmem:[#allocation20 + $0x1f0] sm:$0xff]
        %v3091 = vld [vmem:[#allocation20 + $0x1f8] sm:$0xff]
        %3092 = vmatprep.subr.mxu0 %v3029
        %3093 = vmatpush1.msra.mxu0 %v3028
        %3094 = vmatprep.subr.mxu0 %v3031
        %3095 = vmatpush1.msra.mxu0 %v3030
        %3096 = vmatprep.subr.mxu0 %v3033
        %3097 = vmatpush1.msra.mxu0 %v3032
        %3098 = vmatprep.subr.mxu0 %v3035
        %3099 = vmatpush1.msra.mxu0 %v3034
        %3100 = vmatprep.subr.mxu0 %v3037
        %3101 = vmatpush1.msra.mxu0 %v3036
        %3102 = vmatprep.subr.mxu0 %v3039
        %3103 = vmatpush1.msra.mxu0 %v3038
        %3104 = vmatprep.subr.mxu0 %v3041
        %3105 = vmatpush1.msra.mxu0 %v3040
        %3106 = vmatprep.subr.mxu0 %v3043
        %3107 = vmatpush1.msra.mxu0 %v3042
        %3108 = vmatprep.subr.mxu0 %v3045
        %3109 = vmatpush1.msra.mxu0 %v3044
        %3110 = vmatprep.subr.mxu0 %v3047
        %3111 = vmatpush1.msra.mxu0 %v3046
        %3112 = vmatprep.subr.mxu0 %v3049
        %3113 = vmatpush1.msra.mxu0 %v3048
        %3114 = vmatprep.subr.mxu0 %v3051
        %3115 = vmatpush1.msra.mxu0 %v3050
        %3116 = vmatprep.subr.mxu0 %v3053
        %3117 = vmatpush1.msra.mxu0 %v3052
        %3118 = vmatprep.subr.mxu0 %v3055
        %3119 = vmatpush1.msra.mxu0 %v3054
        %3120 = vmatprep.subr.mxu0 %v3057
        %3121 = vmatpush1.msra.mxu0 %v3056
        %3122 = vmatprep.subr.mxu0 %v3059
        %3123 = vmatpush1.msra.mxu0 %v3058
        %3124 = vmatprep.subr.mxu0 %v3061
        %3125 = vmatpush1.msra.mxu0 %v3060
        %3126 = vmatprep.subr.mxu0 %v3063
        %3127 = vmatpush1.msra.mxu0 %v3062
        %3128 = vmatprep.subr.mxu0 %v3065
        %3129 = vmatpush1.msra.mxu0 %v3064
        %3130 = vmatprep.subr.mxu0 %v3067
        %3131 = vmatpush1.msra.mxu0 %v3066
        %3132 = vmatprep.subr.mxu0 %v3069
        %3133 = vmatpush1.msra.mxu0 %v3068
        %3134 = vmatprep.subr.mxu0 %v3071
        %3135 = vmatpush1.msra.mxu0 %v3070
        %3136 = vmatprep.subr.mxu0 %v3073
        %3137 = vmatpush1.msra.mxu0 %v3072
        %3138 = vmatprep.subr.mxu0 %v3075
        %3139 = vmatpush1.msra.mxu0 %v3074
        %3140 = vmatprep.subr.mxu0 %v3077
        %3141 = vmatpush1.msra.mxu0 %v3076
        %3142 = vmatprep.subr.mxu0 %v3079
        %3143 = vmatpush1.msra.mxu0 %v3078
        %3144 = vmatprep.subr.mxu0 %v3081
        %3145 = vmatpush1.msra.mxu0 %v3080
        %3146 = vmatprep.subr.mxu0 %v3083
        %3147 = vmatpush1.msra.mxu0 %v3082
        %3148 = vmatprep.subr.mxu0 %v3085
        %3149 = vmatpush1.msra.mxu0 %v3084
        %3150 = vmatprep.subr.mxu0 %v3087
        %3151 = vmatpush1.msra.mxu0 %v3086
        %3152 = vmatprep.subr.mxu0 %v3089
        %3153 = vmatpush1.msra.mxu0 %v3088
        %3154 = vmatprep.subr.mxu0 %v3091
        %3155 = vmatpush1.msra.mxu0 %v3090
        %3156 = vmatprep.mubr.f32.mxu0 %v3027
        %3157 = vmatmul.mubr.f32.gmra.mrb[0].mxu0 %v3026
        %v3158 = vpop.f32.mrb[0].mxu0
        %v3159 = vadd.f32 0.0, %v3158
        %v3160 = vpop.f32.mrb[0].mxu0
        %v3161 = vadd.f32 0.0, %v3160
        %3162 = vdwg.mxu0
        %v3163 = vadd.f32 %v2216, %v3159
        %v3164 = vadd.f32 %v2217, %v3161
        %v3165 = vld [vmem:[%s47] sm:$0x3]
        %v3167 = vlaneseq
        %v3168 = vshrl.u32 %v3167, 7
        %v3169 = vsub.s32 0, %v3168
        %v3170 = vrot.slane %v3165, %v3169
        %v3171 = vlaneseq
        %v3172 = vshrl.u32 %v3171, 7
        %v3173 = vsub.s32 1, %v3172
        %v3174 = vrot.slane %v3165, %v3173
        %v3177 = vadd.f32 %v3163, %v3170
        %v3178 = vadd.f32 %v3164, %v3174
        %v3179 = vld [vmem:[%s49] sm:$0x3]
        %v3180 = vld [vmem:[%s51] sm:$0x3]
        %v3181 = vadd.f32 %v3177, %v3178
        %3182 = vadd.xlane.f32.xlu0 %v3181
        %v3183 = vpop.xlane.xlu0 %3182
        %v3184 = vmul.f32 %v3183, %v1220
        %v3185 = vsub.f32 %v3177, %v3184
        %v3186 = vsub.f32 %v3178, %v3184
        %v3187 = vmul.f32 %v3185, %v3185
        %v3188 = vmul.f32 %v3186, %v3186
        %v3189 = vadd.f32 %v3187, %v3188
        %3190 = vadd.xlane.f32.xlu0 %v3189
        %v3191 = vpop.xlane.xlu0 %3190
        %v3192 = vmul.f32 %v3191, %v1220
        %v3193 = vadd.f32 %v3192, 1e-05
        %v3194 = vrsqrt.pop %v3193
        %v3195 = vmul.f32 %v3185, %v3194
        %v3196 = vmul.f32 %v3186, %v3194
        %v3198 = vlaneseq
        %v3199 = vshrl.u32 %v3198, 7
        %v3200 = vsub.s32 0, %v3199
        %v3201 = vrot.slane %v3179, %v3200
        %v3202 = vlaneseq
        %v3203 = vshrl.u32 %v3202, 7
        %v3204 = vsub.s32 1, %v3203
        %v3205 = vrot.slane %v3179, %v3204
        %v3208 = vmul.f32 %v3195, %v3201
        %v3209 = vmul.f32 %v3196, %v3205
        %v3211 = vlaneseq
        %v3212 = vshrl.u32 %v3211, 7
        %v3213 = vsub.s32 0, %v3212
        %v3214 = vrot.slane %v3180, %v3213
        %v3215 = vlaneseq
        %v3216 = vshrl.u32 %v3215, 7
        %v3217 = vsub.s32 1, %v3216
        %v3218 = vrot.slane %v3180, %v3217
        %v3221 = vadd.f32 %v3208, %v3214
        %v3222 = vadd.f32 %v3209, %v3218
        %v3223 = vld [vmem:[#allocation21] sm:$0xff]
        %v3224 = vld [vmem:[#allocation21 + $0x8] sm:$0xff]
        %v3225 = vld [vmem:[#allocation21 + $0x10] sm:$0xff]
        %v3226 = vld [vmem:[#allocation21 + $0x18] sm:$0xff]
        %v3227 = vld [vmem:[#allocation21 + $0x20] sm:$0xff]
        %v3228 = vld [vmem:[#allocation21 + $0x28] sm:$0xff]
        %v3229 = vld [vmem:[#allocation21 + $0x30] sm:$0xff]
        %v3230 = vld [vmem:[#allocation21 + $0x38] sm:$0xff]
        %v3231 = vld [vmem:[#allocation21 + $0x40] sm:$0xff]
        %v3232 = vld [vmem:[#allocation21 + $0x48] sm:$0xff]
        %v3233 = vld [vmem:[#allocation21 + $0x50] sm:$0xff]
        %v3234 = vld [vmem:[#allocation21 + $0x58] sm:$0xff]
        %v3235 = vld [vmem:[#allocation21 + $0x60] sm:$0xff]
        %v3236 = vld [vmem:[#allocation21 + $0x68] sm:$0xff]
        %v3237 = vld [vmem:[#allocation21 + $0x70] sm:$0xff]
        %v3238 = vld [vmem:[#allocation21 + $0x78] sm:$0xff]
        %v3239 = vld [vmem:[#allocation21 + $0x80] sm:$0xff]
        %v3240 = vld [vmem:[#allocation21 + $0x88] sm:$0xff]
        %v3241 = vld [vmem:[#allocation21 + $0x90] sm:$0xff]
        %v3242 = vld [vmem:[#allocation21 + $0x98] sm:$0xff]
        %v3243 = vld [vmem:[#allocation21 + $0xa0] sm:$0xff]
        %v3244 = vld [vmem:[#allocation21 + $0xa8] sm:$0xff]
        %v3245 = vld [vmem:[#allocation21 + $0xb0] sm:$0xff]
        %v3246 = vld [vmem:[#allocation21 + $0xb8] sm:$0xff]
        %v3247 = vld [vmem:[#allocation21 + $0xc0] sm:$0xff]
        %v3248 = vld [vmem:[#allocation21 + $0xc8] sm:$0xff]
        %v3249 = vld [vmem:[#allocation21 + $0xd0] sm:$0xff]
        %v3250 = vld [vmem:[#allocation21 + $0xd8] sm:$0xff]
        %v3251 = vld [vmem:[#allocation21 + $0xe0] sm:$0xff]
        %v3252 = vld [vmem:[#allocation21 + $0xe8] sm:$0xff]
        %v3253 = vld [vmem:[#allocation21 + $0xf0] sm:$0xff]
        %v3254 = vld [vmem:[#allocation21 + $0xf8] sm:$0xff]
        %v3255 = vld [vmem:[#allocation21 + $0x100] sm:$0xff]
        %v3256 = vld [vmem:[#allocation21 + $0x108] sm:$0xff]
        %v3257 = vld [vmem:[#allocation21 + $0x110] sm:$0xff]
        %v3258 = vld [vmem:[#allocation21 + $0x118] sm:$0xff]
        %v3259 = vld [vmem:[#allocation21 + $0x120] sm:$0xff]
        %v3260 = vld [vmem:[#allocation21 + $0x128] sm:$0xff]
        %v3261 = vld [vmem:[#allocation21 + $0x130] sm:$0xff]
        %v3262 = vld [vmem:[#allocation21 + $0x138] sm:$0xff]
        %v3263 = vld [vmem:[#allocation21 + $0x140] sm:$0xff]
        %v3264 = vld [vmem:[#allocation21 + $0x148] sm:$0xff]
        %v3265 = vld [vmem:[#allocation21 + $0x150] sm:$0xff]
        %v3266 = vld [vmem:[#allocation21 + $0x158] sm:$0xff]
        %v3267 = vld [vmem:[#allocation21 + $0x160] sm:$0xff]
        %v3268 = vld [vmem:[#allocation21 + $0x168] sm:$0xff]
        %v3269 = vld [vmem:[#allocation21 + $0x170] sm:$0xff]
        %v3270 = vld [vmem:[#allocation21 + $0x178] sm:$0xff]
        %v3271 = vld [vmem:[#allocation21 + $0x180] sm:$0xff]
        %v3272 = vld [vmem:[#allocation21 + $0x188] sm:$0xff]
        %v3273 = vld [vmem:[#allocation21 + $0x190] sm:$0xff]
        %v3274 = vld [vmem:[#allocation21 + $0x198] sm:$0xff]
        %v3275 = vld [vmem:[#allocation21 + $0x1a0] sm:$0xff]
        %v3276 = vld [vmem:[#allocation21 + $0x1a8] sm:$0xff]
        %v3277 = vld [vmem:[#allocation21 + $0x1b0] sm:$0xff]
        %v3278 = vld [vmem:[#allocation21 + $0x1b8] sm:$0xff]
        %v3279 = vld [vmem:[#allocation21 + $0x1c0] sm:$0xff]
        %v3280 = vld [vmem:[#allocation21 + $0x1c8] sm:$0xff]
        %v3281 = vld [vmem:[#allocation21 + $0x1d0] sm:$0xff]
        %v3282 = vld [vmem:[#allocation21 + $0x1d8] sm:$0xff]
        %v3283 = vld [vmem:[#allocation21 + $0x1e0] sm:$0xff]
        %v3284 = vld [vmem:[#allocation21 + $0x1e8] sm:$0xff]
        %v3285 = vld [vmem:[#allocation21 + $0x1f0] sm:$0xff]
        %v3286 = vld [vmem:[#allocation21 + $0x1f8] sm:$0xff]
        %v3287 = vld [vmem:[#allocation21 + $0x200] sm:$0xff]
        %v3288 = vld [vmem:[#allocation21 + $0x208] sm:$0xff]
        %v3289 = vld [vmem:[#allocation21 + $0x210] sm:$0xff]
        %v3290 = vld [vmem:[#allocation21 + $0x218] sm:$0xff]
        %v3291 = vld [vmem:[#allocation21 + $0x220] sm:$0xff]
        %v3292 = vld [vmem:[#allocation21 + $0x228] sm:$0xff]
        %v3293 = vld [vmem:[#allocation21 + $0x230] sm:$0xff]
        %v3294 = vld [vmem:[#allocation21 + $0x238] sm:$0xff]
        %v3295 = vld [vmem:[#allocation21 + $0x240] sm:$0xff]
        %v3296 = vld [vmem:[#allocation21 + $0x248] sm:$0xff]
        %v3297 = vld [vmem:[#allocation21 + $0x250] sm:$0xff]
        %v3298 = vld [vmem:[#allocation21 + $0x258] sm:$0xff]
        %v3299 = vld [vmem:[#allocation21 + $0x260] sm:$0xff]
        %v3300 = vld [vmem:[#allocation21 + $0x268] sm:$0xff]
        %v3301 = vld [vmem:[#allocation21 + $0x270] sm:$0xff]
        %v3302 = vld [vmem:[#allocation21 + $0x278] sm:$0xff]
        %v3303 = vld [vmem:[#allocation21 + $0x280] sm:$0xff]
        %v3304 = vld [vmem:[#allocation21 + $0x288] sm:$0xff]
        %v3305 = vld [vmem:[#allocation21 + $0x290] sm:$0xff]
        %v3306 = vld [vmem:[#allocation21 + $0x298] sm:$0xff]
        %v3307 = vld [vmem:[#allocation21 + $0x2a0] sm:$0xff]
        %v3308 = vld [vmem:[#allocation21 + $0x2a8] sm:$0xff]
        %v3309 = vld [vmem:[#allocation21 + $0x2b0] sm:$0xff]
        %v3310 = vld [vmem:[#allocation21 + $0x2b8] sm:$0xff]
        %v3311 = vld [vmem:[#allocation21 + $0x2c0] sm:$0xff]
        %v3312 = vld [vmem:[#allocation21 + $0x2c8] sm:$0xff]
        %v3313 = vld [vmem:[#allocation21 + $0x2d0] sm:$0xff]
        %v3314 = vld [vmem:[#allocation21 + $0x2d8] sm:$0xff]
        %v3315 = vld [vmem:[#allocation21 + $0x2e0] sm:$0xff]
        %v3316 = vld [vmem:[#allocation21 + $0x2e8] sm:$0xff]
        %v3317 = vld [vmem:[#allocation21 + $0x2f0] sm:$0xff]
        %v3318 = vld [vmem:[#allocation21 + $0x2f8] sm:$0xff]
        %v3319 = vld [vmem:[#allocation21 + $0x300] sm:$0xff]
        %v3320 = vld [vmem:[#allocation21 + $0x308] sm:$0xff]
        %v3321 = vld [vmem:[#allocation21 + $0x310] sm:$0xff]
        %v3322 = vld [vmem:[#allocation21 + $0x318] sm:$0xff]
        %v3323 = vld [vmem:[#allocation21 + $0x320] sm:$0xff]
        %v3324 = vld [vmem:[#allocation21 + $0x328] sm:$0xff]
        %v3325 = vld [vmem:[#allocation21 + $0x330] sm:$0xff]
        %v3326 = vld [vmem:[#allocation21 + $0x338] sm:$0xff]
        %v3327 = vld [vmem:[#allocation21 + $0x340] sm:$0xff]
        %v3328 = vld [vmem:[#allocation21 + $0x348] sm:$0xff]
        %v3329 = vld [vmem:[#allocation21 + $0x350] sm:$0xff]
        %v3330 = vld [vmem:[#allocation21 + $0x358] sm:$0xff]
        %v3331 = vld [vmem:[#allocation21 + $0x360] sm:$0xff]
        %v3332 = vld [vmem:[#allocation21 + $0x368] sm:$0xff]
        %v3333 = vld [vmem:[#allocation21 + $0x370] sm:$0xff]
        %v3334 = vld [vmem:[#allocation21 + $0x378] sm:$0xff]
        %v3335 = vld [vmem:[#allocation21 + $0x380] sm:$0xff]
        %v3336 = vld [vmem:[#allocation21 + $0x388] sm:$0xff]
        %v3337 = vld [vmem:[#allocation21 + $0x390] sm:$0xff]
        %v3338 = vld [vmem:[#allocation21 + $0x398] sm:$0xff]
        %v3339 = vld [vmem:[#allocation21 + $0x3a0] sm:$0xff]
        %v3340 = vld [vmem:[#allocation21 + $0x3a8] sm:$0xff]
        %v3341 = vld [vmem:[#allocation21 + $0x3b0] sm:$0xff]
        %v3342 = vld [vmem:[#allocation21 + $0x3b8] sm:$0xff]
        %v3343 = vld [vmem:[#allocation21 + $0x3c0] sm:$0xff]
        %v3344 = vld [vmem:[#allocation21 + $0x3c8] sm:$0xff]
        %v3345 = vld [vmem:[#allocation21 + $0x3d0] sm:$0xff]
        %v3346 = vld [vmem:[#allocation21 + $0x3d8] sm:$0xff]
        %v3347 = vld [vmem:[#allocation21 + $0x3e0] sm:$0xff]
        %v3348 = vld [vmem:[#allocation21 + $0x3e8] sm:$0xff]
        %v3349 = vld [vmem:[#allocation21 + $0x3f0] sm:$0xff]
        %v3350 = vld [vmem:[#allocation21 + $0x3f8] sm:$0xff]
        %v3351 = vld [vmem:[%s55] sm:$0xf]
        %v3353 = vlaneseq
        %v3354 = vshrl.u32 %v3353, 7
        %v3355 = vsub.s32 0, %v3354
        %v3356 = vrot.slane %v3351, %v3355
        %v3357 = vlaneseq
        %v3358 = vshrl.u32 %v3357, 7
        %v3359 = vsub.s32 1, %v3358
        %v3360 = vrot.slane %v3351, %v3359
        %v3361 = vlaneseq
        %v3362 = vshrl.u32 %v3361, 7
        %v3363 = vsub.s32 2, %v3362
        %v3364 = vrot.slane %v3351, %v3363
        %v3365 = vlaneseq
        %v3366 = vshrl.u32 %v3365, 7
        %v3367 = vsub.s32 3, %v3366
        %v3368 = vrot.slane %v3351, %v3367
        %3373 = vmatprep.subr.mxu0 %v3224
        %3374 = vmatpush1.msra.mxu0 %v3223
        %3375 = vmatprep.subr.mxu0 %v3228
        %3376 = vmatpush1.msra.mxu0 %v3227
        %3377 = vmatprep.subr.mxu0 %v3232
        %3378 = vmatpush1.msra.mxu0 %v3231
        %3379 = vmatprep.subr.mxu0 %v3236
        %3380 = vmatpush1.msra.mxu0 %v3235
        %3381 = vmatprep.subr.mxu0 %v3240
        %3382 = vmatpush1.msra.mxu0 %v3239
        %3383 = vmatprep.subr.mxu0 %v3244
        %3384 = vmatpush1.msra.mxu0 %v3243
        %3385 = vmatprep.subr.mxu0 %v3248
        %3386 = vmatpush1.msra.mxu0 %v3247
        %3387 = vmatprep.subr.mxu0 %v3252
        %3388 = vmatpush1.msra.mxu0 %v3251
        %3389 = vmatprep.subr.mxu0 %v3256
        %3390 = vmatpush1.msra.mxu0 %v3255
        %3391 = vmatprep.subr.mxu0 %v3260
        %3392 = vmatpush1.msra.mxu0 %v3259
        %3393 = vmatprep.subr.mxu0 %v3264
        %3394 = vmatpush1.msra.mxu0 %v3263
        %3395 = vmatprep.subr.mxu0 %v3268
        %3396 = vmatpush1.msra.mxu0 %v3267
        %3397 = vmatprep.subr.mxu0 %v3272
        %3398 = vmatpush1.msra.mxu0 %v3271
        %3399 = vmatprep.subr.mxu0 %v3276
        %3400 = vmatpush1.msra.mxu0 %v3275
        %3401 = vmatprep.subr.mxu0 %v3280
        %3402 = vmatpush1.msra.mxu0 %v3279
        %3403 = vmatprep.subr.mxu0 %v3284
        %3404 = vmatpush1.msra.mxu0 %v3283
        %3405 = vmatprep.subr.mxu0 %v3288
        %3406 = vmatpush1.msra.mxu0 %v3287
        %3407 = vmatprep.subr.mxu0 %v3292
        %3408 = vmatpush1.msra.mxu0 %v3291
        %3409 = vmatprep.subr.mxu0 %v3296
        %3410 = vmatpush1.msra.mxu0 %v3295
        %3411 = vmatprep.subr.mxu0 %v3300
        %3412 = vmatpush1.msra.mxu0 %v3299
        %3413 = vmatprep.subr.mxu0 %v3304
        %3414 = vmatpush1.msra.mxu0 %v3303
        %3415 = vmatprep.subr.mxu0 %v3308
        %3416 = vmatpush1.msra.mxu0 %v3307
        %3417 = vmatprep.subr.mxu0 %v3312
        %3418 = vmatpush1.msra.mxu0 %v3311
        %3419 = vmatprep.subr.mxu0 %v3316
        %3420 = vmatpush1.msra.mxu0 %v3315
        %3421 = vmatprep.subr.mxu0 %v3320
        %3422 = vmatpush1.msra.mxu0 %v3319
        %3423 = vmatprep.subr.mxu0 %v3324
        %3424 = vmatpush1.msra.mxu0 %v3323
        %3425 = vmatprep.subr.mxu0 %v3328
        %3426 = vmatpush1.msra.mxu0 %v3327
        %3427 = vmatprep.subr.mxu0 %v3332
        %3428 = vmatpush1.msra.mxu0 %v3331
        %3429 = vmatprep.subr.mxu0 %v3336
        %3430 = vmatpush1.msra.mxu0 %v3335
        %3431 = vmatprep.subr.mxu0 %v3340
        %3432 = vmatpush1.msra.mxu0 %v3339
        %3433 = vmatprep.subr.mxu0 %v3344
        %3434 = vmatpush1.msra.mxu0 %v3343
        %3435 = vmatprep.subr.mxu0 %v3348
        %3436 = vmatpush1.msra.mxu0 %v3347
        %3437 = vmatprep.mubr.f32.mxu0 %v3222
        %3438 = vmatmul.mubr.f32.gmra.mrb[0].mxu0 %v3221
        %v3439 = vpop.f32.mrb[0].mxu0
        %v3440 = vadd.f32 %v3356, %v3439
        %v3441 = vpop.f32.mrb[0].mxu0
        %v3442 = vadd.f32 %v3360, %v3441
        %3443 = vdwg.mxu0
        %3444 = vmatprep.subr.mxu0 %v3226
        %3445 = vmatpush1.msra.mxu0 %v3225
        %3446 = vmatprep.subr.mxu0 %v3230
        %3447 = vmatpush1.msra.mxu0 %v3229
        %3448 = vmatprep.subr.mxu0 %v3234
        %3449 = vmatpush1.msra.mxu0 %v3233
        %3450 = vmatprep.subr.mxu0 %v3238
        %3451 = vmatpush1.msra.mxu0 %v3237
        %3452 = vmatprep.subr.mxu0 %v3242
        %3453 = vmatpush1.msra.mxu0 %v3241
        %3454 = vmatprep.subr.mxu0 %v3246
        %3455 = vmatpush1.msra.mxu0 %v3245
        %3456 = vmatprep.subr.mxu0 %v3250
        %3457 = vmatpush1.msra.mxu0 %v3249
        %3458 = vmatprep.subr.mxu0 %v3254
        %3459 = vmatpush1.msra.mxu0 %v3253
        %3460 = vmatprep.subr.mxu0 %v3258
        %3461 = vmatpush1.msra.mxu0 %v3257
        %3462 = vmatprep.subr.mxu0 %v3262
        %3463 = vmatpush1.msra.mxu0 %v3261
        %3464 = vmatprep.subr.mxu0 %v3266
        %3465 = vmatpush1.msra.mxu0 %v3265
        %3466 = vmatprep.subr.mxu0 %v3270
        %3467 = vmatpush1.msra.mxu0 %v3269
        %3468 = vmatprep.subr.mxu0 %v3274
        %3469 = vmatpush1.msra.mxu0 %v3273
        %3470 = vmatprep.subr.mxu0 %v3278
        %3471 = vmatpush1.msra.mxu0 %v3277
        %3472 = vmatprep.subr.mxu0 %v3282
        %3473 = vmatpush1.msra.mxu0 %v3281
        %3474 = vmatprep.subr.mxu0 %v3286
        %3475 = vmatpush1.msra.mxu0 %v3285
        %3476 = vmatprep.subr.mxu0 %v3290
        %3477 = vmatpush1.msra.mxu0 %v3289
        %3478 = vmatprep.subr.mxu0 %v3294
        %3479 = vmatpush1.msra.mxu0 %v3293
        %3480 = vmatprep.subr.mxu0 %v3298
        %3481 = vmatpush1.msra.mxu0 %v3297
        %3482 = vmatprep.subr.mxu0 %v3302
        %3483 = vmatpush1.msra.mxu0 %v3301
        %3484 = vmatprep.subr.mxu0 %v3306
        %3485 = vmatpush1.msra.mxu0 %v3305
        %3486 = vmatprep.subr.mxu0 %v3310
        %3487 = vmatpush1.msra.mxu0 %v3309
        %3488 = vmatprep.subr.mxu0 %v3314
        %3489 = vmatpush1.msra.mxu0 %v3313
        %3490 = vmatprep.subr.mxu0 %v3318
        %3491 = vmatpush1.msra.mxu0 %v3317
        %3492 = vmatprep.subr.mxu0 %v3322
        %3493 = vmatpush1.msra.mxu0 %v3321
        %3494 = vmatprep.subr.mxu0 %v3326
        %3495 = vmatpush1.msra.mxu0 %v3325
        %3496 = vmatprep.subr.mxu0 %v3330
        %3497 = vmatpush1.msra.mxu0 %v3329
        %3498 = vmatprep.subr.mxu0 %v3334
        %3499 = vmatpush1.msra.mxu0 %v3333
        %3500 = vmatprep.subr.mxu0 %v3338
        %3501 = vmatpush1.msra.mxu0 %v3337
        %3502 = vmatprep.subr.mxu0 %v3342
        %3503 = vmatpush1.msra.mxu0 %v3341
        %3504 = vmatprep.subr.mxu0 %v3346
        %3505 = vmatpush1.msra.mxu0 %v3345
        %3506 = vmatprep.subr.mxu0 %v3350
        %3507 = vmatpush1.msra.mxu0 %v3349
        %3508 = vmatprep.mubr.f32.mxu0 %v3222
        %3509 = vmatmul.mubr.f32.gmra.mrb[0].mxu0 %v3221
        %v3510 = vpop.f32.mrb[0].mxu0
        %v3511 = vadd.f32 %v3364, %v3510
        %v3512 = vpop.f32.mrb[0].mxu0
        %v3513 = vadd.f32 %v3368, %v3512
        %3514 = vdwg.mxu0
        %v3515 = vmax.f32 %v3440, 0.0
        %v3516 = vmax.f32 %v3442, 0.0
        %v3517 = vmax.f32 %v3511, 0.0
        %v3518 = vmax.f32 %v3513, 0.0
        %v3519 = vld [vmem:[#allocation23] sm:$0xff]
        %v3520 = vld [vmem:[#allocation23 + $0x8] sm:$0xff]
        %v3521 = vld [vmem:[#allocation23 + $0x10] sm:$0xff]
        %v3522 = vld [vmem:[#allocation23 + $0x18] sm:$0xff]
        %v3523 = vld [vmem:[#allocation23 + $0x20] sm:$0xff]
        %v3524 = vld [vmem:[#allocation23 + $0x28] sm:$0xff]
        %v3525 = vld [vmem:[#allocation23 + $0x30] sm:$0xff]
        %v3526 = vld [vmem:[#allocation23 + $0x38] sm:$0xff]
        %v3527 = vld [vmem:[#allocation23 + $0x40] sm:$0xff]
        %v3528 = vld [vmem:[#allocation23 + $0x48] sm:$0xff]
        %v3529 = vld [vmem:[#allocation23 + $0x50] sm:$0xff]
        %v3530 = vld [vmem:[#allocation23 + $0x58] sm:$0xff]
        %v3531 = vld [vmem:[#allocation23 + $0x60] sm:$0xff]
        %v3532 = vld [vmem:[#allocation23 + $0x68] sm:$0xff]
        %v3533 = vld [vmem:[#allocation23 + $0x70] sm:$0xff]
        %v3534 = vld [vmem:[#allocation23 + $0x78] sm:$0xff]
        %v3535 = vld [vmem:[#allocation23 + $0x80] sm:$0xff]
        %v3536 = vld [vmem:[#allocation23 + $0x88] sm:$0xff]
        %v3537 = vld [vmem:[#allocation23 + $0x90] sm:$0xff]
        %v3538 = vld [vmem:[#allocation23 + $0x98] sm:$0xff]
        %v3539 = vld [vmem:[#allocation23 + $0xa0] sm:$0xff]
        %v3540 = vld [vmem:[#allocation23 + $0xa8] sm:$0xff]
        %v3541 = vld [vmem:[#allocation23 + $0xb0] sm:$0xff]
        %v3542 = vld [vmem:[#allocation23 + $0xb8] sm:$0xff]
        %v3543 = vld [vmem:[#allocation23 + $0xc0] sm:$0xff]
        %v3544 = vld [vmem:[#allocation23 + $0xc8] sm:$0xff]
        %v3545 = vld [vmem:[#allocation23 + $0xd0] sm:$0xff]
        %v3546 = vld [vmem:[#allocation23 + $0xd8] sm:$0xff]
        %v3547 = vld [vmem:[#allocation23 + $0xe0] sm:$0xff]
        %v3548 = vld [vmem:[#allocation23 + $0xe8] sm:$0xff]
        %v3549 = vld [vmem:[#allocation23 + $0xf0] sm:$0xff]
        %v3550 = vld [vmem:[#allocation23 + $0xf8] sm:$0xff]
        %v3551 = vld [vmem:[#allocation23 + $0x100] sm:$0xff]
        %v3552 = vld [vmem:[#allocation23 + $0x108] sm:$0xff]
        %v3553 = vld [vmem:[#allocation23 + $0x110] sm:$0xff]
        %v3554 = vld [vmem:[#allocation23 + $0x118] sm:$0xff]
        %v3555 = vld [vmem:[#allocation23 + $0x120] sm:$0xff]
        %v3556 = vld [vmem:[#allocation23 + $0x128] sm:$0xff]
        %v3557 = vld [vmem:[#allocation23 + $0x130] sm:$0xff]
        %v3558 = vld [vmem:[#allocation23 + $0x138] sm:$0xff]
        %v3559 = vld [vmem:[#allocation23 + $0x140] sm:$0xff]
        %v3560 = vld [vmem:[#allocation23 + $0x148] sm:$0xff]
        %v3561 = vld [vmem:[#allocation23 + $0x150] sm:$0xff]
        %v3562 = vld [vmem:[#allocation23 + $0x158] sm:$0xff]
        %v3563 = vld [vmem:[#allocation23 + $0x160] sm:$0xff]
        %v3564 = vld [vmem:[#allocation23 + $0x168] sm:$0xff]
        %v3565 = vld [vmem:[#allocation23 + $0x170] sm:$0xff]
        %v3566 = vld [vmem:[#allocation23 + $0x178] sm:$0xff]
        %v3567 = vld [vmem:[#allocation23 + $0x180] sm:$0xff]
        %v3568 = vld [vmem:[#allocation23 + $0x188] sm:$0xff]
        %v3569 = vld [vmem:[#allocation23 + $0x190] sm:$0xff]
        %v3570 = vld [vmem:[#allocation23 + $0x198] sm:$0xff]
        %v3571 = vld [vmem:[#allocation23 + $0x1a0] sm:$0xff]
        %v3572 = vld [vmem:[#allocation23 + $0x1a8] sm:$0xff]
        %v3573 = vld [vmem:[#allocation23 + $0x1b0] sm:$0xff]
        %v3574 = vld [vmem:[#allocation23 + $0x1b8] sm:$0xff]
        %v3575 = vld [vmem:[#allocation23 + $0x1c0] sm:$0xff]
        %v3576 = vld [vmem:[#allocation23 + $0x1c8] sm:$0xff]
        %v3577 = vld [vmem:[#allocation23 + $0x1d0] sm:$0xff]
        %v3578 = vld [vmem:[#allocation23 + $0x1d8] sm:$0xff]
        %v3579 = vld [vmem:[#allocation23 + $0x1e0] sm:$0xff]
        %v3580 = vld [vmem:[#allocation23 + $0x1e8] sm:$0xff]
        %v3581 = vld [vmem:[#allocation23 + $0x1f0] sm:$0xff]
        %v3582 = vld [vmem:[#allocation23 + $0x1f8] sm:$0xff]
        %v3583 = vld [vmem:[#allocation23 + $0x200] sm:$0xff]
        %v3584 = vld [vmem:[#allocation23 + $0x208] sm:$0xff]
        %v3585 = vld [vmem:[#allocation23 + $0x210] sm:$0xff]
        %v3586 = vld [vmem:[#allocation23 + $0x218] sm:$0xff]
        %v3587 = vld [vmem:[#allocation23 + $0x220] sm:$0xff]
        %v3588 = vld [vmem:[#allocation23 + $0x228] sm:$0xff]
        %v3589 = vld [vmem:[#allocation23 + $0x230] sm:$0xff]
        %v3590 = vld [vmem:[#allocation23 + $0x238] sm:$0xff]
        %v3591 = vld [vmem:[#allocation23 + $0x240] sm:$0xff]
        %v3592 = vld [vmem:[#allocation23 + $0x248] sm:$0xff]
        %v3593 = vld [vmem:[#allocation23 + $0x250] sm:$0xff]
        %v3594 = vld [vmem:[#allocation23 + $0x258] sm:$0xff]
        %v3595 = vld [vmem:[#allocation23 + $0x260] sm:$0xff]
        %v3596 = vld [vmem:[#allocation23 + $0x268] sm:$0xff]
        %v3597 = vld [vmem:[#allocation23 + $0x270] sm:$0xff]
        %v3598 = vld [vmem:[#allocation23 + $0x278] sm:$0xff]
        %v3599 = vld [vmem:[#allocation23 + $0x280] sm:$0xff]
        %v3600 = vld [vmem:[#allocation23 + $0x288] sm:$0xff]
        %v3601 = vld [vmem:[#allocation23 + $0x290] sm:$0xff]
        %v3602 = vld [vmem:[#allocation23 + $0x298] sm:$0xff]
        %v3603 = vld [vmem:[#allocation23 + $0x2a0] sm:$0xff]
        %v3604 = vld [vmem:[#allocation23 + $0x2a8] sm:$0xff]
        %v3605 = vld [vmem:[#allocation23 + $0x2b0] sm:$0xff]
        %v3606 = vld [vmem:[#allocation23 + $0x2b8] sm:$0xff]
        %v3607 = vld [vmem:[#allocation23 + $0x2c0] sm:$0xff]
        %v3608 = vld [vmem:[#allocation23 + $0x2c8] sm:$0xff]
        %v3609 = vld [vmem:[#allocation23 + $0x2d0] sm:$0xff]
        %v3610 = vld [vmem:[#allocation23 + $0x2d8] sm:$0xff]
        %v3611 = vld [vmem:[#allocation23 + $0x2e0] sm:$0xff]
        %v3612 = vld [vmem:[#allocation23 + $0x2e8] sm:$0xff]
        %v3613 = vld [vmem:[#allocation23 + $0x2f0] sm:$0xff]
        %v3614 = vld [vmem:[#allocation23 + $0x2f8] sm:$0xff]
        %v3615 = vld [vmem:[#allocation23 + $0x300] sm:$0xff]
        %v3616 = vld [vmem:[#allocation23 + $0x308] sm:$0xff]
        %v3617 = vld [vmem:[#allocation23 + $0x310] sm:$0xff]
        %v3618 = vld [vmem:[#allocation23 + $0x318] sm:$0xff]
        %v3619 = vld [vmem:[#allocation23 + $0x320] sm:$0xff]
        %v3620 = vld [vmem:[#allocation23 + $0x328] sm:$0xff]
        %v3621 = vld [vmem:[#allocation23 + $0x330] sm:$0xff]
        %v3622 = vld [vmem:[#allocation23 + $0x338] sm:$0xff]
        %v3623 = vld [vmem:[#allocation23 + $0x340] sm:$0xff]
        %v3624 = vld [vmem:[#allocation23 + $0x348] sm:$0xff]
        %v3625 = vld [vmem:[#allocation23 + $0x350] sm:$0xff]
        %v3626 = vld [vmem:[#allocation23 + $0x358] sm:$0xff]
        %v3627 = vld [vmem:[#allocation23 + $0x360] sm:$0xff]
        %v3628 = vld [vmem:[#allocation23 + $0x368] sm:$0xff]
        %v3629 = vld [vmem:[#allocation23 + $0x370] sm:$0xff]
        %v3630 = vld [vmem:[#allocation23 + $0x378] sm:$0xff]
        %v3631 = vld [vmem:[#allocation23 + $0x380] sm:$0xff]
        %v3632 = vld [vmem:[#allocation23 + $0x388] sm:$0xff]
        %v3633 = vld [vmem:[#allocation23 + $0x390] sm:$0xff]
        %v3634 = vld [vmem:[#allocation23 + $0x398] sm:$0xff]
        %v3635 = vld [vmem:[#allocation23 + $0x3a0] sm:$0xff]
        %v3636 = vld [vmem:[#allocation23 + $0x3a8] sm:$0xff]
        %v3637 = vld [vmem:[#allocation23 + $0x3b0] sm:$0xff]
        %v3638 = vld [vmem:[#allocation23 + $0x3b8] sm:$0xff]
        %v3639 = vld [vmem:[#allocation23 + $0x3c0] sm:$0xff]
        %v3640 = vld [vmem:[#allocation23 + $0x3c8] sm:$0xff]
        %v3641 = vld [vmem:[#allocation23 + $0x3d0] sm:$0xff]
        %v3642 = vld [vmem:[#allocation23 + $0x3d8] sm:$0xff]
        %v3643 = vld [vmem:[#allocation23 + $0x3e0] sm:$0xff]
        %v3644 = vld [vmem:[#allocation23 + $0x3e8] sm:$0xff]
        %v3645 = vld [vmem:[#allocation23 + $0x3f0] sm:$0xff]
        %v3646 = vld [vmem:[#allocation23 + $0x3f8] sm:$0xff]
        %3647 = vmatprep.subr.mxu0 %v3520
        %3648 = vmatpush1.msra.mxu0 %v3519
        %3649 = vmatprep.subr.mxu0 %v3522
        %3650 = vmatpush1.msra.mxu0 %v3521
        %3651 = vmatprep.subr.mxu0 %v3524
        %3652 = vmatpush1.msra.mxu0 %v3523
        %3653 = vmatprep.subr.mxu0 %v3526
        %3654 = vmatpush1.msra.mxu0 %v3525
        %3655 = vmatprep.subr.mxu0 %v3528
        %3656 = vmatpush1.msra.mxu0 %v3527
        %3657 = vmatprep.subr.mxu0 %v3530
        %3658 = vmatpush1.msra.mxu0 %v3529
        %3659 = vmatprep.subr.mxu0 %v3532
        %3660 = vmatpush1.msra.mxu0 %v3531
        %3661 = vmatprep.subr.mxu0 %v3534
        %3662 = vmatpush1.msra.mxu0 %v3533
        %3663 = vmatprep.subr.mxu0 %v3536
        %3664 = vmatpush1.msra.mxu0 %v3535
        %3665 = vmatprep.subr.mxu0 %v3538
        %3666 = vmatpush1.msra.mxu0 %v3537
        %3667 = vmatprep.subr.mxu0 %v3540
        %3668 = vmatpush1.msra.mxu0 %v3539
        %3669 = vmatprep.subr.mxu0 %v3542
        %3670 = vmatpush1.msra.mxu0 %v3541
        %3671 = vmatprep.subr.mxu0 %v3544
        %3672 = vmatpush1.msra.mxu0 %v3543
        %3673 = vmatprep.subr.mxu0 %v3546
        %3674 = vmatpush1.msra.mxu0 %v3545
        %3675 = vmatprep.subr.mxu0 %v3548
        %3676 = vmatpush1.msra.mxu0 %v3547
        %3677 = vmatprep.subr.mxu0 %v3550
        %3678 = vmatpush1.msra.mxu0 %v3549
        %3679 = vmatprep.subr.mxu0 %v3552
        %3680 = vmatpush1.msra.mxu0 %v3551
        %3681 = vmatprep.subr.mxu0 %v3554
        %3682 = vmatpush1.msra.mxu0 %v3553
        %3683 = vmatprep.subr.mxu0 %v3556
        %3684 = vmatpush1.msra.mxu0 %v3555
        %3685 = vmatprep.subr.mxu0 %v3558
        %3686 = vmatpush1.msra.mxu0 %v3557
        %3687 = vmatprep.subr.mxu0 %v3560
        %3688 = vmatpush1.msra.mxu0 %v3559
        %3689 = vmatprep.subr.mxu0 %v3562
        %3690 = vmatpush1.msra.mxu0 %v3561
        %3691 = vmatprep.subr.mxu0 %v3564
        %3692 = vmatpush1.msra.mxu0 %v3563
        %3693 = vmatprep.subr.mxu0 %v3566
        %3694 = vmatpush1.msra.mxu0 %v3565
        %3695 = vmatprep.subr.mxu0 %v3568
        %3696 = vmatpush1.msra.mxu0 %v3567
        %3697 = vmatprep.subr.mxu0 %v3570
        %3698 = vmatpush1.msra.mxu0 %v3569
        %3699 = vmatprep.subr.mxu0 %v3572
        %3700 = vmatpush1.msra.mxu0 %v3571
        %3701 = vmatprep.subr.mxu0 %v3574
        %3702 = vmatpush1.msra.mxu0 %v3573
        %3703 = vmatprep.subr.mxu0 %v3576
        %3704 = vmatpush1.msra.mxu0 %v3575
        %3705 = vmatprep.subr.mxu0 %v3578
        %3706 = vmatpush1.msra.mxu0 %v3577
        %3707 = vmatprep.subr.mxu0 %v3580
        %3708 = vmatpush1.msra.mxu0 %v3579
        %3709 = vmatprep.subr.mxu0 %v3582
        %3710 = vmatpush1.msra.mxu0 %v3581
        %3711 = vmatprep.mubr.f32.mxu0 %v3516
        %3712 = vmatmul.mubr.f32.gmra.mrb[0].mxu0 %v3515
        %v3713 = vpop.f32.mrb[0].mxu0
        %v3714 = vadd.f32 0.0, %v3713
        %v3715 = vpop.f32.mrb[0].mxu0
        %v3716 = vadd.f32 0.0, %v3715
        %3717 = vdwg.mxu0
        %3718 = vmatprep.subr.mxu0 %v3584
        %3719 = vmatpush1.msra.mxu0 %v3583
        %3720 = vmatprep.subr.mxu0 %v3586
        %3721 = vmatpush1.msra.mxu0 %v3585
        %3722 = vmatprep.subr.mxu0 %v3588
        %3723 = vmatpush1.msra.mxu0 %v3587
        %3724 = vmatprep.subr.mxu0 %v3590
        %3725 = vmatpush1.msra.mxu0 %v3589
        %3726 = vmatprep.subr.mxu0 %v3592
        %3727 = vmatpush1.msra.mxu0 %v3591
        %3728 = vmatprep.subr.mxu0 %v3594
        %3729 = vmatpush1.msra.mxu0 %v3593
        %3730 = vmatprep.subr.mxu0 %v3596
        %3731 = vmatpush1.msra.mxu0 %v3595
        %3732 = vmatprep.subr.mxu0 %v3598
        %3733 = vmatpush1.msra.mxu0 %v3597
        %3734 = vmatprep.subr.mxu0 %v3600
        %3735 = vmatpush1.msra.mxu0 %v3599
        %3736 = vmatprep.subr.mxu0 %v3602
        %3737 = vmatpush1.msra.mxu0 %v3601
        %3738 = vmatprep.subr.mxu0 %v3604
        %3739 = vmatpush1.msra.mxu0 %v3603
        %3740 = vmatprep.subr.mxu0 %v3606
        %3741 = vmatpush1.msra.mxu0 %v3605
        %3742 = vmatprep.subr.mxu0 %v3608
        %3743 = vmatpush1.msra.mxu0 %v3607
        %3744 = vmatprep.subr.mxu0 %v3610
        %3745 = vmatpush1.msra.mxu0 %v3609
        %3746 = vmatprep.subr.mxu0 %v3612
        %3747 = vmatpush1.msra.mxu0 %v3611
        %3748 = vmatprep.subr.mxu0 %v3614
        %3749 = vmatpush1.msra.mxu0 %v3613
        %3750 = vmatprep.subr.mxu0 %v3616
        %3751 = vmatpush1.msra.mxu0 %v3615
        %3752 = vmatprep.subr.mxu0 %v3618
        %3753 = vmatpush1.msra.mxu0 %v3617
        %3754 = vmatprep.subr.mxu0 %v3620
        %3755 = vmatpush1.msra.mxu0 %v3619
        %3756 = vmatprep.subr.mxu0 %v3622
        %3757 = vmatpush1.msra.mxu0 %v3621
        %3758 = vmatprep.subr.mxu0 %v3624
        %3759 = vmatpush1.msra.mxu0 %v3623
        %3760 = vmatprep.subr.mxu0 %v3626
        %3761 = vmatpush1.msra.mxu0 %v3625
        %3762 = vmatprep.subr.mxu0 %v3628
        %3763 = vmatpush1.msra.mxu0 %v3627
        %3764 = vmatprep.subr.mxu0 %v3630
        %3765 = vmatpush1.msra.mxu0 %v3629
        %3766 = vmatprep.subr.mxu0 %v3632
        %3767 = vmatpush1.msra.mxu0 %v3631
        %3768 = vmatprep.subr.mxu0 %v3634
        %3769 = vmatpush1.msra.mxu0 %v3633
        %3770 = vmatprep.subr.mxu0 %v3636
        %3771 = vmatpush1.msra.mxu0 %v3635
        %3772 = vmatprep.subr.mxu0 %v3638
        %3773 = vmatpush1.msra.mxu0 %v3637
        %3774 = vmatprep.subr.mxu0 %v3640
        %3775 = vmatpush1.msra.mxu0 %v3639
        %3776 = vmatprep.subr.mxu0 %v3642
        %3777 = vmatpush1.msra.mxu0 %v3641
        %3778 = vmatprep.subr.mxu0 %v3644
        %3779 = vmatpush1.msra.mxu0 %v3643
        %3780 = vmatprep.subr.mxu0 %v3646
        %3781 = vmatpush1.msra.mxu0 %v3645
        %3782 = vmatprep.mubr.f32.mxu0 %v3518
        %3783 = vmatmul.mubr.f32.gmra.mrb[0].mxu0 %v3517
        %v3784 = vpop.f32.mrb[0].mxu0
        %v3785 = vadd.f32 %v3714, %v3784
        %v3786 = vpop.f32.mrb[0].mxu0
        %v3787 = vadd.f32 %v3716, %v3786
        %3788 = vdwg.mxu0
        %v3789 = vadd.f32 %v3177, %v3785
        %v3790 = vadd.f32 %v3178, %v3787
        %v3791 = vld [vmem:[%s59] sm:$0x3]
        %v3793 = vlaneseq
        %v3794 = vshrl.u32 %v3793, 7
        %v3795 = vsub.s32 0, %v3794
        %v3796 = vrot.slane %v3791, %v3795
        %v3797 = vlaneseq
        %v3798 = vshrl.u32 %v3797, 7
        %v3799 = vsub.s32 1, %v3798
        %v3800 = vrot.slane %v3791, %v3799
        %v3803 = vadd.f32 %v3789, %v3796
        %v3804 = vadd.f32 %v3790, %v3800
        %3805 = vst [vmem:[%s1190] sm:$0xff] %v3803
        %3806 = vst [vmem:[%s1190 + $0x8] sm:$0xff] %v3804
        %s3807 = sand.u32 %s758, 1
        %s3808 = scalar_lea.sflag [#allocation5], %s3807
        %s3809 = sand.u32 %s758, 1
        %s3810 = smul.addr %s3809, 16
        %s3811 = scalar_lea.vmem [#allocation24], %s3810
        // Predicated region
        $region193: #{tpu_custom_call.1} parent=139 // pred_check
          %p3812 = pneg %p768
        $region194: #{tpu_custom_call.1} parent=139 // pred_check_branch
          %3814 = sbr.rel (%p3812) target = $region196
        $region195: #{tpu_custom_call.1} parent=139 // pred_region
          %s3816 = ssub.s32 256, 256
          %3817 = vsyncadd %s3808, %s3816
          %s3818 = smul.addr %s91, 2
          %s3819 = smul.addr %s90, 4
          %s3820 = sadd.s32 %s3818, %s3819
          %s3821 = smul.addr %s3820, 128
          %s3822 = scalar_lea.hbm %s61, %s3821
          %s3824 = sshll.u32 %s3811, 4
          %s3825 = int_to_ptr.vmem [resolvable:$true] %s3824
          %3827 = dma.vmem_to_hbm [thread:$0]  %s3825, 256, %s3822, %s3808
        $region196: #{tpu_custom_call.1} parent=139 // pred_fallthru
          _
      $region140: #{tpu_custom_call.1} parent=5 // pred_fallthru
        _
      %p3828 = scmp.le.s32.totalorder 2, %s81
      // Predicated region
      $region197: #{tpu_custom_call.1} parent=5 // pred_check
        %p3829 = pneg %p3828
      $region198: #{tpu_custom_call.1} parent=5 // pred_check_branch
        %3831 = sbr.rel (%p3829) target = $region200
      $region199: #{tpu_custom_call.1} parent=5 // pred_region
        %s3832 = ssub.s32 %s81, 2
        // Predicated region
        $region201: #{tpu_custom_call.1} parent=199 // pred_check
          %p3833 = pneg %p774
        $region202: #{tpu_custom_call.1} parent=199 // pred_check_branch
          %3835 = sbr.rel (%p3833) target = $region204
        $region203: #{tpu_custom_call.1} parent=199 // pred_region
          %s3836 = sand.u32 %s759, 1
          %s3837 = scalar_lea.sflag [#allocation5], %s3836
          %s3838 = sand.u32 %s759, 1
          %s3839 = smul.addr %s3838, 16
          %s3840 = scalar_lea.vmem [#allocation24], %s3839
          %3841 = dma.done %s3837, 256
        $region204: #{tpu_custom_call.1} parent=199 // pred_fallthru
          _
      $region200: #{tpu_custom_call.1} parent=5 // pred_fallthru
        _
    $region6: #{tpu_custom_call.1} parent=1 // loop_footer
      %s85 = sadd.s32 1, %s81
    $region7: #{tpu_custom_call.1} parent=1 // loop_footer_branch
      %80 = sbr.rel target = $region3
    $region8: #{tpu_custom_call.1} parent=1 // loop_exit
      _
    %3842 = vsyncpa [#allocation4], 1
    %s3843 = scalar_lea.sflag [#allocation4], 1
    %3844 = vsyncpa %s3843, 1
    %3845 = vsyncpa [#allocation7], 1
    %s3846 = scalar_lea.sflag [#allocation7], 1
    %3847 = vsyncpa %s3846, 1
    %3848 = vsyncpa [#allocation10], 1
    %3849 = vsyncpa [#allocation13], 1
    %3850 = vsyncpa [#allocation16], 1
    %3851 = vsyncpa [#allocation19], 1
    %3852 = vsyncpa [#allocation22], 1
    %3853 = vsyncpa [#allocation5], 1
    %s3854 = scalar_lea.sflag [#allocation5], 1
    %3855 = vsyncpa %s3854, 1

</llo_original>
